<compile_context>
chip_gen: v7x
topology: tpu7x:2x2x1
jax: 0.10.0
libtpu: 0.0.40
codegen_flags: <defaults>
</compile_context>

<pallas_src>
import math
import functools

import jax
import jax.numpy as jnp
from jax.experimental import pallas as pl
from jax.experimental.pallas import tpu as pltpu

NEG_SLOPE = 0.01  # PyTorch F.leaky_relu default
MODALITIES = ("v", "t", "p", "tr")


def _leaky(x):
    return jnp.where(x >= 0, x, NEG_SLOPE * x)


# ----------------------------------------------------------------------------
# Single fused kernel: per-modality GNN hop + representation accumulation +
# (on the last grid step) multimodal attention, BPR scores and MLP_price.
# ----------------------------------------------------------------------------
def nft_mars_kernel(item_ref, umw_ref, umb_ref, cw_ref, l1w_ref, l1b_ref,
                    g1w_ref, g1b_ref, scale_ref,
                    uf_ref, uplace_ref, adjb_ref, id_ref,
                    uidx_ref, pidx_ref, nidx_ref,
                    wq_ref, wk_ref, wv_ref,
                    w1u_ref, w1p_ref, b1_ref, w2_ref, b2_ref,
                    rep_ref, out_ref, k_sc):
    f32 = jnp.float32
    m = pl.program_id(0)
    n_mod = pl.num_programs(0)

    @pl.when(m == 0)
    def _():
        rep_ref[...] = jnp.zeros_like(rep_ref)
        out_ref[...] = jnp.zeros_like(out_ref)
        k_sc[...] = jnp.zeros_like(k_sc)

    # ---------------- per-modality GNN hop (hop == 1) -----------------------
    # user' = tanh(user_features @ W_umlp + b)   (weights pre-transposed)
    uf = jnp.tanh(
        jnp.dot(uf_ref[...], umw_ref[...], preferred_element_type=f32)
        + umb_ref[...])

    # x = cat(item_feats, user') realized as padded add via placement matmul
    x = item_ref[...] + jnp.dot(uplace_ref[...], uf, preferred_element_type=f32)

    # F.normalize: L2 row-normalization (rsqrt -> EUP slot)
    sq = jnp.sum(x * x, axis=-1, keepdims=True)
    x = x * jax.lax.rsqrt(jnp.maximum(sq, 1e-24))

    # GraphGAT approximation: masked dot-product attention over adjacency.
    mfeat = jnp.dot(x, cw_ref[...], preferred_element_type=f32)
    scores = (jnp.dot(mfeat, mfeat.T, preferred_element_type=f32)
              * scale_ref[...] + adjb_ref[...])          # additive -1e30 mask
    scores = scores - jnp.max(scores, axis=-1, keepdims=True)
    p = jnp.exp(scores)
    alpha = p * pl.reciprocal(jnp.sum(p, axis=-1, keepdims=True), approx=True)
    h = _leaky(jnp.dot(alpha, mfeat, preferred_element_type=f32))

    x_hat = _leaky(
        jnp.dot(x, l1w_ref[...], preferred_element_type=f32) + l1b_ref[...]
    ) + id_ref[...]
    rep_m = _leaky(
        jnp.dot(h, g1w_ref[...], preferred_element_type=f32)
        + g1b_ref[...] + x_hat)                          # (N, dim_x)

    # representation = mean over modalities (accumulated across the grid)
    rep_ref[...] += 0.25 * rep_m

    # K[m] = mean over batch of rep_m[pos_items]  ==  (mean one-hot) @ rep_m
    n_nodes = rep_m.shape[0]
    b = pidx_ref.shape[0]
    node_iota = jax.lax.broadcasted_iota(jnp.int32, (b, n_nodes), 1)
    oh_p = (node_iota == pidx_ref[...]).astype(f32)
    pw = jnp.sum(oh_p, axis=0, keepdims=True) * (1.0 / b)         # (1, N)
    km = jnp.dot(pw, rep_m, preferred_element_type=f32)           # (1, D)
    midx = jax.lax.broadcasted_iota(jnp.int32, (k_sc.shape[0], 1), 0)
    k_sc[...] += (midx == m).astype(f32) * km

    # ---------------- tail: only on the last modality step ------------------
    @pl.when(m == n_mod - 1)
    def _():
        rep = rep_ref[...]

        # Row gathers as one-hot matmuls built from int32 index vectors.
        oh_u = (node_iota == uidx_ref[...]).astype(f32)
        oh_n = (node_iota == nidx_ref[...]).astype(f32)
        user_t = jnp.dot(oh_u, rep, preferred_element_type=f32)
        pos_t = jnp.dot(oh_p, rep, preferred_element_type=f32)
        neg_t = jnp.dot(oh_n, rep, preferred_element_type=f32)

        # Multimodal attention (weights pre-transposed)
        K = k_sc[...]
        Q = jnp.dot(user_t, wq_ref[...], preferred_element_type=f32)
        Kp = jnp.dot(K, wk_ref[...], preferred_element_type=f32)
        Vp = jnp.dot(K, wv_ref[...], preferred_element_type=f32)

        d = rep.shape[1]
        att = jnp.dot(Q, Kp.T, preferred_element_type=f32) * (1.0 / math.sqrt(d))
        att = att - jnp.max(att, axis=-1, keepdims=True)
        e = jnp.exp(att)
        att = e * pl.reciprocal(jnp.sum(e, axis=-1, keepdims=True), approx=True)
        attn_user = jnp.dot(att, Vp, preferred_element_type=f32)

        # BPR scores + MLP_price (concat handled by split weight columns)
        pos_s = jnp.sum(attn_user * pos_t, axis=-1, keepdims=True)  # (b, 1)
        neg_s = jnp.sum(attn_user * neg_t, axis=-1, keepdims=True)
        hid = _leaky(
            jnp.dot(attn_user, w1u_ref[...], preferred_element_type=f32)
            + jnp.dot(pos_t, w1p_ref[...], preferred_element_type=f32)
            + b1_ref[...])
        price = (jnp.dot(hid, w2_ref[...], preferred_element_type=f32)
                 + b2_ref[...])

        # Pack [pos, neg, price] into a single (b, 3) slab (one store epilogue)
        col = jax.lax.broadcasted_iota(jnp.int32, (1, 3), 1)
        out_ref[...] = (pos_s * (col == 0).astype(f32)
                        + neg_s * (col == 1).astype(f32)
                        + price * (col == 2).astype(f32))


def nft_mars_forward(p, user_nodes, pos_items, neg_items):
    n_mod, num_nodes, DF = p["item_feats"].shape
    _, dim_x = p["id_embedding"].shape
    num_user, user_dim = p["user_features"].shape
    batch = user_nodes.shape[0]

    def mspec(*dims):
        nd = len(dims)
        return pl.BlockSpec((None,) + tuple(dims),
                            lambda m, _nd=nd: (m,) + (0,) * _nd)

    def shared(*dims):
        nd = len(dims)
        return pl.BlockSpec(tuple(dims), lambda m, _nd=nd: (0,) * _nd)

    rep, scores = pl.pallas_call(
        nft_mars_kernel,
        out_shape=(jax.ShapeDtypeStruct((num_nodes, dim_x), jnp.float32),
                   jax.ShapeDtypeStruct((batch, 3), jnp.float32)),
        grid=(n_mod,),
        in_specs=[
            mspec(num_nodes, DF),          # item feats (padded, per modality)
            mspec(user_dim, DF),           # user_MLP W  (pre-transposed)
            mspec(1, DF),                  # user_MLP b
            mspec(DF, DF),                 # conv weight (pre-transposed)
            mspec(DF, dim_x),              # linear_layer1 W (pre-transposed)
            mspec(1, dim_x),               # linear_layer1 b
            mspec(DF, dim_x),              # g_layer1 W (pre-transposed)
            mspec(1, dim_x),               # g_layer1 b
            mspec(1, 1),                   # per-modality 1/sqrt(d) scale
            shared(num_user, user_dim),    # user features (shared)
            shared(num_nodes, num_user),   # user row-placement matrix
            shared(num_nodes, num_nodes),  # additive adjacency bias
            shared(num_nodes, dim_x),      # id_embedding
            shared(batch, 1),              # user node indices
            shared(batch, 1),              # pos item indices
            shared(batch, 1),              # neg item indices
            shared(dim_x, dim_x),          # q_fc (pre-transposed)
            shared(dim_x, dim_x),          # k_fc
            shared(dim_x, dim_x),          # v_fc
            shared(dim_x, dim_x),          # price W1 (user half)
            shared(dim_x, dim_x),          # price W1 (pos half)
            shared(1, dim_x),              # price b1
            shared(dim_x, 1),              # price W2
            shared(1, 1),                  # price b2
        ],
        out_specs=(pl.BlockSpec((num_nodes, dim_x), lambda m: (0, 0)),
                   pl.BlockSpec((batch, 3), lambda m: (0, 0))),
        scratch_shapes=[pltpu.VMEM((n_mod, dim_x), jnp.float32)],
        compiler_params=pltpu.CompilerParams(
            dimension_semantics=("arbitrary",)),
    )(p["item_feats"], p["user_mlp_w"], p["user_mlp_b"], p["conv_w"],
      p["l1_w"], p["l1_b"], p["g1_w"], p["g1_b"], p["attn_scale"],
      p["user_features"], p["user_place"], p["adj_bias"], p["id_embedding"],
      user_nodes.reshape(batch, 1).astype(jnp.int32),
      pos_items.reshape(batch, 1).astype(jnp.int32),
      neg_items.reshape(batch, 1).astype(jnp.int32),
      p["q_fc"], p["k_fc"], p["v_fc"],
      p["price_w1u"], p["price_w1p"], p["price_b1"],
      p["price_w2"], p["price_b2"])

    pos_scores = scores[:, 0]
    neg_scores = scores[:, 1]
    pred_price = scores[:, 2:3]
    return pos_scores, neg_scores, rep, pred_price


# ----------------------------------------------------------------------------
# Parameter init + packing (deterministic; mirrors the module's __init__)
# ----------------------------------------------------------------------------
def xavier_normal(key, shape):         # torch layout (fan_out, fan_in)
    fan_out, fan_in = shape
    std = math.sqrt(2.0 / (fan_in + fan_out))
    return std * jax.random.normal(key, shape, dtype=jnp.float32)


def bias_init(key, fan_in, size):
    bound = 1.0 / math.sqrt(max(fan_in, 1))
    return jax.random.uniform(key, (1, size), jnp.float32, -bound, bound)


def pad_to(a, shape):
    out = jnp.zeros(shape, a.dtype)
    return out.at[:a.shape[0], :a.shape[1]].set(a)


def build_adjacency_bias(edge_index, num_nodes):
    # edge_index: (E, 2) -> undirected dense adjacency with self loops,
    # converted to an additive softmax bias (0 for edges, -1e30 otherwise).
    src, dst = edge_index[:, 0], edge_index[:, 1]
    adj = jnp.zeros((num_nodes, num_nodes), jnp.float32)
    adj = adj.at[src, dst].set(1.0)
    adj = adj.at[dst, src].set(1.0)
    adj = adj + jnp.eye(num_nodes, dtype=jnp.float32)
    return jnp.where(adj > 0.0, 0.0, -1e30).astype(jnp.float32)


def init_packed_params(key, feat_dims, user_dim, dim_x, num_user, num_item,
                       DF, modality_feats, user_features, edge_index):
    num_nodes = num_user + num_item
    umw, umb, cw, l1w, l1b, g1w, g1b, scales, item_pad = \
        [], [], [], [], [], [], [], [], []
    for mod in MODALITIES:
        df = feat_dims[mod]
        key, *ks = jax.random.split(key, 9)
        umw.append(pad_to(xavier_normal(ks[0], (df, user_dim)).T, (user_dim, DF)))
        umb.append(pad_to(bias_init(ks[1], user_dim, df), (1, DF)))
        cw.append(pad_to(xavier_normal(ks[2], (df, df)).T, (DF, DF)))
        l1w.append(pad_to(xavier_normal(ks[3], (dim_x, df)).T, (DF, dim_x)))
        l1b.append(bias_init(ks[4], df, dim_x))
        g1w.append(pad_to(xavier_normal(ks[5], (dim_x, df)).T, (DF, dim_x)))
        g1b.append(bias_init(ks[6], df, dim_x))
        scales.append(1.0 / math.sqrt(df))
        item_pad.append(pad_to(modality_feats[mod], (num_nodes, DF)))

    key, k_id, kq, kk, kv, kp1, kp1b, kp2, kp2b = jax.random.split(key, 9)
    dim_in, dim_hid = 2 * dim_x, dim_x
    w1 = xavier_normal(kp1, (dim_hid, dim_in))

    user_place = jnp.zeros((num_nodes, num_user), jnp.float32)
    user_place = user_place.at[num_item + jnp.arange(num_user),
                               jnp.arange(num_user)].set(1.0)

    return {
        "item_feats": jnp.stack(item_pad, 0),        # (4, N, DF)
        "user_features": user_features,              # (num_user, user_dim)
        "user_place": user_place,                    # (N, num_user)
        "user_mlp_w": jnp.stack(umw, 0),             # (4, user_dim, DF)
        "user_mlp_b": jnp.stack(umb, 0),             # (4, 1, DF)
        "conv_w": jnp.stack(cw, 0),                  # (4, DF, DF)
        "l1_w": jnp.stack(l1w, 0),                   # (4, DF, dim_x)
        "l1_b": jnp.stack(l1b, 0),                   # (4, 1, dim_x)
        "g1_w": jnp.stack(g1w, 0),                   # (4, DF, dim_x)
        "g1_b": jnp.stack(g1b, 0),                   # (4, 1, dim_x)
        "adj_bias": build_adjacency_bias(edge_index, num_nodes),
        "id_embedding": xavier_normal(k_id, (num_nodes, dim_x)),
        "attn_scale": jnp.asarray(scales, jnp.float32).reshape(4, 1, 1),
        "q_fc": xavier_normal(kq, (dim_x, dim_x)).T,
        "k_fc": xavier_normal(kk, (dim_x, dim_x)).T,
        "v_fc": xavier_normal(kv, (dim_x, dim_x)).T,
        "price_w1u": w1[:, :dim_x].T,                # (dim_x, dim_hid)
        "price_w1p": w1[:, dim_x:].T,                # (dim_x, dim_hid)
        "price_b1": bias_init(kp1b, dim_in, dim_hid),
        "price_w2": xavier_normal(kp2, (1, dim_hid)).T,   # (dim_hid, 1)
        "price_b2": bias_init(kp2b, dim_hid, 1),
    }


# ----------------------------------------------------------------------------
# Driver
# ----------------------------------------------------------------------------
if __name__ == "__main__":
    key = jax.random.PRNGKey(0)

    num_user, num_item = 6, 10
    num_nodes = num_user + num_item
    dim_x, hop = 16, 1
    user_dim = 14
    batch = 4
    feat_dims = {"v": 12, "t": 10, "p": 8, "tr": 6}
    DF = 16  # common padded feature width

    key, kv, kt, kp, ktr, ku, ke, kun, kpi, kni = jax.random.split(key, 10)
    modality_feats = {
        "v": jax.random.normal(kv, (num_item, feat_dims["v"]), jnp.float32),
        "t": jax.random.normal(kt, (num_item, feat_dims["t"]), jnp.float32),
        "p": jax.random.normal(kp, (num_item, feat_dims["p"]), jnp.float32),
        "tr": jax.random.normal(ktr, (num_item, feat_dims["tr"]), jnp.float32),
    }
    user_features = jax.random.normal(ku, (num_user, user_dim), jnp.float32)

    # user-item interaction edges; node ids: items [0, num_item), users after
    n_edges = 24
    e_users = jax.random.randint(ke, (n_edges,), num_item, num_nodes)
    e_items = jax.random.randint(jax.random.fold_in(ke, 1), (n_edges,),
                                 0, num_item)
    edge_index = jnp.stack([e_users, e_items], axis=1)

    user_nodes = jax.random.randint(kun, (batch,), num_item, num_nodes)
    pos_items = jax.random.randint(kpi, (batch,), 0, num_item)
    neg_items = jax.random.randint(kni, (batch,), 0, num_item)

    key, kparams = jax.random.split(key)
    packed = init_packed_params(kparams, feat_dims, user_dim, dim_x,
                                num_user, num_item, DF,
                                modality_feats, user_features, edge_index)

    fwd = jax.jit(functools.partial(nft_mars_forward, packed))
    pos_scores, neg_scores, representation, pred_price = fwd(
        user_nodes, pos_items, neg_items)
    jax.block_until_ready((pos_scores, neg_scores, representation, pred_price))

    assert pos_scores.shape == (batch,)
    assert neg_scores.shape == (batch,)
    assert representation.shape == (num_nodes, dim_x * hop)
    assert pred_price.shape == (batch, 1)
    print("KERNEL_OK")
</pallas_src>

<mosaic_0001>
module attributes {stable_mosaic.version = 11 : i64} {
  func.func @nft_mars_kernel(%arg0: i32, %arg1: memref<1x16x16xf32, #tpu.memory_space<vmem>>, %arg2: memref<1x14x16xf32, #tpu.memory_space<vmem>>, %arg3: memref<1x1x16xf32, #tpu.memory_space<vmem>>, %arg4: memref<1x16x16xf32, #tpu.memory_space<vmem>>, %arg5: memref<1x16x16xf32, #tpu.memory_space<vmem>>, %arg6: memref<1x1x16xf32, #tpu.memory_space<vmem>>, %arg7: memref<1x16x16xf32, #tpu.memory_space<vmem>>, %arg8: memref<1x1x16xf32, #tpu.memory_space<vmem>>, %arg9: memref<1x1x1xf32, #tpu.memory_space<vmem>>, %arg10: memref<6x14xf32, #tpu.memory_space<vmem>>, %arg11: memref<16x6xf32, #tpu.memory_space<vmem>>, %arg12: memref<16x16xf32, #tpu.memory_space<vmem>>, %arg13: memref<16x16xf32, #tpu.memory_space<vmem>>, %arg14: memref<4x1xi32, #tpu.memory_space<vmem>>, %arg15: memref<4x1xi32, #tpu.memory_space<vmem>>, %arg16: memref<4x1xi32, #tpu.memory_space<vmem>>, %arg17: memref<16x16xf32, #tpu.memory_space<vmem>>, %arg18: memref<16x16xf32, #tpu.memory_space<vmem>>, %arg19: memref<16x16xf32, #tpu.memory_space<vmem>>, %arg20: memref<16x16xf32, #tpu.memory_space<vmem>>, %arg21: memref<16x16xf32, #tpu.memory_space<vmem>>, %arg22: memref<1x16xf32, #tpu.memory_space<vmem>>, %arg23: memref<16x1xf32, #tpu.memory_space<vmem>>, %arg24: memref<1x1xf32, #tpu.memory_space<vmem>>, %arg25: memref<16x16xf32, #tpu.memory_space<vmem>>, %arg26: memref<4x3xf32, #tpu.memory_space<vmem>>, %arg27: memref<4x16xf32, #tpu.memory_space<vmem>>) attributes {dimension_semantics = [#tpu.dimension_semantics<arbitrary>], iteration_bounds = array<i64: 4>, scalar_prefetch = 0 : i64, scratch_operands = 1 : i64, tpu.core_type = #tpu.core_type<tc>, window_params = [{transform_indices = @transform_0, window_bounds = array<i64: 1, 16, 16>}, {transform_indices = @transform_1, window_bounds = array<i64: 1, 14, 16>}, {transform_indices = @transform_2, window_bounds = array<i64: 1, 1, 16>}, {transform_indices = @transform_3, window_bounds = array<i64: 1, 16, 16>}, {transform_indices = @transform_4, window_bounds = array<i64: 1, 16, 16>}, {transform_indices = @transform_5, window_bounds = array<i64: 1, 1, 16>}, {transform_indices = @transform_6, window_bounds = array<i64: 1, 16, 16>}, {transform_indices = @transform_7, window_bounds = array<i64: 1, 1, 16>}, {transform_indices = @transform_8, window_bounds = array<i64: 1, 1, 1>}, {pipeline_mode = #tpu.pipeline_mode<synchronous>, transform_indices = @transform_9, window_bounds = array<i64: 6, 14>}, {pipeline_mode = #tpu.pipeline_mode<synchronous>, transform_indices = @transform_10, window_bounds = array<i64: 16, 6>}, {pipeline_mode = #tpu.pipeline_mode<synchronous>, transform_indices = @transform_11, window_bounds = array<i64: 16, 16>}, {pipeline_mode = #tpu.pipeline_mode<synchronous>, transform_indices = @transform_12, window_bounds = array<i64: 16, 16>}, {pipeline_mode = #tpu.pipeline_mode<synchronous>, transform_indices = @transform_13, window_bounds = array<i64: 4, 1>}, {pipeline_mode = #tpu.pipeline_mode<synchronous>, transform_indices = @transform_14, window_bounds = array<i64: 4, 1>}, {pipeline_mode = #tpu.pipeline_mode<synchronous>, transform_indices = @transform_15, window_bounds = array<i64: 4, 1>}, {pipeline_mode = #tpu.pipeline_mode<synchronous>, transform_indices = @transform_16, window_bounds = array<i64: 16, 16>}, {pipeline_mode = #tpu.pipeline_mode<synchronous>, transform_indices = @transform_17, window_bounds = array<i64: 16, 16>}, {pipeline_mode = #tpu.pipeline_mode<synchronous>, transform_indices = @transform_18, window_bounds = array<i64: 16, 16>}, {pipeline_mode = #tpu.pipeline_mode<synchronous>, transform_indices = @transform_19, window_bounds = array<i64: 16, 16>}, {pipeline_mode = #tpu.pipeline_mode<synchronous>, transform_indices = @transform_20, window_bounds = array<i64: 16, 16>}, {pipeline_mode = #tpu.pipeline_mode<synchronous>, transform_indices = @transform_21, window_bounds = array<i64: 1, 16>}, {pipeline_mode = #tpu.pipeline_mode<synchronous>, transform_indices = @transform_22, window_bounds = array<i64: 16, 1>}, {pipeline_mode = #tpu.pipeline_mode<synchronous>, transform_indices = @transform_23, window_bounds = array<i64: 1, 1>}, {pipeline_mode = #tpu.pipeline_mode<synchronous>, transform_indices = @transform_24, window_bounds = array<i64: 16, 16>}, {pipeline_mode = #tpu.pipeline_mode<synchronous>, transform_indices = @transform_25, window_bounds = array<i64: 4, 3>}]} {
    %c0_i32 = arith.constant 0 : i32
    %0 = arith.cmpi eq, %arg0, %c0_i32 : i32
    %1 = arith.extui %0 : i1 to i32
    %c0_i32_0 = arith.constant 0 : i32
    %2 = arith.cmpi ne, %1, %c0_i32_0 : i32
    scf.if %2 {
      %cst_66 = arith.constant 0.000000e+00 : f32
      %109 = vector.broadcast %cst_66 : f32 to vector<16x16xf32>
      %c0_67 = arith.constant 0 : index
      %c0_68 = arith.constant 0 : index
      %110 = vector.load %arg25[%c0_67, %c0_68] : memref<16x16xf32, #tpu.memory_space<vmem>>, vector<16x16xf32>
      tpu.vector_store %arg25[%c0_67, %c0_68], %109 {strides = array<i32>} : memref<16x16xf32, #tpu.memory_space<vmem>>, vector<16x16xf32>,
      %cst_69 = arith.constant 0.000000e+00 : f32
      %111 = vector.broadcast %cst_69 : f32 to vector<4x3xf32>
      %c0_70 = arith.constant 0 : index
      %c0_71 = arith.constant 0 : index
      %112 = vector.load %arg26[%c0_70, %c0_71] : memref<4x3xf32, #tpu.memory_space<vmem>>, vector<4x3xf32>
      tpu.vector_store %arg26[%c0_70, %c0_71], %111 {strides = array<i32>} : memref<4x3xf32, #tpu.memory_space<vmem>>, vector<4x3xf32>,
      %cst_72 = arith.constant 0.000000e+00 : f32
      %113 = vector.broadcast %cst_72 : f32 to vector<4x16xf32>
      %c0_73 = arith.constant 0 : index
      %c0_74 = arith.constant 0 : index
      %114 = vector.load %arg27[%c0_73, %c0_74] : memref<4x16xf32, #tpu.memory_space<vmem>>, vector<4x16xf32>
      tpu.vector_store %arg27[%c0_73, %c0_74], %113 {strides = array<i32>} : memref<4x16xf32, #tpu.memory_space<vmem>>, vector<4x16xf32>,
    } else {
    }
    %c0 = arith.constant 0 : index
    %c0_1 = arith.constant 0 : index
    %3 = vector.load %arg10[%c0, %c0_1] : memref<6x14xf32, #tpu.memory_space<vmem>>, vector<6x14xf32>
    %c0_2 = arith.constant 0 : index
    %c0_3 = arith.constant 0 : index
    %c0_4 = arith.constant 0 : index
    %4 = vector.load %arg2[%c0_2, %c0_3, %c0_4] : memref<1x14x16xf32, #tpu.memory_space<vmem>>, vector<1x14x16xf32>
    %5 = vector.shape_cast %4 : vector<1x14x16xf32> to vector<14x16xf32>
    %cst = arith.constant dense<0.000000e+00> : vector<6x16xf32>
    %6 = tpu.matmul %3, %5, %cst {dimension_numbers = #tpu.dot_dimension_numbers<[1], [0], [0], [1], [0, 0, 1, 1], [], []>} : vector<6x14xf32>, vector<14x16xf32>, vector<6x16xf32> -> vector<6x16xf32>
    %c0_5 = arith.constant 0 : index
    %c0_6 = arith.constant 0 : index
    %c0_7 = arith.constant 0 : index
    %7 = vector.load %arg3[%c0_5, %c0_6, %c0_7] : memref<1x1x16xf32, #tpu.memory_space<vmem>>, vector<1x1x16xf32>
    %8 = vector.shape_cast %7 : vector<1x1x16xf32> to vector<1x16xf32>
    %9 = vector.broadcast %8 : vector<1x16xf32> to vector<6x16xf32>
    %10 = arith.addf %6, %9 : vector<6x16xf32>
    %11 = math.tanh %10 : vector<6x16xf32>
    %c0_8 = arith.constant 0 : index
    %c0_9 = arith.constant 0 : index
    %c0_10 = arith.constant 0 : index
    %12 = vector.load %arg1[%c0_8, %c0_9, %c0_10] : memref<1x16x16xf32, #tpu.memory_space<vmem>>, vector<1x16x16xf32>
    %13 = vector.shape_cast %12 : vector<1x16x16xf32> to vector<16x16xf32>
    %c0_11 = arith.constant 0 : index
    %c0_12 = arith.constant 0 : index
    %14 = vector.load %arg11[%c0_11, %c0_12] : memref<16x6xf32, #tpu.memory_space<vmem>>, vector<16x6xf32>
    %cst_13 = arith.constant dense<0.000000e+00> : vector<16x16xf32>
    %15 = tpu.matmul %14, %11, %cst_13 {dimension_numbers = #tpu.dot_dimension_numbers<[1], [0], [0], [1], [0, 0, 1, 1], [], []>} : vector<16x6xf32>, vector<6x16xf32>, vector<16x16xf32> -> vector<16x16xf32>
    %16 = arith.addf %13, %15 : vector<16x16xf32>
    %17 = arith.mulf %16, %16 : vector<16x16xf32>
    %cst_14 = arith.constant dense<0.000000e+00> : vector<16xf32>
    %18 = vector.multi_reduction <add>, %17, %cst_14 [1] : vector<16x16xf32> to vector<16xf32>
    %19 = vector.shape_cast %18 : vector<16xf32> to vector<16x1xf32>
    %cst_15 = arith.constant 1.000000e-24 : f32
    %20 = vector.broadcast %cst_15 : f32 to vector<16x1xf32>
    %21 = arith.maximumf %19, %20 : vector<16x1xf32>
    %22 = math.rsqrt %21 : vector<16x1xf32>
    %23 = vector.broadcast %22 : vector<16x1xf32> to vector<16x16xf32>
    %24 = arith.mulf %16, %23 : vector<16x16xf32>
    %c0_16 = arith.constant 0 : index
    %c0_17 = arith.constant 0 : index
    %c0_18 = arith.constant 0 : index
    %25 = vector.load %arg4[%c0_16, %c0_17, %c0_18] : memref<1x16x16xf32, #tpu.memory_space<vmem>>, vector<1x16x16xf32>
    %26 = vector.shape_cast %25 : vector<1x16x16xf32> to vector<16x16xf32>
    %cst_19 = arith.constant dense<0.000000e+00> : vector<16x16xf32>
    %27 = tpu.matmul %24, %26, %cst_19 {dimension_numbers = #tpu.dot_dimension_numbers<[1], [0], [0], [1], [0, 0, 1, 1], [], []>} : vector<16x16xf32>, vector<16x16xf32>, vector<16x16xf32> -> vector<16x16xf32>
    %28 = tpu.transpose %27, [1, 0] : vector<16x16xf32> -> vector<16x16xf32>
    %cst_20 = arith.constant dense<0.000000e+00> : vector<16x16xf32>
    %29 = tpu.matmul %27, %28, %cst_20 {dimension_numbers = #tpu.dot_dimension_numbers<[1], [0], [0], [1], [0, 0, 1, 1], [], []>} : vector<16x16xf32>, vector<16x16xf32>, vector<16x16xf32> -> vector<16x16xf32>
    %c0_21 = arith.constant 0 : index
    %c0_22 = arith.constant 0 : index
    %c0_23 = arith.constant 0 : index
    %30 = vector.load %arg9[%c0_21, %c0_22, %c0_23] : memref<1x1x1xf32, #tpu.memory_space<vmem>>, vector<1x1x1xf32>
    %31 = vector.shape_cast %30 : vector<1x1x1xf32> to vector<1x1xf32>
    %32 = vector.broadcast %31 : vector<1x1xf32> to vector<16x16xf32>
    %33 = arith.mulf %29, %32 : vector<16x16xf32>
    %c0_24 = arith.constant 0 : index
    %c0_25 = arith.constant 0 : index
    %34 = vector.load %arg12[%c0_24, %c0_25] : memref<16x16xf32, #tpu.memory_space<vmem>>, vector<16x16xf32>
    %35 = arith.addf %33, %34 : vector<16x16xf32>
    %cst_26 = arith.constant dense<0xFF800000> : vector<16xf32>
    %36 = vector.multi_reduction <maximumf>, %35, %cst_26 [1] : vector<16x16xf32> to vector<16xf32>
    %37 = vector.shape_cast %36 : vector<16xf32> to vector<16x1xf32>
    %38 = vector.broadcast %37 : vector<16x1xf32> to vector<16x16xf32>
    %39 = arith.subf %35, %38 : vector<16x16xf32>
    %40 = math.exp %39 : vector<16x16xf32>
    %cst_27 = arith.constant dense<0.000000e+00> : vector<16xf32>
    %41 = vector.multi_reduction <add>, %40, %cst_27 [1] : vector<16x16xf32> to vector<16xf32>
    %42 = vector.shape_cast %41 : vector<16xf32> to vector<16x1xf32>
    %43 = tpu.reciprocal %42 {approx = true} : vector<16x1xf32> -> vector<16x1xf32>
    %44 = vector.broadcast %43 : vector<16x1xf32> to vector<16x16xf32>
    %45 = arith.mulf %40, %44 : vector<16x16xf32>
    %cst_28 = arith.constant dense<0.000000e+00> : vector<16x16xf32>
    %46 = tpu.matmul %45, %27, %cst_28 {dimension_numbers = #tpu.dot_dimension_numbers<[1], [0], [0], [1], [0, 0, 1, 1], [], []>} : vector<16x16xf32>, vector<16x16xf32>, vector<16x16xf32> -> vector<16x16xf32>
    %cst_29 = arith.constant 0.000000e+00 : f32
    %47 = vector.broadcast %cst_29 : f32 to vector<16x16xf32>
    %48 = arith.cmpf oge, %46, %47 : vector<16x16xf32>
    %cst_30 = arith.constant 0.00999999977 : f32
    %49 = vector.broadcast %cst_30 : f32 to vector<16x16xf32>
    %50 = arith.mulf %49, %46 : vector<16x16xf32>
    %51 = arith.select %48, %46, %50 : vector<16x16xi1>, vector<16x16xf32>
    %c0_31 = arith.constant 0 : index
    %c0_32 = arith.constant 0 : index
    %c0_33 = arith.constant 0 : index
    %52 = vector.load %arg5[%c0_31, %c0_32, %c0_33] : memref<1x16x16xf32, #tpu.memory_space<vmem>>, vector<1x16x16xf32>
    %53 = vector.shape_cast %52 : vector<1x16x16xf32> to vector<16x16xf32>
    %cst_34 = arith.constant dense<0.000000e+00> : vector<16x16xf32>
    %54 = tpu.matmul %24, %53, %cst_34 {dimension_numbers = #tpu.dot_dimension_numbers<[1], [0], [0], [1], [0, 0, 1, 1], [], []>} : vector<16x16xf32>, vector<16x16xf32>, vector<16x16xf32> -> vector<16x16xf32>
    %c0_35 = arith.constant 0 : index
    %c0_36 = arith.constant 0 : index
    %c0_37 = arith.constant 0 : index
    %55 = vector.load %arg6[%c0_35, %c0_36, %c0_37] : memref<1x1x16xf32, #tpu.memory_space<vmem>>, vector<1x1x16xf32>
    %56 = vector.shape_cast %55 : vector<1x1x16xf32> to vector<1x16xf32>
    %57 = vector.broadcast %56 : vector<1x16xf32> to vector<16x16xf32>
    %58 = arith.addf %54, %57 : vector<16x16xf32>
    %cst_38 = arith.constant 0.000000e+00 : f32
    %59 = vector.broadcast %cst_38 : f32 to vector<16x16xf32>
    %60 = arith.cmpf oge, %58, %59 : vector<16x16xf32>
    %cst_39 = arith.constant 0.00999999977 : f32
    %61 = vector.broadcast %cst_39 : f32 to vector<16x16xf32>
    %62 = arith.mulf %61, %58 : vector<16x16xf32>
    %63 = arith.select %60, %58, %62 : vector<16x16xi1>, vector<16x16xf32>
    %c0_40 = arith.constant 0 : index
    %c0_41 = arith.constant 0 : index
    %64 = vector.load %arg13[%c0_40, %c0_41] : memref<16x16xf32, #tpu.memory_space<vmem>>, vector<16x16xf32>
    %65 = arith.addf %63, %64 : vector<16x16xf32>
    %c0_42 = arith.constant 0 : index
    %c0_43 = arith.constant 0 : index
    %c0_44 = arith.constant 0 : index
    %66 = vector.load %arg7[%c0_42, %c0_43, %c0_44] : memref<1x16x16xf32, #tpu.memory_space<vmem>>, vector<1x16x16xf32>
    %67 = vector.shape_cast %66 : vector<1x16x16xf32> to vector<16x16xf32>
    %cst_45 = arith.constant dense<0.000000e+00> : vector<16x16xf32>
    %68 = tpu.matmul %51, %67, %cst_45 {dimension_numbers = #tpu.dot_dimension_numbers<[1], [0], [0], [1], [0, 0, 1, 1], [], []>} : vector<16x16xf32>, vector<16x16xf32>, vector<16x16xf32> -> vector<16x16xf32>
    %c0_46 = arith.constant 0 : index
    %c0_47 = arith.constant 0 : index
    %c0_48 = arith.constant 0 : index
    %69 = vector.load %arg8[%c0_46, %c0_47, %c0_48] : memref<1x1x16xf32, #tpu.memory_space<vmem>>, vector<1x1x16xf32>
    %70 = vector.shape_cast %69 : vector<1x1x16xf32> to vector<1x16xf32>
    %71 = vector.broadcast %70 : vector<1x16xf32> to vector<16x16xf32>
    %72 = arith.addf %68, %71 : vector<16x16xf32>
    %73 = arith.addf %72, %65 : vector<16x16xf32>
    %cst_49 = arith.constant 0.000000e+00 : f32
    %74 = vector.broadcast %cst_49 : f32 to vector<16x16xf32>
    %75 = arith.cmpf oge, %73, %74 : vector<16x16xf32>
    %cst_50 = arith.constant 0.00999999977 : f32
    %76 = vector.broadcast %cst_50 : f32 to vector<16x16xf32>
    %77 = arith.mulf %76, %73 : vector<16x16xf32>
    %78 = arith.select %75, %73, %77 : vector<16x16xi1>, vector<16x16xf32>
    %c0_51 = arith.constant 0 : index
    %c0_52 = arith.constant 0 : index
    %79 = vector.load %arg25[%c0_51, %c0_52] : memref<16x16xf32, #tpu.memory_space<vmem>>, vector<16x16xf32>
    %cst_53 = arith.constant 2.500000e-01 : f32
    %80 = vector.broadcast %cst_53 : f32 to vector<16x16xf32>
    %81 = arith.mulf %80, %78 : vector<16x16xf32>
    %82 = arith.addf %79, %81 : vector<16x16xf32>
    %c0_54 = arith.constant 0 : index
    %c0_55 = arith.constant 0 : index
    %83 = vector.load %arg25[%c0_54, %c0_55] : memref<16x16xf32, #tpu.memory_space<vmem>>, vector<16x16xf32>
    tpu.vector_store %arg25[%c0_54, %c0_55], %82 {strides = array<i32>} : memref<16x16xf32, #tpu.memory_space<vmem>>, vector<16x16xf32>,
    %84 = tpu.iota {dimensions = array<i32: 1>} : vector<4x16xi32>
    %c0_56 = arith.constant 0 : index
    %c0_57 = arith.constant 0 : index
    %85 = vector.load %arg15[%c0_56, %c0_57] : memref<4x1xi32, #tpu.memory_space<vmem>>, vector<4x1xi32>
    %86 = vector.broadcast %85 : vector<4x1xi32> to vector<4x16xi32>
    %87 = arith.cmpi eq, %84, %86 : vector<4x16xi32>
    %88 = arith.extui %87 : vector<4x16xi1> to vector<4x16xi32>
    %89 = arith.sitofp %88 : vector<4x16xi32> to vector<4x16xf32>
    %cst_58 = arith.constant dense<0.000000e+00> : vector<16xf32>
    %90 = vector.multi_reduction <add>, %89, %cst_58 [0] : vector<4x16xf32> to vector<16xf32>
    %91 = vector.shape_cast %90 : vector<16xf32> to vector<1x16xf32>
    %cst_59 = arith.constant 2.500000e-01 : f32
    %92 = vector.broadcast %cst_59 : f32 to vector<1x16xf32>
    %93 = arith.mulf %91, %92 : vector<1x16xf32>
    %cst_60 = arith.constant dense<0.000000e+00> : vector<1x16xf32>
    %94 = tpu.matmul %93, %78, %cst_60 {dimension_numbers = #tpu.dot_dimension_numbers<[1], [0], [0], [1], [0, 0, 1, 1], [], []>} : vector<1x16xf32>, vector<16x16xf32>, vector<1x16xf32> -> vector<1x16xf32>
    %95 = tpu.iota {dimensions = array<i32: 0>} : vector<4x1xi32>
    %c0_61 = arith.constant 0 : index
    %c0_62 = arith.constant 0 : index
    %96 = vector.load %arg27[%c0_61, %c0_62] : memref<4x16xf32, #tpu.memory_space<vmem>>, vector<4x16xf32>
    %97 = vector.broadcast %arg0 : i32 to vector<4x1xi32>
    %98 = arith.cmpi eq, %95, %97 : vector<4x1xi32>
    %99 = arith.extui %98 : vector<4x1xi1> to vector<4x1xi32>
    %100 = arith.sitofp %99 : vector<4x1xi32> to vector<4x1xf32>
    %101 = vector.broadcast %100 : vector<4x1xf32> to vector<4x16xf32>
    %102 = vector.broadcast %94 : vector<1x16xf32> to vector<4x16xf32>
    %103 = arith.mulf %101, %102 : vector<4x16xf32>
    %104 = arith.addf %96, %103 : vector<4x16xf32>
    %c0_63 = arith.constant 0 : index
    %c0_64 = arith.constant 0 : index
    %105 = vector.load %arg27[%c0_63, %c0_64] : memref<4x16xf32, #tpu.memory_space<vmem>>, vector<4x16xf32>
    tpu.vector_store %arg27[%c0_63, %c0_64], %104 {strides = array<i32>} : memref<4x16xf32, #tpu.memory_space<vmem>>, vector<4x16xf32>,
    %c3_i32 = arith.constant 3 : i32
    %106 = arith.cmpi eq, %arg0, %c3_i32 : i32
    %107 = arith.extui %106 : i1 to i32
    %c0_i32_65 = arith.constant 0 : i32
    %108 = arith.cmpi ne, %107, %c0_i32_65 : i32
    scf.if %108 {
      %c0_66 = arith.constant 0 : index
      %c0_67 = arith.constant 0 : index
      %109 = vector.load %arg25[%c0_66, %c0_67] : memref<16x16xf32, #tpu.memory_space<vmem>>, vector<16x16xf32>
      %c0_68 = arith.constant 0 : index
      %c0_69 = arith.constant 0 : index
      %110 = vector.load %arg14[%c0_68, %c0_69] : memref<4x1xi32, #tpu.memory_space<vmem>>, vector<4x1xi32>
      %111 = vector.broadcast %110 : vector<4x1xi32> to vector<4x16xi32>
      %112 = arith.cmpi eq, %84, %111 : vector<4x16xi32>
      %113 = arith.extui %112 : vector<4x16xi1> to vector<4x16xi32>
      %114 = arith.sitofp %113 : vector<4x16xi32> to vector<4x16xf32>
      %c0_70 = arith.constant 0 : index
      %c0_71 = arith.constant 0 : index
      %115 = vector.load %arg16[%c0_70, %c0_71] : memref<4x1xi32, #tpu.memory_space<vmem>>, vector<4x1xi32>
      %116 = vector.broadcast %115 : vector<4x1xi32> to vector<4x16xi32>
      %117 = arith.cmpi eq, %84, %116 : vector<4x16xi32>
      %118 = arith.extui %117 : vector<4x16xi1> to vector<4x16xi32>
      %119 = arith.sitofp %118 : vector<4x16xi32> to vector<4x16xf32>
      %cst_72 = arith.constant dense<0.000000e+00> : vector<4x16xf32>
      %120 = tpu.matmul %114, %109, %cst_72 {dimension_numbers = #tpu.dot_dimension_numbers<[1], [0], [0], [1], [0, 0, 1, 1], [], []>} : vector<4x16xf32>, vector<16x16xf32>, vector<4x16xf32> -> vector<4x16xf32>
      %cst_73 = arith.constant dense<0.000000e+00> : vector<4x16xf32>
      %121 = tpu.matmul %89, %109, %cst_73 {dimension_numbers = #tpu.dot_dimension_numbers<[1], [0], [0], [1], [0, 0, 1, 1], [], []>} : vector<4x16xf32>, vector<16x16xf32>, vector<4x16xf32> -> vector<4x16xf32>
      %cst_74 = arith.constant dense<0.000000e+00> : vector<4x16xf32>
      %122 = tpu.matmul %119, %109, %cst_74 {dimension_numbers = #tpu.dot_dimension_numbers<[1], [0], [0], [1], [0, 0, 1, 1], [], []>} : vector<4x16xf32>, vector<16x16xf32>, vector<4x16xf32> -> vector<4x16xf32>
      %c0_75 = arith.constant 0 : index
      %c0_76 = arith.constant 0 : index
      %123 = vector.load %arg27[%c0_75, %c0_76] : memref<4x16xf32, #tpu.memory_space<vmem>>, vector<4x16xf32>
      %c0_77 = arith.constant 0 : index
      %c0_78 = arith.constant 0 : index
      %124 = vector.load %arg17[%c0_77, %c0_78] : memref<16x16xf32, #tpu.memory_space<vmem>>, vector<16x16xf32>
      %cst_79 = arith.constant dense<0.000000e+00> : vector<4x16xf32>
      %125 = tpu.matmul %120, %124, %cst_79 {dimension_numbers = #tpu.dot_dimension_numbers<[1], [0], [0], [1], [0, 0, 1, 1], [], []>} : vector<4x16xf32>, vector<16x16xf32>, vector<4x16xf32> -> vector<4x16xf32>
      %c0_80 = arith.constant 0 : index
      %c0_81 = arith.constant 0 : index
      %126 = vector.load %arg18[%c0_80, %c0_81] : memref<16x16xf32, #tpu.memory_space<vmem>>, vector<16x16xf32>
      %cst_82 = arith.constant dense<0.000000e+00> : vector<4x16xf32>
      %127 = tpu.matmul %123, %126, %cst_82 {dimension_numbers = #tpu.dot_dimension_numbers<[1], [0], [0], [1], [0, 0, 1, 1], [], []>} : vector<4x16xf32>, vector<16x16xf32>, vector<4x16xf32> -> vector<4x16xf32>
      %c0_83 = arith.constant 0 : index
      %c0_84 = arith.constant 0 : index
      %128 = vector.load %arg19[%c0_83, %c0_84] : memref<16x16xf32, #tpu.memory_space<vmem>>, vector<16x16xf32>
      %cst_85 = arith.constant dense<0.000000e+00> : vector<4x16xf32>
      %129 = tpu.matmul %123, %128, %cst_85 {dimension_numbers = #tpu.dot_dimension_numbers<[1], [0], [0], [1], [0, 0, 1, 1], [], []>} : vector<4x16xf32>, vector<16x16xf32>, vector<4x16xf32> -> vector<4x16xf32>
      %130 = tpu.transpose %127, [1, 0] : vector<4x16xf32> -> vector<16x4xf32>
      %cst_86 = arith.constant dense<0.000000e+00> : vector<4x4xf32>
      %131 = tpu.matmul %125, %130, %cst_86 {dimension_numbers = #tpu.dot_dimension_numbers<[1], [0], [0], [1], [0, 0, 1, 1], [], []>} : vector<4x16xf32>, vector<16x4xf32>, vector<4x4xf32> -> vector<4x4xf32>
      %cst_87 = arith.constant 2.500000e-01 : f32
      %132 = vector.broadcast %cst_87 : f32 to vector<4x4xf32>
      %133 = arith.mulf %131, %132 : vector<4x4xf32>
      %cst_88 = arith.constant dense<0xFF800000> : vector<4xf32>
      %134 = vector.multi_reduction <maximumf>, %133, %cst_88 [1] : vector<4x4xf32> to vector<4xf32>
      %135 = vector.shape_cast %134 : vector<4xf32> to vector<4x1xf32>
      %136 = vector.broadcast %135 : vector<4x1xf32> to vector<4x4xf32>
      %137 = arith.subf %133, %136 : vector<4x4xf32>
      %138 = math.exp %137 : vector<4x4xf32>
      %cst_89 = arith.constant dense<0.000000e+00> : vector<4xf32>
      %139 = vector.multi_reduction <add>, %138, %cst_89 [1] : vector<4x4xf32> to vector<4xf32>
      %140 = vector.shape_cast %139 : vector<4xf32> to vector<4x1xf32>
      %141 = tpu.reciprocal %140 {approx = true} : vector<4x1xf32> -> vector<4x1xf32>
      %142 = vector.broadcast %141 : vector<4x1xf32> to vector<4x4xf32>
      %143 = arith.mulf %138, %142 : vector<4x4xf32>
      %cst_90 = arith.constant dense<0.000000e+00> : vector<4x16xf32>
      %144 = tpu.matmul %143, %129, %cst_90 {dimension_numbers = #tpu.dot_dimension_numbers<[1], [0], [0], [1], [0, 0, 1, 1], [], []>} : vector<4x4xf32>, vector<4x16xf32>, vector<4x16xf32> -> vector<4x16xf32>
      %145 = arith.mulf %144, %121 : vector<4x16xf32>
      %cst_91 = arith.constant dense<0.000000e+00> : vector<4xf32>
      %146 = vector.multi_reduction <add>, %145, %cst_91 [1] : vector<4x16xf32> to vector<4xf32>
      %147 = vector.shape_cast %146 : vector<4xf32> to vector<4x1xf32>
      %148 = arith.mulf %144, %122 : vector<4x16xf32>
      %cst_92 = arith.constant dense<0.000000e+00> : vector<4xf32>
      %149 = vector.multi_reduction <add>, %148, %cst_92 [1] : vector<4x16xf32> to vector<4xf32>
      %150 = vector.shape_cast %149 : vector<4xf32> to vector<4x1xf32>
      %c0_93 = arith.constant 0 : index
      %c0_94 = arith.constant 0 : index
      %151 = vector.load %arg20[%c0_93, %c0_94] : memref<16x16xf32, #tpu.memory_space<vmem>>, vector<16x16xf32>
      %cst_95 = arith.constant dense<0.000000e+00> : vector<4x16xf32>
      %152 = tpu.matmul %144, %151, %cst_95 {dimension_numbers = #tpu.dot_dimension_numbers<[1], [0], [0], [1], [0, 0, 1, 1], [], []>} : vector<4x16xf32>, vector<16x16xf32>, vector<4x16xf32> -> vector<4x16xf32>
      %c0_96 = arith.constant 0 : index
      %c0_97 = arith.constant 0 : index
      %153 = vector.load %arg21[%c0_96, %c0_97] : memref<16x16xf32, #tpu.memory_space<vmem>>, vector<16x16xf32>
      %cst_98 = arith.constant dense<0.000000e+00> : vector<4x16xf32>
      %154 = tpu.matmul %121, %153, %cst_98 {dimension_numbers = #tpu.dot_dimension_numbers<[1], [0], [0], [1], [0, 0, 1, 1], [], []>} : vector<4x16xf32>, vector<16x16xf32>, vector<4x16xf32> -> vector<4x16xf32>
      %155 = arith.addf %152, %154 : vector<4x16xf32>
      %c0_99 = arith.constant 0 : index
      %c0_100 = arith.constant 0 : index
      %156 = vector.load %arg22[%c0_99, %c0_100] : memref<1x16xf32, #tpu.memory_space<vmem>>, vector<1x16xf32>
      %157 = vector.broadcast %156 : vector<1x16xf32> to vector<4x16xf32>
      %158 = arith.addf %155, %157 : vector<4x16xf32>
      %cst_101 = arith.constant 0.000000e+00 : f32
      %159 = vector.broadcast %cst_101 : f32 to vector<4x16xf32>
      %160 = arith.cmpf oge, %158, %159 : vector<4x16xf32>
      %cst_102 = arith.constant 0.00999999977 : f32
      %161 = vector.broadcast %cst_102 : f32 to vector<4x16xf32>
      %162 = arith.mulf %161, %158 : vector<4x16xf32>
      %163 = arith.select %160, %158, %162 : vector<4x16xi1>, vector<4x16xf32>
      %c0_103 = arith.constant 0 : index
      %c0_104 = arith.constant 0 : index
      %164 = vector.load %arg23[%c0_103, %c0_104] : memref<16x1xf32, #tpu.memory_space<vmem>>, vector<16x1xf32>
      %cst_105 = arith.constant dense<0.000000e+00> : vector<4x1xf32>
      %165 = tpu.matmul %163, %164, %cst_105 {dimension_numbers = #tpu.dot_dimension_numbers<[1], [0], [0], [1], [0, 0, 1, 1], [], []>} : vector<4x16xf32>, vector<16x1xf32>, vector<4x1xf32> -> vector<4x1xf32>
      %c0_106 = arith.constant 0 : index
      %c0_107 = arith.constant 0 : index
      %166 = vector.load %arg24[%c0_106, %c0_107] : memref<1x1xf32, #tpu.memory_space<vmem>>, vector<1x1xf32>
      %167 = vector.broadcast %166 : vector<1x1xf32> to vector<4x1xf32>
      %168 = arith.addf %165, %167 : vector<4x1xf32>
      %169 = tpu.iota {dimensions = array<i32: 1>} : vector<1x3xi32>
      %c0_i32_108 = arith.constant 0 : i32
      %170 = vector.broadcast %c0_i32_108 : i32 to vector<1x3xi32>
      %171 = arith.cmpi eq, %169, %170 : vector<1x3xi32>
      %172 = arith.extui %171 : vector<1x3xi1> to vector<1x3xi32>
      %173 = arith.sitofp %172 : vector<1x3xi32> to vector<1x3xf32>
      %174 = vector.broadcast %147 : vector<4x1xf32> to vector<4x3xf32>
      %175 = vector.broadcast %173 : vector<1x3xf32> to vector<4x3xf32>
      %176 = arith.mulf %174, %175 : vector<4x3xf32>
      %c1_i32 = arith.constant 1 : i32
      %177 = vector.broadcast %c1_i32 : i32 to vector<1x3xi32>
      %178 = arith.cmpi eq, %169, %177 : vector<1x3xi32>
      %179 = arith.extui %178 : vector<1x3xi1> to vector<1x3xi32>
      %180 = arith.sitofp %179 : vector<1x3xi32> to vector<1x3xf32>
      %181 = vector.broadcast %150 : vector<4x1xf32> to vector<4x3xf32>
      %182 = vector.broadcast %180 : vector<1x3xf32> to vector<4x3xf32>
      %183 = arith.mulf %181, %182 : vector<4x3xf32>
      %184 = arith.addf %176, %183 : vector<4x3xf32>
      %c2_i32 = arith.constant 2 : i32
      %185 = vector.broadcast %c2_i32 : i32 to vector<1x3xi32>
      %186 = arith.cmpi eq, %169, %185 : vector<1x3xi32>
      %187 = arith.extui %186 : vector<1x3xi1> to vector<1x3xi32>
      %188 = arith.sitofp %187 : vector<1x3xi32> to vector<1x3xf32>
      %189 = vector.broadcast %168 : vector<4x1xf32> to vector<4x3xf32>
      %190 = vector.broadcast %188 : vector<1x3xf32> to vector<4x3xf32>
      %191 = arith.mulf %189, %190 : vector<4x3xf32>
      %192 = arith.addf %184, %191 : vector<4x3xf32>
      %c0_109 = arith.constant 0 : index
      %c0_110 = arith.constant 0 : index
      %193 = vector.load %arg26[%c0_109, %c0_110] : memref<4x3xf32, #tpu.memory_space<vmem>>, vector<4x3xf32>
      tpu.vector_store %arg26[%c0_109, %c0_110], %192 {strides = array<i32>} : memref<4x3xf32, #tpu.memory_space<vmem>>, vector<4x3xf32>,
    } else {
    }
    return
  }
  func.func @transform_0(%arg0: i32) -> (i32, i32, i32) {
    %c0_i32 = arith.constant 0 : i32
    %c0_i32_0 = arith.constant 0 : i32
    %c0_i32_1 = arith.constant 0 : i32
    return %arg0, %c0_i32, %c0_i32_0 : i32, i32, i32
  }
  func.func @transform_1(%arg0: i32) -> (i32, i32, i32) {
    %c0_i32 = arith.constant 0 : i32
    %c0_i32_0 = arith.constant 0 : i32
    %c0_i32_1 = arith.constant 0 : i32
    return %arg0, %c0_i32, %c0_i32_0 : i32, i32, i32
  }
  func.func @transform_2(%arg0: i32) -> (i32, i32, i32) {
    %c0_i32 = arith.constant 0 : i32
    %c0_i32_0 = arith.constant 0 : i32
    %c0_i32_1 = arith.constant 0 : i32
    return %arg0, %c0_i32, %c0_i32_0 : i32, i32, i32
  }
  func.func @transform_3(%arg0: i32) -> (i32, i32, i32) {
    %c0_i32 = arith.constant 0 : i32
    %c0_i32_0 = arith.constant 0 : i32
    %c0_i32_1 = arith.constant 0 : i32
    return %arg0, %c0_i32, %c0_i32_0 : i32, i32, i32
  }
  func.func @transform_4(%arg0: i32) -> (i32, i32, i32) {
    %c0_i32 = arith.constant 0 : i32
    %c0_i32_0 = arith.constant 0 : i32
    %c0_i32_1 = arith.constant 0 : i32
    return %arg0, %c0_i32, %c0_i32_0 : i32, i32, i32
  }
  func.func @transform_5(%arg0: i32) -> (i32, i32, i32) {
    %c0_i32 = arith.constant 0 : i32
    %c0_i32_0 = arith.constant 0 : i32
    %c0_i32_1 = arith.constant 0 : i32
    return %arg0, %c0_i32, %c0_i32_0 : i32, i32, i32
  }
  func.func @transform_6(%arg0: i32) -> (i32, i32, i32) {
    %c0_i32 = arith.constant 0 : i32
    %c0_i32_0 = arith.constant 0 : i32
    %c0_i32_1 = arith.constant 0 : i32
    return %arg0, %c0_i32, %c0_i32_0 : i32, i32, i32
  }
  func.func @transform_7(%arg0: i32) -> (i32, i32, i32) {
    %c0_i32 = arith.constant 0 : i32
    %c0_i32_0 = arith.constant 0 : i32
    %c0_i32_1 = arith.constant 0 : i32
    return %arg0, %c0_i32, %c0_i32_0 : i32, i32, i32
  }
  func.func @transform_8(%arg0: i32) -> (i32, i32, i32) {
    %c0_i32 = arith.constant 0 : i32
    %c0_i32_0 = arith.constant 0 : i32
    %c0_i32_1 = arith.constant 0 : i32
    return %arg0, %c0_i32, %c0_i32_0 : i32, i32, i32
  }
  func.func @transform_9(%arg0: i32) -> (i32, i32) {
    %c0_i32 = arith.constant 0 : i32
    %c0_i32_0 = arith.constant 0 : i32
    %c0_i32_1 = arith.constant 0 : i32
    return %c0_i32, %c0_i32_0 : i32, i32
  }
  func.func @transform_10(%arg0: i32) -> (i32, i32) {
    %c0_i32 = arith.constant 0 : i32
    %c0_i32_0 = arith.constant 0 : i32
    %c0_i32_1 = arith.constant 0 : i32
    return %c0_i32, %c0_i32_0 : i32, i32
  }
  func.func @transform_11(%arg0: i32) -> (i32, i32) {
    %c0_i32 = arith.constant 0 : i32
    %c0_i32_0 = arith.constant 0 : i32
    %c0_i32_1 = arith.constant 0 : i32
    return %c0_i32, %c0_i32_0 : i32, i32
  }
  func.func @transform_12(%arg0: i32) -> (i32, i32) {
    %c0_i32 = arith.constant 0 : i32
    %c0_i32_0 = arith.constant 0 : i32
    %c0_i32_1 = arith.constant 0 : i32
    return %c0_i32, %c0_i32_0 : i32, i32
  }
  func.func @transform_13(%arg0: i32) -> (i32, i32) {
    %c0_i32 = arith.constant 0 : i32
    %c0_i32_0 = arith.constant 0 : i32
    %c0_i32_1 = arith.constant 0 : i32
    return %c0_i32, %c0_i32_0 : i32, i32
  }
  func.func @transform_14(%arg0: i32) -> (i32, i32) {
    %c0_i32 = arith.constant 0 : i32
    %c0_i32_0 = arith.constant 0 : i32
    %c0_i32_1 = arith.constant 0 : i32
    return %c0_i32, %c0_i32_0 : i32, i32
  }
  func.func @transform_15(%arg0: i32) -> (i32, i32) {
    %c0_i32 = arith.constant 0 : i32
    %c0_i32_0 = arith.constant 0 : i32
    %c0_i32_1 = arith.constant 0 : i32
    return %c0_i32, %c0_i32_0 : i32, i32
  }
  func.func @transform_16(%arg0: i32) -> (i32, i32) {
    %c0_i32 = arith.constant 0 : i32
    %c0_i32_0 = arith.constant 0 : i32
    %c0_i32_1 = arith.constant 0 : i32
    return %c0_i32, %c0_i32_0 : i32, i32
  }
  func.func @transform_17(%arg0: i32) -> (i32, i32) {
    %c0_i32 = arith.constant 0 : i32
    %c0_i32_0 = arith.constant 0 : i32
    %c0_i32_1 = arith.constant 0 : i32
    return %c0_i32, %c0_i32_0 : i32, i32
  }
  func.func @transform_18(%arg0: i32) -> (i32, i32) {
    %c0_i32 = arith.constant 0 : i32
    %c0_i32_0 = arith.constant 0 : i32
    %c0_i32_1 = arith.constant 0 : i32
    return %c0_i32, %c0_i32_0 : i32, i32
  }
  func.func @transform_19(%arg0: i32) -> (i32, i32) {
    %c0_i32 = arith.constant 0 : i32
    %c0_i32_0 = arith.constant 0 : i32
    %c0_i32_1 = arith.constant 0 : i32
    return %c0_i32, %c0_i32_0 : i32, i32
  }
  func.func @transform_20(%arg0: i32) -> (i32, i32) {
    %c0_i32 = arith.constant 0 : i32
    %c0_i32_0 = arith.constant 0 : i32
    %c0_i32_1 = arith.constant 0 : i32
    return %c0_i32, %c0_i32_0 : i32, i32
  }
  func.func @transform_21(%arg0: i32) -> (i32, i32) {
    %c0_i32 = arith.constant 0 : i32
    %c0_i32_0 = arith.constant 0 : i32
    %c0_i32_1 = arith.constant 0 : i32
    return %c0_i32, %c0_i32_0 : i32, i32
  }
  func.func @transform_22(%arg0: i32) -> (i32, i32) {
    %c0_i32 = arith.constant 0 : i32
    %c0_i32_0 = arith.constant 0 : i32
    %c0_i32_1 = arith.constant 0 : i32
    return %c0_i32, %c0_i32_0 : i32, i32
  }
  func.func @transform_23(%arg0: i32) -> (i32, i32) {
    %c0_i32 = arith.constant 0 : i32
    %c0_i32_0 = arith.constant 0 : i32
    %c0_i32_1 = arith.constant 0 : i32
    return %c0_i32, %c0_i32_0 : i32, i32
  }
  func.func @transform_24(%arg0: i32) -> (i32, i32) {
    %c0_i32 = arith.constant 0 : i32
    %c0_i32_0 = arith.constant 0 : i32
    %c0_i32_1 = arith.constant 0 : i32
    return %c0_i32, %c0_i32_0 : i32, i32
  }
  func.func @transform_25(%arg0: i32) -> (i32, i32) {
    %c0_i32 = arith.constant 0 : i32
    %c0_i32_0 = arith.constant 0 : i32
    %c0_i32_1 = arith.constant 0 : i32
    return %c0_i32, %c0_i32_0 : i32, i32
  }
}

</mosaic_0001>

<llo_original>
// kernel: nft_mars_forward.1
$region0: #{nft_mars_forward.1}
  #allocation0 [shape = 'u32[]', space=smem, size = 0x4, offset = 0x4, fixed_abs, tag = 'smem constant byte address 0x4 - core index']
  #allocation1 [shape = 'u32[144,128]{1,0:T(1,128)}', space=vmem, size = 0x12000, scoped, tag = 'internal scratch']
  #allocation2 [shape = 'f32[4,16]{1,0:T(4,128)}', space=vmem, size = 0x800, scoped, tag = 'scratch operand']
  #allocation3 [shape = 'f32[1,1]{1,0:T(1,128)S(1)}', space=vmem, size = 0x200, scoped, tag = 'scoped memory for nft_mars_forward.1']
  %s0 = inlined_call_operand.hbm [shape: f32[4,16,16], index: 0, kind: input, shape index: {}]
  %s1 = inlined_call_operand.hbm [shape: f32[4,14,16], index: 1, kind: input, shape index: {}]
  %s2 = inlined_call_operand.hbm [shape: f32[4,1,16], index: 2, kind: input, shape index: {}]
  %s3 = inlined_call_operand.hbm [shape: f32[4,16,16], index: 3, kind: input, shape index: {}]
  %s4 = inlined_call_operand.hbm [shape: f32[4,16,16], index: 4, kind: input, shape index: {}]
  %s5 = inlined_call_operand.hbm [shape: f32[4,1,16], index: 5, kind: input, shape index: {}]
  %s6 = inlined_call_operand.hbm [shape: f32[4,16,16], index: 6, kind: input, shape index: {}]
  %s7 = inlined_call_operand.hbm [shape: f32[4,1,16], index: 7, kind: input, shape index: {}]
  %s8 = inlined_call_operand.hbm [shape: f32[4,1,1], index: 8, kind: input, shape index: {}]
  %s9 = inlined_call_operand.hbm [shape: f32[6,14], index: 9, kind: input, shape index: {}]
  %s10 = inlined_call_operand.hbm [shape: f32[16,6], index: 10, kind: input, shape index: {}]
  %s11 = inlined_call_operand.hbm [shape: f32[16,16], index: 11, kind: input, shape index: {}]
  %s12 = inlined_call_operand.hbm [shape: f32[16,16], index: 12, kind: input, shape index: {}]
  %s13 = inlined_call_operand.vmem [shape: s32[4,1], index: 13, kind: input, shape index: {}]
  %s14 = inlined_call_operand.vmem [shape: s32[4,1], index: 14, kind: input, shape index: {}]
  %s15 = inlined_call_operand.vmem [shape: s32[4,1], index: 15, kind: input, shape index: {}]
  %s16 = inlined_call_operand.hbm [shape: f32[16,16], index: 16, kind: input, shape index: {}]
  %s17 = inlined_call_operand.vmem [shape: f32[16,16], index: 17, kind: input, shape index: {}]
  %s18 = inlined_call_operand.vmem [shape: f32[16,16], index: 18, kind: input, shape index: {}]
  %s19 = inlined_call_operand.vmem [shape: f32[16,16], index: 19, kind: input, shape index: {}]
  %s20 = inlined_call_operand.vmem [shape: f32[16,16], index: 20, kind: input, shape index: {}]
  %s21 = inlined_call_operand.vmem [shape: f32[1,16], index: 21, kind: input, shape index: {}]
  %s22 = inlined_call_operand.vmem [shape: f32[16,1], index: 22, kind: input, shape index: {}]
  %s23 = inlined_call_operand.<no memory space> [shape: f32[1,1], index: 23, kind: input, shape index: {}]
  %s24 = inlined_call_operand.hbm [shape: f32[16,16], index: 24, kind: output, shape index: {0}]
  %s25 = inlined_call_operand.vmem [shape: f32[4,3], index: 25, kind: output, shape index: {1}]
  %26 = xla_tuple %s24, %s25
  %s27 = sld [smem:[#allocation0]]
  $region201: #{nft_mars_forward.1} parent=0
    _
  %s29 = ssub.s32 1, %s27
  %s30 = scalar_select 0, %s29, %s27
  %v31 = vstv %s23
  %32 = vst [vmem:[#allocation3] sm:$0x1] %v31
  $region1: #{nft_mars_forward.1} parent=0
    #allocation4 [shape = 'u8[16384]{0}', space=vmem, size = 0x4000, scoped, tag = 'input window, operand 0']
    #allocation5 [shape = 's32[2]{0}', space=sflag, size = 0x8, scoped, tag = 'scoped memory for nft_mars_forward.1']
    #allocation6 [shape = 's32[2]{0}', space=sflag, size = 0x8, scoped, tag = 'scoped memory for nft_mars_forward.1']
    #allocation7 [shape = 'u8[16384]{0}', space=vmem, size = 0x4000, scoped, tag = 'input window, operand 1']
    #allocation8 [shape = 's32[2]{0}', space=sflag, size = 0x8, scoped, tag = 'scoped memory for nft_mars_forward.1']
    #allocation9 [shape = 'u8[1024]{0}', space=vmem, size = 0x400, scoped, tag = 'input window, operand 2']
    #allocation10 [shape = 'u8[16384]{0}', space=vmem, size = 0x4000, scoped, tag = 'input window, operand 3']
    #allocation11 [shape = 's32[2]{0}', space=sflag, size = 0x8, scoped, tag = 'scoped memory for nft_mars_forward.1']
    #allocation12 [shape = 'u8[16384]{0}', space=vmem, size = 0x4000, scoped, tag = 'input window, operand 4']
    #allocation13 [shape = 'u8[1024]{0}', space=vmem, size = 0x400, scoped, tag = 'input window, operand 5']
    #allocation14 [shape = 's32[2]{0}', space=sflag, size = 0x8, scoped, tag = 'scoped memory for nft_mars_forward.1']
    #allocation15 [shape = 'u8[16384]{0}', space=vmem, size = 0x4000, scoped, tag = 'input window, operand 6']
    #allocation16 [shape = 'u8[1024]{0}', space=vmem, size = 0x400, scoped, tag = 'input window, operand 7']
    #allocation17 [shape = 's32[2]{0}', space=sflag, size = 0x8, scoped, tag = 'scoped memory for nft_mars_forward.1']
    #allocation18 [shape = 'u8[1024]{0}', space=vmem, size = 0x400, scoped, tag = 'input window, operand 8']
    #allocation19 [shape = 'u8[4096]{0}', space=vmem, size = 0x1000, scoped, tag = 'input window, operand 9, single buffered']
    #allocation20 [shape = 's32[1]{0}', space=sflag, size = 0x4, scoped, tag = 'scoped memory for nft_mars_forward.1']
    #allocation21 [shape = 'u8[8192]{0}', space=vmem, size = 0x2000, scoped, tag = 'input window, operand 10, single buffered']
    #allocation22 [shape = 'u8[8192]{0}', space=vmem, size = 0x2000, scoped, tag = 'input window, operand 11, single buffered']
    #allocation23 [shape = 's32[1]{0}', space=sflag, size = 0x4, scoped, tag = 'scoped memory for nft_mars_forward.1']
    #allocation24 [shape = 'u8[8192]{0}', space=vmem, size = 0x2000, scoped, tag = 'input window, operand 12, single buffered']
    #allocation25 [shape = 'u8[8192]{0}', space=vmem, size = 0x2000, scoped, tag = 'input window, operand 16, single buffered']
    #allocation26 [shape = 's32[1]{0}', space=sflag, size = 0x4, scoped, tag = 'scoped memory for nft_mars_forward.1']
    #allocation27 [shape = 'u8[8192]{0}', space=vmem, size = 0x2000, scoped, tag = 'output window, operand 0, single buffered']
    %33 = vsyncpa [#allocation5], 0
    %s34 = scalar_lea.sflag [#allocation5], 1
    %35 = vsyncpa %s34, 0
    %36 = vsyncpa [#allocation8], 0
    %s37 = scalar_lea.sflag [#allocation8], 1
    %38 = vsyncpa %s37, 0
    %39 = vsyncpa [#allocation11], 0
    %s40 = scalar_lea.sflag [#allocation11], 1
    %41 = vsyncpa %s40, 0
    %42 = vsyncpa [#allocation14], 0
    %s43 = scalar_lea.sflag [#allocation14], 1
    %44 = vsyncpa %s43, 0
    %45 = vsyncpa [#allocation17], 0
    %s46 = scalar_lea.sflag [#allocation17], 1
    %47 = vsyncpa %s46, 0
    %48 = vsyncpa [#allocation20], 0
    %49 = vsyncpa [#allocation23], 0
    %50 = vsyncpa [#allocation26], 0
    %51 = vsyncpa [#allocation6], 0
    loop: start=0, step=1, limit=6
    $region2: #{nft_mars_forward.1} parent=1 // loop_pre_header
      _
    $region3: #{nft_mars_forward.1} parent=1 // loop_header
      %s53 = sphi 0, %s57
      %p54 = scmp.ge.s32.totalorder %s53, 6
      %s63 = sphi 0, %s65
      %s66 = sphi 0, %s63
      %s67 = sphi 0, %s66
      %s83 = sphi 0, %s67
      %s89 = sphi 0, %s91
      %s92 = sphi 0, %s89
      %s93 = sphi 0, %s92
      %s109 = sphi 0, %s93
      %s115 = sphi 0, %s117
      %s118 = sphi 0, %s115
      %s119 = sphi 0, %s118
      %s135 = sphi 0, %s119
      %s141 = sphi 0, %s143
      %s144 = sphi 0, %s141
      %s145 = sphi 0, %s144
      %s161 = sphi 0, %s145
      %s167 = sphi 0, %s169
      %s170 = sphi 0, %s167
      %s171 = sphi 0, %s170
      %s187 = sphi 0, %s171
      %s193 = sphi 0, %s195
      %s196 = sphi 0, %s193
      %s197 = sphi 0, %s196
      %s213 = sphi 0, %s197
      %s219 = sphi 0, %s221
      %s222 = sphi 0, %s219
      %s223 = sphi 0, %s222
      %s239 = sphi 0, %s223
      %s245 = sphi 0, %s247
      %s248 = sphi 0, %s245
      %s249 = sphi 0, %s248
      %s265 = sphi 0, %s249
      %s271 = sphi 0, %s273
      %s274 = sphi 0, %s271
      %s275 = sphi 0, %s274
      %s291 = sphi 0, %s275
      %s295 = sphi 0, %s295
      %s297 = sphi 0, %s295
      %s298 = sphi 0, %s297
      %s312 = sphi 0, %s298
      %s316 = sphi 0, %s316
      %s318 = sphi 0, %s316
      %s319 = sphi 0, %s318
      %s333 = sphi 0, %s319
      %s337 = sphi 0, %s337
      %s339 = sphi 0, %s337
      %s340 = sphi 0, %s339
      %s354 = sphi 0, %s340
      %s358 = sphi 0, %s358
      %s360 = sphi 0, %s358
      %s361 = sphi 0, %s360
      %s375 = sphi 0, %s361
      %s379 = sphi 0, %s379
      %s381 = sphi 0, %s379
      %s382 = sphi 0, %s381
      %s396 = sphi 0, %s382
      %s400 = sphi 0, %s400
      %s402 = sphi 0, %s400
      %s403 = sphi 0, %s402
      %s417 = sphi 0, %s403
      %s421 = sphi 0, %s421
      %s423 = sphi 0, %s421
      %s424 = sphi 0, %s423
      %s438 = sphi 0, %s424
      %s442 = sphi 0, %s442
      %s444 = sphi 0, %s442
      %s445 = sphi 0, %s444
      %s459 = sphi 0, %s445
      %s463 = sphi 0, %s463
      %s465 = sphi 0, %s463
      %s466 = sphi 0, %s465
      %s480 = sphi 0, %s466
      %s484 = sphi 0, %s484
      %s486 = sphi 0, %s484
      %s487 = sphi 0, %s486
      %s501 = sphi 0, %s487
      %s505 = sphi 0, %s505
      %s507 = sphi 0, %s505
      %s508 = sphi 0, %s507
      %s522 = sphi 0, %s508
      %s526 = sphi 0, %s526
      %s528 = sphi 0, %s526
      %s529 = sphi 0, %s528
      %s543 = sphi 0, %s529
      %s547 = sphi 0, %s547
      %s549 = sphi 0, %s547
      %s550 = sphi 0, %s549
      %s564 = sphi 0, %s550
      %s568 = sphi 0, %s568
      %s570 = sphi 0, %s568
      %s571 = sphi 0, %s570
      %s585 = sphi 0, %s571
      %s589 = sphi 0, %s589
      %s591 = sphi 0, %s589
      %s592 = sphi 0, %s591
      %s606 = sphi 0, %s592
      %s610 = sphi 0, %s610
      %s612 = sphi 0, %s610
      %s613 = sphi 0, %s612
      %s627 = sphi 0, %s613
      %s631 = sphi 0, %s631
      %s633 = sphi 0, %s631
      %s634 = sphi 0, %s633
      %s648 = sphi 0, %s634
    $region4: #{nft_mars_forward.1} parent=1 // loop_header_branch
      %56 = sbr.rel (%p54) target = $region8
    $region5: #{nft_mars_forward.1} parent=1 // loop_body
      %s58 = ssub.s32 %s53, 1
      %s59 = ssub.s32 %s53, 2
      %s60 = sadd.s32 %s53, 1
      %s61 = ssub.s32 %s53, %s60
      %p62 = scmp.eq.s32.totalorder %s61, 0
      %s64 = sadd.s32 %s63, 1
      %s65 = scalar_select %p62, %s63, %s64
      %p68 = pneg %p62
      %p69 = scmp.eq.s32.totalorder %s53, 3
      %p70 = por %p68, %p69
      %p71 = scmp.ne.s32.totalorder %s63, %s66
      %p72 = scmp.eq.s32.totalorder %s53, 0
      %p73 = por %p71, %p72
      %p74 = scmp.ne.s32.totalorder %s63, %s66
      %p75 = scmp.eq.s32.totalorder %s58, 3
      %p76 = por %p74, %p75
      %p77 = scmp.ne.s32.totalorder %s66, %s67
      %p78 = scmp.eq.s32.totalorder %s58, 0
      %p79 = por %p77, %p78
      %p80 = scmp.ne.s32.totalorder %s66, %s67
      %p81 = scmp.eq.s32.totalorder %s59, 3
      %p82 = por %p80, %p81
      %p84 = scmp.ne.s32.totalorder %s67, %s83
      %p85 = scmp.eq.s32.totalorder %s59, 0
      %p86 = por %p84, %p85
      %s87 = ssub.s32 %s53, %s60
      %p88 = scmp.eq.s32.totalorder %s87, 0
      %s90 = sadd.s32 %s89, 1
      %s91 = scalar_select %p88, %s89, %s90
      %p94 = pneg %p88
      %p95 = scmp.eq.s32.totalorder %s53, 3
      %p96 = por %p94, %p95
      %p97 = scmp.ne.s32.totalorder %s89, %s92
      %p98 = scmp.eq.s32.totalorder %s53, 0
      %p99 = por %p97, %p98
      %p100 = scmp.ne.s32.totalorder %s89, %s92
      %p101 = scmp.eq.s32.totalorder %s58, 3
      %p102 = por %p100, %p101
      %p103 = scmp.ne.s32.totalorder %s92, %s93
      %p104 = scmp.eq.s32.totalorder %s58, 0
      %p105 = por %p103, %p104
      %p106 = scmp.ne.s32.totalorder %s92, %s93
      %p107 = scmp.eq.s32.totalorder %s59, 3
      %p108 = por %p106, %p107
      %p110 = scmp.ne.s32.totalorder %s93, %s109
      %p111 = scmp.eq.s32.totalorder %s59, 0
      %p112 = por %p110, %p111
      %s113 = ssub.s32 %s53, %s60
      %p114 = scmp.eq.s32.totalorder %s113, 0
      %s116 = sadd.s32 %s115, 1
      %s117 = scalar_select %p114, %s115, %s116
      %p120 = pneg %p114
      %p121 = scmp.eq.s32.totalorder %s53, 3
      %p122 = por %p120, %p121
      %p123 = scmp.ne.s32.totalorder %s115, %s118
      %p124 = scmp.eq.s32.totalorder %s53, 0
      %p125 = por %p123, %p124
      %p126 = scmp.ne.s32.totalorder %s115, %s118
      %p127 = scmp.eq.s32.totalorder %s58, 3
      %p128 = por %p126, %p127
      %p129 = scmp.ne.s32.totalorder %s118, %s119
      %p130 = scmp.eq.s32.totalorder %s58, 0
      %p131 = por %p129, %p130
      %p132 = scmp.ne.s32.totalorder %s118, %s119
      %p133 = scmp.eq.s32.totalorder %s59, 3
      %p134 = por %p132, %p133
      %p136 = scmp.ne.s32.totalorder %s119, %s135
      %p137 = scmp.eq.s32.totalorder %s59, 0
      %p138 = por %p136, %p137
      %s139 = ssub.s32 %s53, %s60
      %p140 = scmp.eq.s32.totalorder %s139, 0
      %s142 = sadd.s32 %s141, 1
      %s143 = scalar_select %p140, %s141, %s142
      %p146 = pneg %p140
      %p147 = scmp.eq.s32.totalorder %s53, 3
      %p148 = por %p146, %p147
      %p149 = scmp.ne.s32.totalorder %s141, %s144
      %p150 = scmp.eq.s32.totalorder %s53, 0
      %p151 = por %p149, %p150
      %p152 = scmp.ne.s32.totalorder %s141, %s144
      %p153 = scmp.eq.s32.totalorder %s58, 3
      %p154 = por %p152, %p153
      %p155 = scmp.ne.s32.totalorder %s144, %s145
      %p156 = scmp.eq.s32.totalorder %s58, 0
      %p157 = por %p155, %p156
      %p158 = scmp.ne.s32.totalorder %s144, %s145
      %p159 = scmp.eq.s32.totalorder %s59, 3
      %p160 = por %p158, %p159
      %p162 = scmp.ne.s32.totalorder %s145, %s161
      %p163 = scmp.eq.s32.totalorder %s59, 0
      %p164 = por %p162, %p163
      %s165 = ssub.s32 %s53, %s60
      %p166 = scmp.eq.s32.totalorder %s165, 0
      %s168 = sadd.s32 %s167, 1
      %s169 = scalar_select %p166, %s167, %s168
      %p172 = pneg %p166
      %p173 = scmp.eq.s32.totalorder %s53, 3
      %p174 = por %p172, %p173
      %p175 = scmp.ne.s32.totalorder %s167, %s170
      %p176 = scmp.eq.s32.totalorder %s53, 0
      %p177 = por %p175, %p176
      %p178 = scmp.ne.s32.totalorder %s167, %s170
      %p179 = scmp.eq.s32.totalorder %s58, 3
      %p180 = por %p178, %p179
      %p181 = scmp.ne.s32.totalorder %s170, %s171
      %p182 = scmp.eq.s32.totalorder %s58, 0
      %p183 = por %p181, %p182
      %p184 = scmp.ne.s32.totalorder %s170, %s171
      %p185 = scmp.eq.s32.totalorder %s59, 3
      %p186 = por %p184, %p185
      %p188 = scmp.ne.s32.totalorder %s171, %s187
      %p189 = scmp.eq.s32.totalorder %s59, 0
      %p190 = por %p188, %p189
      %s191 = ssub.s32 %s53, %s60
      %p192 = scmp.eq.s32.totalorder %s191, 0
      %s194 = sadd.s32 %s193, 1
      %s195 = scalar_select %p192, %s193, %s194
      %p198 = pneg %p192
      %p199 = scmp.eq.s32.totalorder %s53, 3
      %p200 = por %p198, %p199
      %p201 = scmp.ne.s32.totalorder %s193, %s196
      %p202 = scmp.eq.s32.totalorder %s53, 0
      %p203 = por %p201, %p202
      %p204 = scmp.ne.s32.totalorder %s193, %s196
      %p205 = scmp.eq.s32.totalorder %s58, 3
      %p206 = por %p204, %p205
      %p207 = scmp.ne.s32.totalorder %s196, %s197
      %p208 = scmp.eq.s32.totalorder %s58, 0
      %p209 = por %p207, %p208
      %p210 = scmp.ne.s32.totalorder %s196, %s197
      %p211 = scmp.eq.s32.totalorder %s59, 3
      %p212 = por %p210, %p211
      %p214 = scmp.ne.s32.totalorder %s197, %s213
      %p215 = scmp.eq.s32.totalorder %s59, 0
      %p216 = por %p214, %p215
      %s217 = ssub.s32 %s53, %s60
      %p218 = scmp.eq.s32.totalorder %s217, 0
      %s220 = sadd.s32 %s219, 1
      %s221 = scalar_select %p218, %s219, %s220
      %p224 = pneg %p218
      %p225 = scmp.eq.s32.totalorder %s53, 3
      %p226 = por %p224, %p225
      %p227 = scmp.ne.s32.totalorder %s219, %s222
      %p228 = scmp.eq.s32.totalorder %s53, 0
      %p229 = por %p227, %p228
      %p230 = scmp.ne.s32.totalorder %s219, %s222
      %p231 = scmp.eq.s32.totalorder %s58, 3
      %p232 = por %p230, %p231
      %p233 = scmp.ne.s32.totalorder %s222, %s223
      %p234 = scmp.eq.s32.totalorder %s58, 0
      %p235 = por %p233, %p234
      %p236 = scmp.ne.s32.totalorder %s222, %s223
      %p237 = scmp.eq.s32.totalorder %s59, 3
      %p238 = por %p236, %p237
      %p240 = scmp.ne.s32.totalorder %s223, %s239
      %p241 = scmp.eq.s32.totalorder %s59, 0
      %p242 = por %p240, %p241
      %s243 = ssub.s32 %s53, %s60
      %p244 = scmp.eq.s32.totalorder %s243, 0
      %s246 = sadd.s32 %s245, 1
      %s247 = scalar_select %p244, %s245, %s246
      %p250 = pneg %p244
      %p251 = scmp.eq.s32.totalorder %s53, 3
      %p252 = por %p250, %p251
      %p253 = scmp.ne.s32.totalorder %s245, %s248
      %p254 = scmp.eq.s32.totalorder %s53, 0
      %p255 = por %p253, %p254
      %p256 = scmp.ne.s32.totalorder %s245, %s248
      %p257 = scmp.eq.s32.totalorder %s58, 3
      %p258 = por %p256, %p257
      %p259 = scmp.ne.s32.totalorder %s248, %s249
      %p260 = scmp.eq.s32.totalorder %s58, 0
      %p261 = por %p259, %p260
      %p262 = scmp.ne.s32.totalorder %s248, %s249
      %p263 = scmp.eq.s32.totalorder %s59, 3
      %p264 = por %p262, %p263
      %p266 = scmp.ne.s32.totalorder %s249, %s265
      %p267 = scmp.eq.s32.totalorder %s59, 0
      %p268 = por %p266, %p267
      %s269 = ssub.s32 %s53, %s60
      %p270 = scmp.eq.s32.totalorder %s269, 0
      %s272 = sadd.s32 %s271, 1
      %s273 = scalar_select %p270, %s271, %s272
      %p276 = pneg %p270
      %p277 = scmp.eq.s32.totalorder %s53, 3
      %p278 = por %p276, %p277
      %p279 = scmp.ne.s32.totalorder %s271, %s274
      %p280 = scmp.eq.s32.totalorder %s53, 0
      %p281 = por %p279, %p280
      %p282 = scmp.ne.s32.totalorder %s271, %s274
      %p283 = scmp.eq.s32.totalorder %s58, 3
      %p284 = por %p282, %p283
      %p285 = scmp.ne.s32.totalorder %s274, %s275
      %p286 = scmp.eq.s32.totalorder %s58, 0
      %p287 = por %p285, %p286
      %p288 = scmp.ne.s32.totalorder %s274, %s275
      %p289 = scmp.eq.s32.totalorder %s59, 3
      %p290 = por %p288, %p289
      %p292 = scmp.ne.s32.totalorder %s275, %s291
      %p293 = scmp.eq.s32.totalorder %s59, 0
      %p294 = por %p292, %p293
      %s296 = sadd.s32 %s295, 1
      %p299 = scmp.eq.s32.totalorder %s53, 3
      %p300 = scmp.ne.s32.totalorder %s295, %s297
      %p301 = scmp.eq.s32.totalorder %s53, 0
      %p302 = por %p300, %p301
      %p303 = scmp.ne.s32.totalorder %s295, %s297
      %p304 = scmp.eq.s32.totalorder %s58, 3
      %p305 = por %p303, %p304
      %p306 = scmp.ne.s32.totalorder %s297, %s298
      %p307 = scmp.eq.s32.totalorder %s58, 0
      %p308 = por %p306, %p307
      %p309 = scmp.ne.s32.totalorder %s297, %s298
      %p310 = scmp.eq.s32.totalorder %s59, 3
      %p311 = por %p309, %p310
      %p313 = scmp.ne.s32.totalorder %s298, %s312
      %p314 = scmp.eq.s32.totalorder %s59, 0
      %p315 = por %p313, %p314
      %s317 = sadd.s32 %s316, 1
      %p320 = scmp.eq.s32.totalorder %s53, 3
      %p321 = scmp.ne.s32.totalorder %s316, %s318
      %p322 = scmp.eq.s32.totalorder %s53, 0
      %p323 = por %p321, %p322
      %p324 = scmp.ne.s32.totalorder %s316, %s318
      %p325 = scmp.eq.s32.totalorder %s58, 3
      %p326 = por %p324, %p325
      %p327 = scmp.ne.s32.totalorder %s318, %s319
      %p328 = scmp.eq.s32.totalorder %s58, 0
      %p329 = por %p327, %p328
      %p330 = scmp.ne.s32.totalorder %s318, %s319
      %p331 = scmp.eq.s32.totalorder %s59, 3
      %p332 = por %p330, %p331
      %p334 = scmp.ne.s32.totalorder %s319, %s333
      %p335 = scmp.eq.s32.totalorder %s59, 0
      %p336 = por %p334, %p335
      %s338 = sadd.s32 %s337, 1
      %p341 = scmp.eq.s32.totalorder %s53, 3
      %p342 = scmp.ne.s32.totalorder %s337, %s339
      %p343 = scmp.eq.s32.totalorder %s53, 0
      %p344 = por %p342, %p343
      %p345 = scmp.ne.s32.totalorder %s337, %s339
      %p346 = scmp.eq.s32.totalorder %s58, 3
      %p347 = por %p345, %p346
      %p348 = scmp.ne.s32.totalorder %s339, %s340
      %p349 = scmp.eq.s32.totalorder %s58, 0
      %p350 = por %p348, %p349
      %p351 = scmp.ne.s32.totalorder %s339, %s340
      %p352 = scmp.eq.s32.totalorder %s59, 3
      %p353 = por %p351, %p352
      %p355 = scmp.ne.s32.totalorder %s340, %s354
      %p356 = scmp.eq.s32.totalorder %s59, 0
      %p357 = por %p355, %p356
      %s359 = sadd.s32 %s358, 1
      %p362 = scmp.eq.s32.totalorder %s53, 3
      %p363 = scmp.ne.s32.totalorder %s358, %s360
      %p364 = scmp.eq.s32.totalorder %s53, 0
      %p365 = por %p363, %p364
      %p366 = scmp.ne.s32.totalorder %s358, %s360
      %p367 = scmp.eq.s32.totalorder %s58, 3
      %p368 = por %p366, %p367
      %p369 = scmp.ne.s32.totalorder %s360, %s361
      %p370 = scmp.eq.s32.totalorder %s58, 0
      %p371 = por %p369, %p370
      %p372 = scmp.ne.s32.totalorder %s360, %s361
      %p373 = scmp.eq.s32.totalorder %s59, 3
      %p374 = por %p372, %p373
      %p376 = scmp.ne.s32.totalorder %s361, %s375
      %p377 = scmp.eq.s32.totalorder %s59, 0
      %p378 = por %p376, %p377
      %s380 = sadd.s32 %s379, 1
      %p383 = scmp.eq.s32.totalorder %s53, 3
      %p384 = scmp.ne.s32.totalorder %s379, %s381
      %p385 = scmp.eq.s32.totalorder %s53, 0
      %p386 = por %p384, %p385
      %p387 = scmp.ne.s32.totalorder %s379, %s381
      %p388 = scmp.eq.s32.totalorder %s58, 3
      %p389 = por %p387, %p388
      %p390 = scmp.ne.s32.totalorder %s381, %s382
      %p391 = scmp.eq.s32.totalorder %s58, 0
      %p392 = por %p390, %p391
      %p393 = scmp.ne.s32.totalorder %s381, %s382
      %p394 = scmp.eq.s32.totalorder %s59, 3
      %p395 = por %p393, %p394
      %p397 = scmp.ne.s32.totalorder %s382, %s396
      %p398 = scmp.eq.s32.totalorder %s59, 0
      %p399 = por %p397, %p398
      %s401 = sadd.s32 %s400, 1
      %p404 = scmp.eq.s32.totalorder %s53, 3
      %p405 = scmp.ne.s32.totalorder %s400, %s402
      %p406 = scmp.eq.s32.totalorder %s53, 0
      %p407 = por %p405, %p406
      %p408 = scmp.ne.s32.totalorder %s400, %s402
      %p409 = scmp.eq.s32.totalorder %s58, 3
      %p410 = por %p408, %p409
      %p411 = scmp.ne.s32.totalorder %s402, %s403
      %p412 = scmp.eq.s32.totalorder %s58, 0
      %p413 = por %p411, %p412
      %p414 = scmp.ne.s32.totalorder %s402, %s403
      %p415 = scmp.eq.s32.totalorder %s59, 3
      %p416 = por %p414, %p415
      %p418 = scmp.ne.s32.totalorder %s403, %s417
      %p419 = scmp.eq.s32.totalorder %s59, 0
      %p420 = por %p418, %p419
      %s422 = sadd.s32 %s421, 1
      %p425 = scmp.eq.s32.totalorder %s53, 3
      %p426 = scmp.ne.s32.totalorder %s421, %s423
      %p427 = scmp.eq.s32.totalorder %s53, 0
      %p428 = por %p426, %p427
      %p429 = scmp.ne.s32.totalorder %s421, %s423
      %p430 = scmp.eq.s32.totalorder %s58, 3
      %p431 = por %p429, %p430
      %p432 = scmp.ne.s32.totalorder %s423, %s424
      %p433 = scmp.eq.s32.totalorder %s58, 0
      %p434 = por %p432, %p433
      %p435 = scmp.ne.s32.totalorder %s423, %s424
      %p436 = scmp.eq.s32.totalorder %s59, 3
      %p437 = por %p435, %p436
      %p439 = scmp.ne.s32.totalorder %s424, %s438
      %p440 = scmp.eq.s32.totalorder %s59, 0
      %p441 = por %p439, %p440
      %s443 = sadd.s32 %s442, 1
      %p446 = scmp.eq.s32.totalorder %s53, 3
      %p447 = scmp.ne.s32.totalorder %s442, %s444
      %p448 = scmp.eq.s32.totalorder %s53, 0
      %p449 = por %p447, %p448
      %p450 = scmp.ne.s32.totalorder %s442, %s444
      %p451 = scmp.eq.s32.totalorder %s58, 3
      %p452 = por %p450, %p451
      %p453 = scmp.ne.s32.totalorder %s444, %s445
      %p454 = scmp.eq.s32.totalorder %s58, 0
      %p455 = por %p453, %p454
      %p456 = scmp.ne.s32.totalorder %s444, %s445
      %p457 = scmp.eq.s32.totalorder %s59, 3
      %p458 = por %p456, %p457
      %p460 = scmp.ne.s32.totalorder %s445, %s459
      %p461 = scmp.eq.s32.totalorder %s59, 0
      %p462 = por %p460, %p461
      %s464 = sadd.s32 %s463, 1
      %p467 = scmp.eq.s32.totalorder %s53, 3
      %p468 = scmp.ne.s32.totalorder %s463, %s465
      %p469 = scmp.eq.s32.totalorder %s53, 0
      %p470 = por %p468, %p469
      %p471 = scmp.ne.s32.totalorder %s463, %s465
      %p472 = scmp.eq.s32.totalorder %s58, 3
      %p473 = por %p471, %p472
      %p474 = scmp.ne.s32.totalorder %s465, %s466
      %p475 = scmp.eq.s32.totalorder %s58, 0
      %p476 = por %p474, %p475
      %p477 = scmp.ne.s32.totalorder %s465, %s466
      %p478 = scmp.eq.s32.totalorder %s59, 3
      %p479 = por %p477, %p478
      %p481 = scmp.ne.s32.totalorder %s466, %s480
      %p482 = scmp.eq.s32.totalorder %s59, 0
      %p483 = por %p481, %p482
      %s485 = sadd.s32 %s484, 1
      %p488 = scmp.eq.s32.totalorder %s53, 3
      %p489 = scmp.ne.s32.totalorder %s484, %s486
      %p490 = scmp.eq.s32.totalorder %s53, 0
      %p491 = por %p489, %p490
      %p492 = scmp.ne.s32.totalorder %s484, %s486
      %p493 = scmp.eq.s32.totalorder %s58, 3
      %p494 = por %p492, %p493
      %p495 = scmp.ne.s32.totalorder %s486, %s487
      %p496 = scmp.eq.s32.totalorder %s58, 0
      %p497 = por %p495, %p496
      %p498 = scmp.ne.s32.totalorder %s486, %s487
      %p499 = scmp.eq.s32.totalorder %s59, 3
      %p500 = por %p498, %p499
      %p502 = scmp.ne.s32.totalorder %s487, %s501
      %p503 = scmp.eq.s32.totalorder %s59, 0
      %p504 = por %p502, %p503
      %s506 = sadd.s32 %s505, 1
      %p509 = scmp.eq.s32.totalorder %s53, 3
      %p510 = scmp.ne.s32.totalorder %s505, %s507
      %p511 = scmp.eq.s32.totalorder %s53, 0
      %p512 = por %p510, %p511
      %p513 = scmp.ne.s32.totalorder %s505, %s507
      %p514 = scmp.eq.s32.totalorder %s58, 3
      %p515 = por %p513, %p514
      %p516 = scmp.ne.s32.totalorder %s507, %s508
      %p517 = scmp.eq.s32.totalorder %s58, 0
      %p518 = por %p516, %p517
      %p519 = scmp.ne.s32.totalorder %s507, %s508
      %p520 = scmp.eq.s32.totalorder %s59, 3
      %p521 = por %p519, %p520
      %p523 = scmp.ne.s32.totalorder %s508, %s522
      %p524 = scmp.eq.s32.totalorder %s59, 0
      %p525 = por %p523, %p524
      %s527 = sadd.s32 %s526, 1
      %p530 = scmp.eq.s32.totalorder %s53, 3
      %p531 = scmp.ne.s32.totalorder %s526, %s528
      %p532 = scmp.eq.s32.totalorder %s53, 0
      %p533 = por %p531, %p532
      %p534 = scmp.ne.s32.totalorder %s526, %s528
      %p535 = scmp.eq.s32.totalorder %s58, 3
      %p536 = por %p534, %p535
      %p537 = scmp.ne.s32.totalorder %s528, %s529
      %p538 = scmp.eq.s32.totalorder %s58, 0
      %p539 = por %p537, %p538
      %p540 = scmp.ne.s32.totalorder %s528, %s529
      %p541 = scmp.eq.s32.totalorder %s59, 3
      %p542 = por %p540, %p541
      %p544 = scmp.ne.s32.totalorder %s529, %s543
      %p545 = scmp.eq.s32.totalorder %s59, 0
      %p546 = por %p544, %p545
      %s548 = sadd.s32 %s547, 1
      %p551 = scmp.eq.s32.totalorder %s53, 3
      %p552 = scmp.ne.s32.totalorder %s547, %s549
      %p553 = scmp.eq.s32.totalorder %s53, 0
      %p554 = por %p552, %p553
      %p555 = scmp.ne.s32.totalorder %s547, %s549
      %p556 = scmp.eq.s32.totalorder %s58, 3
      %p557 = por %p555, %p556
      %p558 = scmp.ne.s32.totalorder %s549, %s550
      %p559 = scmp.eq.s32.totalorder %s58, 0
      %p560 = por %p558, %p559
      %p561 = scmp.ne.s32.totalorder %s549, %s550
      %p562 = scmp.eq.s32.totalorder %s59, 3
      %p563 = por %p561, %p562
      %p565 = scmp.ne.s32.totalorder %s550, %s564
      %p566 = scmp.eq.s32.totalorder %s59, 0
      %p567 = por %p565, %p566
      %s569 = sadd.s32 %s568, 1
      %p572 = scmp.eq.s32.totalorder %s53, 3
      %p573 = scmp.ne.s32.totalorder %s568, %s570
      %p574 = scmp.eq.s32.totalorder %s53, 0
      %p575 = por %p573, %p574
      %p576 = scmp.ne.s32.totalorder %s568, %s570
      %p577 = scmp.eq.s32.totalorder %s58, 3
      %p578 = por %p576, %p577
      %p579 = scmp.ne.s32.totalorder %s570, %s571
      %p580 = scmp.eq.s32.totalorder %s58, 0
      %p581 = por %p579, %p580
      %p582 = scmp.ne.s32.totalorder %s570, %s571
      %p583 = scmp.eq.s32.totalorder %s59, 3
      %p584 = por %p582, %p583
      %p586 = scmp.ne.s32.totalorder %s571, %s585
      %p587 = scmp.eq.s32.totalorder %s59, 0
      %p588 = por %p586, %p587
      %s590 = sadd.s32 %s589, 1
      %p593 = scmp.eq.s32.totalorder %s53, 3
      %p594 = scmp.ne.s32.totalorder %s589, %s591
      %p595 = scmp.eq.s32.totalorder %s53, 0
      %p596 = por %p594, %p595
      %p597 = scmp.ne.s32.totalorder %s589, %s591
      %p598 = scmp.eq.s32.totalorder %s58, 3
      %p599 = por %p597, %p598
      %p600 = scmp.ne.s32.totalorder %s591, %s592
      %p601 = scmp.eq.s32.totalorder %s58, 0
      %p602 = por %p600, %p601
      %p603 = scmp.ne.s32.totalorder %s591, %s592
      %p604 = scmp.eq.s32.totalorder %s59, 3
      %p605 = por %p603, %p604
      %p607 = scmp.ne.s32.totalorder %s592, %s606
      %p608 = scmp.eq.s32.totalorder %s59, 0
      %p609 = por %p607, %p608
      %s611 = sadd.s32 %s610, 1
      %p614 = scmp.eq.s32.totalorder %s53, 3
      %p615 = scmp.ne.s32.totalorder %s610, %s612
      %p616 = scmp.eq.s32.totalorder %s53, 0
      %p617 = por %p615, %p616
      %p618 = scmp.ne.s32.totalorder %s610, %s612
      %p619 = scmp.eq.s32.totalorder %s58, 3
      %p620 = por %p618, %p619
      %p621 = scmp.ne.s32.totalorder %s612, %s613
      %p622 = scmp.eq.s32.totalorder %s58, 0
      %p623 = por %p621, %p622
      %p624 = scmp.ne.s32.totalorder %s612, %s613
      %p625 = scmp.eq.s32.totalorder %s59, 3
      %p626 = por %p624, %p625
      %p628 = scmp.ne.s32.totalorder %s613, %s627
      %p629 = scmp.eq.s32.totalorder %s59, 0
      %p630 = por %p628, %p629
      %s632 = sadd.s32 %s631, 1
      %p635 = scmp.eq.s32.totalorder %s53, 3
      %p636 = scmp.ne.s32.totalorder %s631, %s633
      %p637 = scmp.eq.s32.totalorder %s53, 0
      %p638 = por %p636, %p637
      %p639 = scmp.ne.s32.totalorder %s631, %s633
      %p640 = scmp.eq.s32.totalorder %s58, 3
      %p641 = por %p639, %p640
      %p642 = scmp.ne.s32.totalorder %s633, %s634
      %p643 = scmp.eq.s32.totalorder %s58, 0
      %p644 = por %p642, %p643
      %p645 = scmp.ne.s32.totalorder %s633, %s634
      %p646 = scmp.eq.s32.totalorder %s59, 3
      %p647 = por %p645, %p646
      %p649 = scmp.ne.s32.totalorder %s634, %s648
      %p650 = scmp.eq.s32.totalorder %s59, 0
      %p651 = por %p649, %p650
      %p652 = scmp.le.s32.totalorder 1, %s53
      %p653 = scmp.lt.s32.totalorder %s53, 5
      %p654 = pnand %p652, %p653
      %p655 = pneg %p654
      // Predicated region
      $region9: #{nft_mars_forward.1} parent=5 // pred_check
        _
      $region10: #{nft_mars_forward.1} parent=5 // pred_check_branch
        %657 = sbr.rel (%p654) target = $region12
      $region11: #{nft_mars_forward.1} parent=5 // pred_region
        %s658 = ssub.s32 %s53, 1
        // Predicated region
        $region13: #{nft_mars_forward.1} parent=11 // pred_check
          %p659 = pneg %p308
        $region14: #{nft_mars_forward.1} parent=11 // pred_check_branch
          %661 = sbr.rel (%p659) target = $region16
        $region15: #{nft_mars_forward.1} parent=11 // pred_region
          %s663 = ssub.s32 128, 128
          %664 = vsyncadd [#allocation20], %s663
          %s666 = sshll.u32 [#allocation19], 4
          %s667 = int_to_ptr.vmem [resolvable:$true] %s666
          %669 = dma.hbm_to_vmem [thread:$0]  %s9, 128, %s667, [#allocation20]
        $region16: #{nft_mars_forward.1} parent=11 // pred_fallthru
          _
        // Predicated region
        $region17: #{nft_mars_forward.1} parent=11 // pred_check
          %p670 = pneg %p329
        $region18: #{nft_mars_forward.1} parent=11 // pred_check_branch
          %672 = sbr.rel (%p670) target = $region20
        $region19: #{nft_mars_forward.1} parent=11 // pred_region
          %s674 = ssub.s32 256, 256
          %675 = vsyncadd [#allocation20], %s674
          %s676 = sshll.u32 [#allocation21], 4
          %s677 = int_to_ptr.vmem [resolvable:$true] %s676
          %682 = dma.hbm_to_vmem [thread:$0]  %s10, 256, %s677, [#allocation20], 128, 128, 8
        $region20: #{nft_mars_forward.1} parent=11 // pred_fallthru
          _
        // Predicated region
        $region21: #{nft_mars_forward.1} parent=11 // pred_check
          %p683 = pneg %p350
        $region22: #{nft_mars_forward.1} parent=11 // pred_check_branch
          %685 = sbr.rel (%p683) target = $region24
        $region23: #{nft_mars_forward.1} parent=11 // pred_region
          %s687 = ssub.s32 256, 256
          %688 = vsyncadd [#allocation23], %s687
          %s689 = sshll.u32 [#allocation22], 4
          %s690 = int_to_ptr.vmem [resolvable:$true] %s689
          %695 = dma.hbm_to_vmem [thread:$0]  %s11, 256, %s690, [#allocation23], 128, 128, 8
        $region24: #{nft_mars_forward.1} parent=11 // pred_fallthru
          _
        // Predicated region
        $region25: #{nft_mars_forward.1} parent=11 // pred_check
          %p696 = pneg %p371
        $region26: #{nft_mars_forward.1} parent=11 // pred_check_branch
          %698 = sbr.rel (%p696) target = $region28
        $region27: #{nft_mars_forward.1} parent=11 // pred_region
          %s700 = ssub.s32 256, 256
          %701 = vsyncadd [#allocation23], %s700
          %s702 = sshll.u32 [#allocation24], 4
          %s703 = int_to_ptr.vmem [resolvable:$true] %s702
          %708 = dma.hbm_to_vmem [thread:$0]  %s12, 256, %s703, [#allocation23], 128, 128, 8
        $region28: #{nft_mars_forward.1} parent=11 // pred_fallthru
          _
        // Predicated region
        $region29: #{nft_mars_forward.1} parent=11 // pred_check
          %p709 = pneg %p392
        $region30: #{nft_mars_forward.1} parent=11 // pred_check_branch
          %711 = sbr.rel (%p709) target = $region32
        $region31: #{nft_mars_forward.1} parent=11 // pred_region
          _
        $region32: #{nft_mars_forward.1} parent=11 // pred_fallthru
          _
        // Predicated region
        $region33: #{nft_mars_forward.1} parent=11 // pred_check
          %p712 = pneg %p413
        $region34: #{nft_mars_forward.1} parent=11 // pred_check_branch
          %714 = sbr.rel (%p712) target = $region36
        $region35: #{nft_mars_forward.1} parent=11 // pred_region
          _
        $region36: #{nft_mars_forward.1} parent=11 // pred_fallthru
          _
        // Predicated region
        $region37: #{nft_mars_forward.1} parent=11 // pred_check
          %p715 = pneg %p434
        $region38: #{nft_mars_forward.1} parent=11 // pred_check_branch
          %717 = sbr.rel (%p715) target = $region40
        $region39: #{nft_mars_forward.1} parent=11 // pred_region
          _
        $region40: #{nft_mars_forward.1} parent=11 // pred_fallthru
          _
        // Predicated region
        $region41: #{nft_mars_forward.1} parent=11 // pred_check
          %p718 = pneg %p455
        $region42: #{nft_mars_forward.1} parent=11 // pred_check_branch
          %720 = sbr.rel (%p718) target = $region44
        $region43: #{nft_mars_forward.1} parent=11 // pred_region
          %s722 = ssub.s32 256, 256
          %723 = vsyncadd [#allocation26], %s722
          %s724 = sshll.u32 [#allocation25], 4
          %s725 = int_to_ptr.vmem [resolvable:$true] %s724
          %730 = dma.hbm_to_vmem [thread:$0]  %s16, 256, %s725, [#allocation26], 128, 128, 8
        $region44: #{nft_mars_forward.1} parent=11 // pred_fallthru
          _
        // Predicated region
        $region45: #{nft_mars_forward.1} parent=11 // pred_check
          %p731 = pneg %p476
        $region46: #{nft_mars_forward.1} parent=11 // pred_check_branch
          %733 = sbr.rel (%p731) target = $region48
        $region47: #{nft_mars_forward.1} parent=11 // pred_region
          _
        $region48: #{nft_mars_forward.1} parent=11 // pred_fallthru
          _
        // Predicated region
        $region49: #{nft_mars_forward.1} parent=11 // pred_check
          %p734 = pneg %p497
        $region50: #{nft_mars_forward.1} parent=11 // pred_check_branch
          %736 = sbr.rel (%p734) target = $region52
        $region51: #{nft_mars_forward.1} parent=11 // pred_region
          _
        $region52: #{nft_mars_forward.1} parent=11 // pred_fallthru
          _
        // Predicated region
        $region53: #{nft_mars_forward.1} parent=11 // pred_check
          %p737 = pneg %p518
        $region54: #{nft_mars_forward.1} parent=11 // pred_check_branch
          %739 = sbr.rel (%p737) target = $region56
        $region55: #{nft_mars_forward.1} parent=11 // pred_region
          _
        $region56: #{nft_mars_forward.1} parent=11 // pred_fallthru
          _
        // Predicated region
        $region57: #{nft_mars_forward.1} parent=11 // pred_check
          %p740 = pneg %p539
        $region58: #{nft_mars_forward.1} parent=11 // pred_check_branch
          %742 = sbr.rel (%p740) target = $region60
        $region59: #{nft_mars_forward.1} parent=11 // pred_region
          _
        $region60: #{nft_mars_forward.1} parent=11 // pred_fallthru
          _
        // Predicated region
        $region61: #{nft_mars_forward.1} parent=11 // pred_check
          %p743 = pneg %p560
        $region62: #{nft_mars_forward.1} parent=11 // pred_check_branch
          %745 = sbr.rel (%p743) target = $region64
        $region63: #{nft_mars_forward.1} parent=11 // pred_region
          _
        $region64: #{nft_mars_forward.1} parent=11 // pred_fallthru
          _
        // Predicated region
        $region65: #{nft_mars_forward.1} parent=11 // pred_check
          %p746 = pneg %p581
        $region66: #{nft_mars_forward.1} parent=11 // pred_check_branch
          %748 = sbr.rel (%p746) target = $region68
        $region67: #{nft_mars_forward.1} parent=11 // pred_region
          _
        $region68: #{nft_mars_forward.1} parent=11 // pred_fallthru
          _
        // Predicated region
        $region69: #{nft_mars_forward.1} parent=11 // pred_check
          %p749 = pneg %p602
        $region70: #{nft_mars_forward.1} parent=11 // pred_check_branch
          %751 = sbr.rel (%p749) target = $region72
        $region71: #{nft_mars_forward.1} parent=11 // pred_region
          _
        $region72: #{nft_mars_forward.1} parent=11 // pred_fallthru
          _
      $region12: #{nft_mars_forward.1} parent=5 // pred_fallthru
        _
      %p752 = scmp.lt.s32.totalorder %s53, 4
      // Predicated region
      $region73: #{nft_mars_forward.1} parent=5 // pred_check
        %p753 = pneg %p752
      $region74: #{nft_mars_forward.1} parent=5 // pred_check_branch
        %755 = sbr.rel (%p753) target = $region76
      $region75: #{nft_mars_forward.1} parent=5 // pred_region
        // Predicated region
        $region77: #{nft_mars_forward.1} parent=75 // pred_check
          %p756 = pneg %p73
        $region78: #{nft_mars_forward.1} parent=75 // pred_check_branch
          %758 = sbr.rel (%p756) target = $region80
        $region79: #{nft_mars_forward.1} parent=75 // pred_region
          %s759 = sand.u32 %s63, 1
          %s760 = scalar_lea.sflag [#allocation5], %s759
          %s761 = sand.u32 %s63, 1
          %s762 = smul.addr %s761, 16
          %s763 = scalar_lea.vmem [#allocation4], %s762
          %s765 = ssub.s32 256, 256
          %766 = vsyncadd %s760, %s765
          %s767 = smul.addr %s53, 2
          %s768 = smul.addr %s767, 128
          %s769 = scalar_lea.hbm %s0, %s768
          %s770 = sshll.u32 %s763, 4
          %s771 = int_to_ptr.vmem [resolvable:$true] %s770
          %776 = dma.hbm_to_vmem [thread:$0]  %s769, 256, %s771, %s760, 128, 128, 8
        $region80: #{nft_mars_forward.1} parent=75 // pred_fallthru
          _
        // Predicated region
        $region81: #{nft_mars_forward.1} parent=75 // pred_check
          %p777 = pneg %p99
        $region82: #{nft_mars_forward.1} parent=75 // pred_check_branch
          %779 = sbr.rel (%p777) target = $region84
        $region83: #{nft_mars_forward.1} parent=75 // pred_region
          %s780 = sand.u32 %s53, 1
          %s781 = scalar_lea.sflag [#allocation8], %s780
          %s782 = sand.u32 %s89, 1
          %s783 = smul.addr %s782, 16
          %s784 = scalar_lea.vmem [#allocation7], %s783
          %s786 = ssub.s32 256, 256
          %787 = vsyncadd %s781, %s786
          %s788 = smul.addr %s53, 2
          %s789 = smul.addr %s788, 128
          %s790 = scalar_lea.hbm %s1, %s789
          %s791 = sshll.u32 %s784, 4
          %s792 = int_to_ptr.vmem [resolvable:$true] %s791
          %797 = dma.hbm_to_vmem [thread:$0]  %s790, 256, %s792, %s781, 128, 128, 8
        $region84: #{nft_mars_forward.1} parent=75 // pred_fallthru
          _
        // Predicated region
        $region85: #{nft_mars_forward.1} parent=75 // pred_check
          %p798 = pneg %p125
        $region86: #{nft_mars_forward.1} parent=75 // pred_check_branch
          %800 = sbr.rel (%p798) target = $region88
        $region87: #{nft_mars_forward.1} parent=75 // pred_region
          %s801 = sand.u32 %s53, 1
          %s802 = scalar_lea.sflag [#allocation8], %s801
          %s803 = sand.u32 %s115, 1
          %s804 = scalar_lea.vmem [#allocation9], %s803
          %s806 = ssub.s32 16, 16
          %807 = vsyncadd %s802, %s806
          %s808 = smul.addr %s53, 16
          %s809 = scalar_lea.hbm %s2, %s808
          %s811 = sshll.u32 %s804, 4
          %s812 = int_to_ptr.vmem [resolvable:$true] %s811
          %814 = dma.hbm_to_vmem [thread:$0]  %s809, 16, %s812, %s802
        $region88: #{nft_mars_forward.1} parent=75 // pred_fallthru
          _
        // Predicated region
        $region89: #{nft_mars_forward.1} parent=75 // pred_check
          %p815 = pneg %p151
        $region90: #{nft_mars_forward.1} parent=75 // pred_check_branch
          %817 = sbr.rel (%p815) target = $region92
        $region91: #{nft_mars_forward.1} parent=75 // pred_region
          %s818 = sand.u32 %s53, 1
          %s819 = scalar_lea.sflag [#allocation11], %s818
          %s820 = sand.u32 %s141, 1
          %s821 = smul.addr %s820, 16
          %s822 = scalar_lea.vmem [#allocation10], %s821
          %s824 = ssub.s32 256, 256
          %825 = vsyncadd %s819, %s824
          %s826 = smul.addr %s53, 2
          %s827 = smul.addr %s826, 128
          %s828 = scalar_lea.hbm %s3, %s827
          %s829 = sshll.u32 %s822, 4
          %s830 = int_to_ptr.vmem [resolvable:$true] %s829
          %835 = dma.hbm_to_vmem [thread:$0]  %s828, 256, %s830, %s819, 128, 128, 8
        $region92: #{nft_mars_forward.1} parent=75 // pred_fallthru
          _
        // Predicated region
        $region93: #{nft_mars_forward.1} parent=75 // pred_check
          %p836 = pneg %p177
        $region94: #{nft_mars_forward.1} parent=75 // pred_check_branch
          %838 = sbr.rel (%p836) target = $region96
        $region95: #{nft_mars_forward.1} parent=75 // pred_region
          %s839 = sand.u32 %s53, 1
          %s840 = scalar_lea.sflag [#allocation11], %s839
          %s841 = sand.u32 %s167, 1
          %s842 = smul.addr %s841, 16
          %s843 = scalar_lea.vmem [#allocation12], %s842
          %s845 = ssub.s32 256, 256
          %846 = vsyncadd %s840, %s845
          %s847 = smul.addr %s53, 2
          %s848 = smul.addr %s847, 128
          %s849 = scalar_lea.hbm %s4, %s848
          %s850 = sshll.u32 %s843, 4
          %s851 = int_to_ptr.vmem [resolvable:$true] %s850
          %856 = dma.hbm_to_vmem [thread:$0]  %s849, 256, %s851, %s840, 128, 128, 8
        $region96: #{nft_mars_forward.1} parent=75 // pred_fallthru
          _
        // Predicated region
        $region97: #{nft_mars_forward.1} parent=75 // pred_check
          %p857 = pneg %p203
        $region98: #{nft_mars_forward.1} parent=75 // pred_check_branch
          %859 = sbr.rel (%p857) target = $region100
        $region99: #{nft_mars_forward.1} parent=75 // pred_region
          %s860 = sand.u32 %s53, 1
          %s861 = scalar_lea.sflag [#allocation14], %s860
          %s862 = sand.u32 %s193, 1
          %s863 = scalar_lea.vmem [#allocation13], %s862
          %s865 = ssub.s32 16, 16
          %866 = vsyncadd %s861, %s865
          %s867 = smul.addr %s53, 16
          %s868 = scalar_lea.hbm %s5, %s867
          %s870 = sshll.u32 %s863, 4
          %s871 = int_to_ptr.vmem [resolvable:$true] %s870
          %873 = dma.hbm_to_vmem [thread:$0]  %s868, 16, %s871, %s861
        $region100: #{nft_mars_forward.1} parent=75 // pred_fallthru
          _
        // Predicated region
        $region101: #{nft_mars_forward.1} parent=75 // pred_check
          %p874 = pneg %p229
        $region102: #{nft_mars_forward.1} parent=75 // pred_check_branch
          %876 = sbr.rel (%p874) target = $region104
        $region103: #{nft_mars_forward.1} parent=75 // pred_region
          %s877 = sand.u32 %s53, 1
          %s878 = scalar_lea.sflag [#allocation14], %s877
          %s879 = sand.u32 %s219, 1
          %s880 = smul.addr %s879, 16
          %s881 = scalar_lea.vmem [#allocation15], %s880
          %s883 = ssub.s32 256, 256
          %884 = vsyncadd %s878, %s883
          %s885 = smul.addr %s53, 2
          %s886 = smul.addr %s885, 128
          %s887 = scalar_lea.hbm %s6, %s886
          %s888 = sshll.u32 %s881, 4
          %s889 = int_to_ptr.vmem [resolvable:$true] %s888
          %894 = dma.hbm_to_vmem [thread:$0]  %s887, 256, %s889, %s878, 128, 128, 8
        $region104: #{nft_mars_forward.1} parent=75 // pred_fallthru
          _
        // Predicated region
        $region105: #{nft_mars_forward.1} parent=75 // pred_check
          %p895 = pneg %p255
        $region106: #{nft_mars_forward.1} parent=75 // pred_check_branch
          %897 = sbr.rel (%p895) target = $region108
        $region107: #{nft_mars_forward.1} parent=75 // pred_region
          %s898 = sand.u32 %s53, 1
          %s899 = scalar_lea.sflag [#allocation17], %s898
          %s900 = sand.u32 %s245, 1
          %s901 = scalar_lea.vmem [#allocation16], %s900
          %s903 = ssub.s32 16, 16
          %904 = vsyncadd %s899, %s903
          %s905 = smul.addr %s53, 16
          %s906 = scalar_lea.hbm %s7, %s905
          %s908 = sshll.u32 %s901, 4
          %s909 = int_to_ptr.vmem [resolvable:$true] %s908
          %911 = dma.hbm_to_vmem [thread:$0]  %s906, 16, %s909, %s899
        $region108: #{nft_mars_forward.1} parent=75 // pred_fallthru
          _
        // Predicated region
        $region109: #{nft_mars_forward.1} parent=75 // pred_check
          %p912 = pneg %p281
        $region110: #{nft_mars_forward.1} parent=75 // pred_check_branch
          %914 = sbr.rel (%p912) target = $region112
        $region111: #{nft_mars_forward.1} parent=75 // pred_region
          %s915 = sand.u32 %s53, 1
          %s916 = scalar_lea.sflag [#allocation17], %s915
          %s917 = sand.u32 %s271, 1
          %s918 = scalar_lea.vmem [#allocation18], %s917
          %s920 = ssub.s32 16, 16
          %921 = vsyncadd %s916, %s920
          %s922 = smul.addr %s53, 16
          %s923 = scalar_lea.hbm %s8, %s922
          %s925 = sshll.u32 %s918, 4
          %s926 = int_to_ptr.vmem [resolvable:$true] %s925
          %928 = dma.hbm_to_vmem [thread:$0]  %s923, 16, %s926, %s916
        $region112: #{nft_mars_forward.1} parent=75 // pred_fallthru
          _
      $region76: #{nft_mars_forward.1} parent=5 // pred_fallthru
        _
      %p929 = scmp.le.s32.totalorder 1, %s53
      %p930 = scmp.lt.s32.totalorder %s53, 5
      %p931 = pnand %p929, %p930
      %p932 = pneg %p931
      // Predicated region
      $region113: #{nft_mars_forward.1} parent=5 // pred_check
        _
      $region114: #{nft_mars_forward.1} parent=5 // pred_check_branch
        %934 = sbr.rel (%p931) target = $region116
      $region115: #{nft_mars_forward.1} parent=5 // pred_region
        %s935 = ssub.s32 %s53, 1
        %s936 = sand.u32 %s66, 1
        %s937 = scalar_lea.sflag [#allocation5], %s936
        %s938 = sand.u32 %s66, 1
        %s939 = smul.addr %s938, 16
        %s940 = scalar_lea.vmem [#allocation4], %s939
        // Predicated region
        $region117: #{nft_mars_forward.1} parent=115 // pred_check
          %p941 = pneg %p79
        $region118: #{nft_mars_forward.1} parent=115 // pred_check_branch
          %943 = sbr.rel (%p941) target = $region120
        $region119: #{nft_mars_forward.1} parent=115 // pred_region
          %944 = dma.done %s937, 256
        $region120: #{nft_mars_forward.1} parent=115 // pred_fallthru
          _
        %s945 = sand.u32 %s58, 1
        %s946 = scalar_lea.sflag [#allocation8], %s945
        %s947 = sand.u32 %s92, 1
        %s948 = smul.addr %s947, 16
        %s949 = scalar_lea.vmem [#allocation7], %s948
        // Predicated region
        $region121: #{nft_mars_forward.1} parent=115 // pred_check
          %p950 = pneg %p105
        $region122: #{nft_mars_forward.1} parent=115 // pred_check_branch
          %952 = sbr.rel (%p950) target = $region124
        $region123: #{nft_mars_forward.1} parent=115 // pred_region
          %953 = dma.done %s946, 256
        $region124: #{nft_mars_forward.1} parent=115 // pred_fallthru
          _
        %s954 = sand.u32 %s58, 1
        %s955 = scalar_lea.sflag [#allocation8], %s954
        %s956 = sand.u32 %s118, 1
        %s957 = scalar_lea.vmem [#allocation9], %s956
        // Predicated region
        $region125: #{nft_mars_forward.1} parent=115 // pred_check
          %p958 = pneg %p131
        $region126: #{nft_mars_forward.1} parent=115 // pred_check_branch
          %960 = sbr.rel (%p958) target = $region128
        $region127: #{nft_mars_forward.1} parent=115 // pred_region
          %961 = dma.done %s955, 16
        $region128: #{nft_mars_forward.1} parent=115 // pred_fallthru
          _
        %s962 = sand.u32 %s58, 1
        %s963 = scalar_lea.sflag [#allocation11], %s962
        %s964 = sand.u32 %s144, 1
        %s965 = smul.addr %s964, 16
        %s966 = scalar_lea.vmem [#allocation10], %s965
        // Predicated region
        $region129: #{nft_mars_forward.1} parent=115 // pred_check
          %p967 = pneg %p157
        $region130: #{nft_mars_forward.1} parent=115 // pred_check_branch
          %969 = sbr.rel (%p967) target = $region132
        $region131: #{nft_mars_forward.1} parent=115 // pred_region
          %970 = dma.done %s963, 256
        $region132: #{nft_mars_forward.1} parent=115 // pred_fallthru
          _
        %s971 = sand.u32 %s58, 1
        %s972 = scalar_lea.sflag [#allocation11], %s971
        %s973 = sand.u32 %s170, 1
        %s974 = smul.addr %s973, 16
        %s975 = scalar_lea.vmem [#allocation12], %s974
        // Predicated region
        $region133: #{nft_mars_forward.1} parent=115 // pred_check
          %p976 = pneg %p183
        $region134: #{nft_mars_forward.1} parent=115 // pred_check_branch
          %978 = sbr.rel (%p976) target = $region136
        $region135: #{nft_mars_forward.1} parent=115 // pred_region
          %979 = dma.done %s972, 256
        $region136: #{nft_mars_forward.1} parent=115 // pred_fallthru
          _
        %s980 = sand.u32 %s58, 1
        %s981 = scalar_lea.sflag [#allocation14], %s980
        %s982 = sand.u32 %s196, 1
        %s983 = scalar_lea.vmem [#allocation13], %s982
        // Predicated region
        $region137: #{nft_mars_forward.1} parent=115 // pred_check
          %p984 = pneg %p209
        $region138: #{nft_mars_forward.1} parent=115 // pred_check_branch
          %986 = sbr.rel (%p984) target = $region140
        $region139: #{nft_mars_forward.1} parent=115 // pred_region
          %987 = dma.done %s981, 16
        $region140: #{nft_mars_forward.1} parent=115 // pred_fallthru
          _
        %s988 = sand.u32 %s58, 1
        %s989 = scalar_lea.sflag [#allocation14], %s988
        %s990 = sand.u32 %s222, 1
        %s991 = smul.addr %s990, 16
        %s992 = scalar_lea.vmem [#allocation15], %s991
        // Predicated region
        $region141: #{nft_mars_forward.1} parent=115 // pred_check
          %p993 = pneg %p235
        $region142: #{nft_mars_forward.1} parent=115 // pred_check_branch
          %995 = sbr.rel (%p993) target = $region144
        $region143: #{nft_mars_forward.1} parent=115 // pred_region
          %996 = dma.done %s989, 256
        $region144: #{nft_mars_forward.1} parent=115 // pred_fallthru
          _
        %s997 = sand.u32 %s58, 1
        %s998 = scalar_lea.sflag [#allocation17], %s997
        %s999 = sand.u32 %s248, 1
        %s1000 = scalar_lea.vmem [#allocation16], %s999
        // Predicated region
        $region145: #{nft_mars_forward.1} parent=115 // pred_check
          %p1001 = pneg %p261
        $region146: #{nft_mars_forward.1} parent=115 // pred_check_branch
          %1003 = sbr.rel (%p1001) target = $region148
        $region147: #{nft_mars_forward.1} parent=115 // pred_region
          %1004 = dma.done %s998, 16
        $region148: #{nft_mars_forward.1} parent=115 // pred_fallthru
          _
        %s1005 = sand.u32 %s58, 1
        %s1006 = scalar_lea.sflag [#allocation17], %s1005
        %s1007 = sand.u32 %s274, 1
        %s1008 = scalar_lea.vmem [#allocation18], %s1007
        // Predicated region
        $region149: #{nft_mars_forward.1} parent=115 // pred_check
          %p1009 = pneg %p287
        $region150: #{nft_mars_forward.1} parent=115 // pred_check_branch
          %1011 = sbr.rel (%p1009) target = $region152
        $region151: #{nft_mars_forward.1} parent=115 // pred_region
          %1012 = dma.done %s1006, 16
        $region152: #{nft_mars_forward.1} parent=115 // pred_fallthru
          _
        // Predicated region
        $region153: #{nft_mars_forward.1} parent=115 // pred_check
          %p1013 = pneg %p308
        $region154: #{nft_mars_forward.1} parent=115 // pred_check_branch
          %1015 = sbr.rel (%p1013) target = $region156
        $region155: #{nft_mars_forward.1} parent=115 // pred_region
          %1016 = dma.done [#allocation20], 128
        $region156: #{nft_mars_forward.1} parent=115 // pred_fallthru
          _
        // Predicated region
        $region157: #{nft_mars_forward.1} parent=115 // pred_check
          %p1017 = pneg %p329
        $region158: #{nft_mars_forward.1} parent=115 // pred_check_branch
          %1019 = sbr.rel (%p1017) target = $region160
        $region159: #{nft_mars_forward.1} parent=115 // pred_region
          %1020 = dma.done [#allocation20], 256
        $region160: #{nft_mars_forward.1} parent=115 // pred_fallthru
          _
        // Predicated region
        $region161: #{nft_mars_forward.1} parent=115 // pred_check
          %p1021 = pneg %p350
        $region162: #{nft_mars_forward.1} parent=115 // pred_check_branch
          %1023 = sbr.rel (%p1021) target = $region164
        $region163: #{nft_mars_forward.1} parent=115 // pred_region
          %1024 = dma.done [#allocation23], 256
        $region164: #{nft_mars_forward.1} parent=115 // pred_fallthru
          _
        // Predicated region
        $region165: #{nft_mars_forward.1} parent=115 // pred_check
          %p1025 = pneg %p371
        $region166: #{nft_mars_forward.1} parent=115 // pred_check_branch
          %1027 = sbr.rel (%p1025) target = $region168
        $region167: #{nft_mars_forward.1} parent=115 // pred_region
          %1028 = dma.done [#allocation23], 256
        $region168: #{nft_mars_forward.1} parent=115 // pred_fallthru
          _
        // Predicated region
        $region169: #{nft_mars_forward.1} parent=115 // pred_check
          %p1029 = pneg %p455
        $region170: #{nft_mars_forward.1} parent=115 // pred_check_branch
          %1031 = sbr.rel (%p1029) target = $region172
        $region171: #{nft_mars_forward.1} parent=115 // pred_region
          %1032 = dma.done [#allocation26], 256
        $region172: #{nft_mars_forward.1} parent=115 // pred_fallthru
          _
        %s1033 = sand.u32 %s66, 1
        %s1034 = scalar_lea.sflag [#allocation5], %s1033
        %s1035 = sand.u32 %s66, 1
        %s1036 = smul.addr %s1035, 16
        %s1037 = scalar_lea.vmem [#allocation4], %s1036
        %p1038 = pneg %p79
        %p1039 = pneg %p76
        %s1040 = sand.u32 %s58, 1
        %s1041 = scalar_lea.sflag [#allocation8], %s1040
        %s1042 = sand.u32 %s92, 1
        %s1043 = smul.addr %s1042, 16
        %s1044 = scalar_lea.vmem [#allocation7], %s1043
        %p1045 = pneg %p105
        %p1046 = pneg %p102
        %s1047 = sand.u32 %s58, 1
        %s1048 = scalar_lea.sflag [#allocation8], %s1047
        %s1049 = sand.u32 %s118, 1
        %s1050 = scalar_lea.vmem [#allocation9], %s1049
        %p1051 = pneg %p131
        %p1052 = pneg %p128
        %s1053 = sand.u32 %s58, 1
        %s1054 = scalar_lea.sflag [#allocation11], %s1053
        %s1055 = sand.u32 %s144, 1
        %s1056 = smul.addr %s1055, 16
        %s1057 = scalar_lea.vmem [#allocation10], %s1056
        %p1058 = pneg %p157
        %p1059 = pneg %p154
        %s1060 = sand.u32 %s58, 1
        %s1061 = scalar_lea.sflag [#allocation11], %s1060
        %s1062 = sand.u32 %s170, 1
        %s1063 = smul.addr %s1062, 16
        %s1064 = scalar_lea.vmem [#allocation12], %s1063
        %p1065 = pneg %p183
        %p1066 = pneg %p180
        %s1067 = sand.u32 %s58, 1
        %s1068 = scalar_lea.sflag [#allocation14], %s1067
        %s1069 = sand.u32 %s196, 1
        %s1070 = scalar_lea.vmem [#allocation13], %s1069
        %p1071 = pneg %p209
        %p1072 = pneg %p206
        %s1073 = sand.u32 %s58, 1
        %s1074 = scalar_lea.sflag [#allocation14], %s1073
        %s1075 = sand.u32 %s222, 1
        %s1076 = smul.addr %s1075, 16
        %s1077 = scalar_lea.vmem [#allocation15], %s1076
        %p1078 = pneg %p235
        %p1079 = pneg %p232
        %s1080 = sand.u32 %s58, 1
        %s1081 = scalar_lea.sflag [#allocation17], %s1080
        %s1082 = sand.u32 %s248, 1
        %s1083 = scalar_lea.vmem [#allocation16], %s1082
        %p1084 = pneg %p261
        %p1085 = pneg %p258
        %s1086 = sand.u32 %s58, 1
        %s1087 = scalar_lea.sflag [#allocation17], %s1086
        %s1088 = sand.u32 %s274, 1
        %s1089 = scalar_lea.vmem [#allocation18], %s1088
        %p1090 = pneg %p287
        %p1091 = pneg %p284
        %p1092 = pneg %p308
        %p1093 = pneg %p305
        %p1094 = pneg %p329
        %p1095 = pneg %p326
        %p1096 = pneg %p350
        %p1097 = pneg %p347
        %p1098 = pneg %p371
        %p1099 = pneg %p368
        %p1100 = pneg %p392
        %p1101 = pneg %p389
        %p1102 = pneg %p413
        %p1103 = pneg %p410
        %p1104 = pneg %p434
        %p1105 = pneg %p431
        %p1106 = pneg %p455
        %p1107 = pneg %p452
        %p1108 = pneg %p476
        %p1109 = pneg %p473
        %p1110 = pneg %p497
        %p1111 = pneg %p494
        %p1112 = pneg %p518
        %p1113 = pneg %p515
        %p1114 = pneg %p539
        %p1115 = pneg %p536
        %p1116 = pneg %p560
        %p1117 = pneg %p557
        %p1118 = pneg %p581
        %p1119 = pneg %p578
        %p1120 = pneg %p602
        %p1121 = pneg %p599
        %p1122 = pneg %p623
        %p1123 = pneg %p620
        %p1124 = pneg %p644
        %p1125 = pneg %p641
        %p1126 = scmp.eq.s32.totalorder %s58, 0
        // Predicated region
        $region173: #{nft_mars_forward.1} parent=115 // pred_check
          %p1127 = pneg %p1126
        $region174: #{nft_mars_forward.1} parent=115 // pred_check_branch
          %1129 = sbr.rel (%p1127) target = $region176
        $region175: #{nft_mars_forward.1} parent=115 // pred_region
          %vm1130 = vcmask 130048
          %1131 = vst.msk [vmem:[#allocation27] sm:$0xff] %vm1130, 0.0
          %1132 = vst.msk [vmem:[#allocation27 + $0x8] sm:$0xff] %vm1130, 0.0
          %vm1133 = vcmask 19456
          %1134 = vst.msk [vmem:[%s25] sm:$0xf] %vm1133, 0.0
          %vm1135 = vcmask 125952
          %1136 = vst.msk [vmem:[#allocation2] sm:$0xf] %vm1135, 0.0
        $region176: #{nft_mars_forward.1} parent=115 // pred_fallthru
          _
        %v1137 = vld [vmem:[#allocation19] sm:$0x3f]
        %v1138 = vld [vmem:[%s949] sm:$0xff]
        %v1139 = vld [vmem:[%s949 + $0x8] sm:$0x3f]
        %v1140 = vld [vmem:[%s957] sm:$0x1]
        %v1142 = vlaneseq
        %v1143 = vshrl.u32 %v1142, 7
        %v1144 = vsub.s32 0, %v1143
        %v1145 = vrot.slane %v1140, %v1144
        %vm1147 = vcmask 113664
        %v1149 = vsel %vm1147, %v1137, 0
        %vm1151 = vcmask 1045504
        %v1153 = vsel %vm1151, %v1139, 0
        %1155 = vmatprep.subr.mxu0 0.0
        %1156 = vmatpush1.msra.mxu0 %v1138
        %1157 = vmatprep.subr.mxu0 0.0
        %1158 = vmatpush1.msra.mxu0 %v1153
        %1159 = vmatprep.subr.mxu0 0.0
        %1160 = vmatpush1.msra.mxu0 0.0
        %1161 = vmatprep.subr.mxu0 0.0
        %1162 = vmatpush1.msra.mxu0 0.0
        %1163 = vmatprep.subr.mxu0 0.0
        %1164 = vmatpush1.msra.mxu0 0.0
        %1165 = vmatprep.subr.mxu0 0.0
        %1166 = vmatpush1.msra.mxu0 0.0
        %1167 = vmatprep.subr.mxu0 0.0
        %1168 = vmatpush1.msra.mxu0 0.0
        %1169 = vmatprep.subr.mxu0 0.0
        %1170 = vmatpush1.msra.mxu0 0.0
        %1171 = vmatprep.subr.mxu0 0.0
        %1172 = vmatpush1.msra.mxu0 0.0
        %1173 = vmatprep.subr.mxu0 0.0
        %1174 = vmatpush1.msra.mxu0 0.0
        %1175 = vmatprep.subr.mxu0 0.0
        %1176 = vmatpush1.msra.mxu0 0.0
        %1177 = vmatprep.subr.mxu0 0.0
        %1178 = vmatpush1.msra.mxu0 0.0
        %1179 = vmatprep.subr.mxu0 0.0
        %1180 = vmatpush1.msra.mxu0 0.0
        %1181 = vmatprep.subr.mxu0 0.0
        %1182 = vmatpush1.msra.mxu0 0.0
        %1183 = vmatprep.subr.mxu0 0.0
        %1184 = vmatpush1.msra.mxu0 0.0
        %1185 = vmatprep.subr.mxu0 0.0
        %1186 = vmatpush1.msra.mxu0 0.0
        %1187 = vmatprep.subr.mxu0 0.0
        %1188 = vmatpush1.msra.mxu0 0.0
        %1189 = vmatprep.subr.mxu0 0.0
        %1190 = vmatpush1.msra.mxu0 0.0
        %1191 = vmatprep.subr.mxu0 0.0
        %1192 = vmatpush1.msra.mxu0 0.0
        %1193 = vmatprep.subr.mxu0 0.0
        %1194 = vmatpush1.msra.mxu0 0.0
        %1195 = vmatprep.subr.mxu0 0.0
        %1196 = vmatpush1.msra.mxu0 0.0
        %1197 = vmatprep.subr.mxu0 0.0
        %1198 = vmatpush1.msra.mxu0 0.0
        %1199 = vmatprep.subr.mxu0 0.0
        %1200 = vmatpush1.msra.mxu0 0.0
        %1201 = vmatprep.subr.mxu0 0.0
        %1202 = vmatpush1.msra.mxu0 0.0
        %1203 = vmatprep.subr.mxu0 0.0
        %1204 = vmatpush1.msra.mxu0 0.0
        %1205 = vmatprep.subr.mxu0 0.0
        %1206 = vmatpush1.msra.mxu0 0.0
        %1207 = vmatprep.subr.mxu0 0.0
        %1208 = vmatpush1.msra.mxu0 0.0
        %1209 = vmatprep.subr.mxu0 0.0
        %1210 = vmatpush1.msra.mxu0 0.0
        %1211 = vmatprep.subr.mxu0 0.0
        %1212 = vmatpush1.msra.mxu0 0.0
        %1213 = vmatprep.subr.mxu0 0.0
        %1214 = vmatpush1.msra.mxu0 0.0
        %1215 = vmatprep.subr.mxu0 0.0
        %1216 = vmatpush1.msra.mxu0 0.0
        %1217 = vmatprep.subr.mxu0 0.0
        %1218 = vmatpush1.msra.mxu0 0.0
        %1219 = vmatprep.mubr.f32.mxu0 0.0
        %1220 = vmatmul.mubr.f32.gmra.mrb[0].mxu0 %v1149
        %v1221 = vpop.f32.mrb[0].mxu0
        %v1222 = vadd.f32 %v1145, %v1221
        %v1223 = vpop.f32.mrb[0].mxu0
        %1224 = vdwg.mxu0
        %v1225 = vtanh.pop %v1222
        %v1226 = vld [vmem:[%s940] sm:$0xff]
        %v1227 = vld [vmem:[%s940 + $0x8] sm:$0xff]
        %v1228 = vld [vmem:[#allocation21] sm:$0xff]
        %v1229 = vld [vmem:[#allocation21 + $0x8] sm:$0xff]
        %vm1230 = vcmask 48128
        %v1232 = vsel %vm1230, %v1228, 0
        %v1235 = vsel %vm1230, %v1229, 0
        %v1238 = vsel %vm1151, %v1225, 0
        %1240 = vmatprep.subr.mxu0 0.0
        %1241 = vmatpush1.msra.mxu0 %v1238
        %1242 = vmatprep.subr.mxu0 0.0
        %1243 = vmatpush1.msra.mxu0 0.0
        %1244 = vmatprep.subr.mxu0 0.0
        %1245 = vmatpush1.msra.mxu0 0.0
        %1246 = vmatprep.subr.mxu0 0.0
        %1247 = vmatpush1.msra.mxu0 0.0
        %1248 = vmatprep.subr.mxu0 0.0
        %1249 = vmatpush1.msra.mxu0 0.0
        %1250 = vmatprep.subr.mxu0 0.0
        %1251 = vmatpush1.msra.mxu0 0.0
        %1252 = vmatprep.subr.mxu0 0.0
        %1253 = vmatpush1.msra.mxu0 0.0
        %1254 = vmatprep.subr.mxu0 0.0
        %1255 = vmatpush1.msra.mxu0 0.0
        %1256 = vmatprep.subr.mxu0 0.0
        %1257 = vmatpush1.msra.mxu0 0.0
        %1258 = vmatprep.subr.mxu0 0.0
        %1259 = vmatpush1.msra.mxu0 0.0
        %1260 = vmatprep.subr.mxu0 0.0
        %1261 = vmatpush1.msra.mxu0 0.0
        %1262 = vmatprep.subr.mxu0 0.0
        %1263 = vmatpush1.msra.mxu0 0.0
        %1264 = vmatprep.subr.mxu0 0.0
        %1265 = vmatpush1.msra.mxu0 0.0
        %1266 = vmatprep.subr.mxu0 0.0
        %1267 = vmatpush1.msra.mxu0 0.0
        %1268 = vmatprep.subr.mxu0 0.0
        %1269 = vmatpush1.msra.mxu0 0.0
        %1270 = vmatprep.subr.mxu0 0.0
        %1271 = vmatpush1.msra.mxu0 0.0
        %1272 = vmatprep.subr.mxu0 0.0
        %1273 = vmatpush1.msra.mxu0 0.0
        %1274 = vmatprep.subr.mxu0 0.0
        %1275 = vmatpush1.msra.mxu0 0.0
        %1276 = vmatprep.subr.mxu0 0.0
        %1277 = vmatpush1.msra.mxu0 0.0
        %1278 = vmatprep.subr.mxu0 0.0
        %1279 = vmatpush1.msra.mxu0 0.0
        %1280 = vmatprep.subr.mxu0 0.0
        %1281 = vmatpush1.msra.mxu0 0.0
        %1282 = vmatprep.subr.mxu0 0.0
        %1283 = vmatpush1.msra.mxu0 0.0
        %1284 = vmatprep.subr.mxu0 0.0
        %1285 = vmatpush1.msra.mxu0 0.0
        %1286 = vmatprep.subr.mxu0 0.0
        %1287 = vmatpush1.msra.mxu0 0.0
        %1288 = vmatprep.subr.mxu0 0.0
        %1289 = vmatpush1.msra.mxu0 0.0
        %1290 = vmatprep.subr.mxu0 0.0
        %1291 = vmatpush1.msra.mxu0 0.0
        %1292 = vmatprep.subr.mxu0 0.0
        %1293 = vmatpush1.msra.mxu0 0.0
        %1294 = vmatprep.subr.mxu0 0.0
        %1295 = vmatpush1.msra.mxu0 0.0
        %1296 = vmatprep.subr.mxu0 0.0
        %1297 = vmatpush1.msra.mxu0 0.0
        %1298 = vmatprep.subr.mxu0 0.0
        %1299 = vmatpush1.msra.mxu0 0.0
        %1300 = vmatprep.subr.mxu0 0.0
        %1301 = vmatpush1.msra.mxu0 0.0
        %1302 = vmatprep.subr.mxu0 0.0
        %1303 = vmatpush1.msra.mxu0 0.0
        %1304 = vmatprep.mubr.f32.mxu0 0.0
        %1305 = vmatmul.mubr.f32.gmra.mrb[0].mxu0 %v1232
        %v1306 = vpop.f32.mrb[0].mxu0
        %v1307 = vadd.f32 0.0, %v1306
        %v1308 = vpop.f32.mrb[0].mxu0
        %1309 = vmatprep.mubr.f32.mxu0 0.0
        %1310 = vmatmul.mubr.f32.gmra.mrb[0].mxu0 %v1235
        %v1311 = vpop.f32.mrb[0].mxu0
        %v1312 = vadd.f32 0.0, %v1311
        %v1313 = vpop.f32.mrb[0].mxu0
        %1314 = vdwg.mxu0
        %v1315 = vadd.f32 %v1226, %v1307
        %v1316 = vadd.f32 %v1227, %v1312
        %v1317 = vmul.f32 %v1315, %v1315
        %v1318 = vmul.f32 %v1316, %v1316
        %vm1319 = vcmask 130048
        %v1320 = vsel %vm1319, %v1317, 0.0
        %1321 = vadd.xlane.f32.xlu0 %v1320
        %v1322 = vpop.xlane.xlu0 %1321
        %v1323 = vsel %vm1319, %v1318, 0.0
        %1324 = vadd.xlane.f32.xlu0 %v1323
        %v1325 = vpop.xlane.xlu0 %1324
        %v1326 = vmax.f32 %v1322, 1e-24
        %v1327 = vmax.f32 %v1325, 1e-24
        %v1328 = vrsqrt.pop %v1326
        %v1329 = vrsqrt.pop %v1327
        %v1330 = vmul.f32 %v1315, %v1328
        %v1331 = vmul.f32 %v1316, %v1329
        %v1332 = vld [vmem:[%s966] sm:$0xff]
        %v1333 = vld [vmem:[%s966 + $0x8] sm:$0xff]
        %v1335 = vsel %vm1319, %v1330, 0
        %v1338 = vsel %vm1319, %v1331, 0
        %1340 = vmatprep.subr.mxu0 0.0
        %1341 = vmatpush1.msra.mxu0 %v1332
        %1342 = vmatprep.subr.mxu0 0.0
        %1343 = vmatpush1.msra.mxu0 %v1333
        %1344 = vmatprep.subr.mxu0 0.0
        %1345 = vmatpush1.msra.mxu0 0.0
        %1346 = vmatprep.subr.mxu0 0.0
        %1347 = vmatpush1.msra.mxu0 0.0
        %1348 = vmatprep.subr.mxu0 0.0
        %1349 = vmatpush1.msra.mxu0 0.0
        %1350 = vmatprep.subr.mxu0 0.0
        %1351 = vmatpush1.msra.mxu0 0.0
        %1352 = vmatprep.subr.mxu0 0.0
        %1353 = vmatpush1.msra.mxu0 0.0
        %1354 = vmatprep.subr.mxu0 0.0
        %1355 = vmatpush1.msra.mxu0 0.0
        %1356 = vmatprep.subr.mxu0 0.0
        %1357 = vmatpush1.msra.mxu0 0.0
        %1358 = vmatprep.subr.mxu0 0.0
        %1359 = vmatpush1.msra.mxu0 0.0
        %1360 = vmatprep.subr.mxu0 0.0
        %1361 = vmatpush1.msra.mxu0 0.0
        %1362 = vmatprep.subr.mxu0 0.0
        %1363 = vmatpush1.msra.mxu0 0.0
        %1364 = vmatprep.subr.mxu0 0.0
        %1365 = vmatpush1.msra.mxu0 0.0
        %1366 = vmatprep.subr.mxu0 0.0
        %1367 = vmatpush1.msra.mxu0 0.0
        %1368 = vmatprep.subr.mxu0 0.0
        %1369 = vmatpush1.msra.mxu0 0.0
        %1370 = vmatprep.subr.mxu0 0.0
        %1371 = vmatpush1.msra.mxu0 0.0
        %1372 = vmatprep.subr.mxu0 0.0
        %1373 = vmatpush1.msra.mxu0 0.0
        %1374 = vmatprep.subr.mxu0 0.0
        %1375 = vmatpush1.msra.mxu0 0.0
        %1376 = vmatprep.subr.mxu0 0.0
        %1377 = vmatpush1.msra.mxu0 0.0
        %1378 = vmatprep.subr.mxu0 0.0
        %1379 = vmatpush1.msra.mxu0 0.0
        %1380 = vmatprep.subr.mxu0 0.0
        %1381 = vmatpush1.msra.mxu0 0.0
        %1382 = vmatprep.subr.mxu0 0.0
        %1383 = vmatpush1.msra.mxu0 0.0
        %1384 = vmatprep.subr.mxu0 0.0
        %1385 = vmatpush1.msra.mxu0 0.0
        %1386 = vmatprep.subr.mxu0 0.0
        %1387 = vmatpush1.msra.mxu0 0.0
        %1388 = vmatprep.subr.mxu0 0.0
        %1389 = vmatpush1.msra.mxu0 0.0
        %1390 = vmatprep.subr.mxu0 0.0
        %1391 = vmatpush1.msra.mxu0 0.0
        %1392 = vmatprep.subr.mxu0 0.0
        %1393 = vmatpush1.msra.mxu0 0.0
        %1394 = vmatprep.subr.mxu0 0.0
        %1395 = vmatpush1.msra.mxu0 0.0
        %1396 = vmatprep.subr.mxu0 0.0
        %1397 = vmatpush1.msra.mxu0 0.0
        %1398 = vmatprep.subr.mxu0 0.0
        %1399 = vmatpush1.msra.mxu0 0.0
        %1400 = vmatprep.subr.mxu0 0.0
        %1401 = vmatpush1.msra.mxu0 0.0
        %1402 = vmatprep.subr.mxu0 0.0
        %1403 = vmatpush1.msra.mxu0 0.0
        %1404 = vmatprep.mubr.f32.mxu0 0.0
        %1405 = vmatmul.mubr.f32.gmra.mrb[0].mxu0 %v1335
        %v1406 = vpop.f32.mrb[0].mxu0
        %v1407 = vadd.f32 0.0, %v1406
        %v1408 = vpop.f32.mrb[0].mxu0
        %1409 = vmatprep.mubr.f32.mxu0 0.0
        %1410 = vmatmul.mubr.f32.gmra.mrb[0].mxu0 %v1338
        %v1411 = vpop.f32.mrb[0].mxu0
        %v1412 = vadd.f32 0.0, %v1411
        %v1413 = vpop.f32.mrb[0].mxu0
        %1414 = vdwg.mxu0
        %v1416 = vsel %vm1319, %v1407, 0
        %v1419 = vsel %vm1319, %v1412, 0
        %1421 = vmatprep.subr.mxu0 0.0
        %1422 = vmatpush1.xpose.msra.mxu0 %v1416
        %1423 = vmatprep.subr.mxu0 0.0
        %1424 = vmatpush1.xpose.msra.mxu0 %v1419
        %1425 = vmatprep.subr.mxu0 0.0
        %1426 = vmatpush1.xpose.msra.mxu0 0.0
        %1427 = vmatprep.subr.mxu0 0.0
        %1428 = vmatpush1.xpose.msra.mxu0 0.0
        %1429 = vmatprep.subr.mxu0 0.0
        %1430 = vmatpush1.xpose.msra.mxu0 0.0
        %1431 = vmatprep.subr.mxu0 0.0
        %1432 = vmatpush1.xpose.msra.mxu0 0.0
        %1433 = vmatprep.subr.mxu0 0.0
        %1434 = vmatpush1.xpose.msra.mxu0 0.0
        %1435 = vmatprep.subr.mxu0 0.0
        %1436 = vmatpush1.xpose.msra.mxu0 0.0
        %1437 = vmatprep.subr.mxu0 0.0
        %1438 = vmatpush1.xpose.msra.mxu0 0.0
        %1439 = vmatprep.subr.mxu0 0.0
        %1440 = vmatpush1.xpose.msra.mxu0 0.0
        %1441 = vmatprep.subr.mxu0 0.0
        %1442 = vmatpush1.xpose.msra.mxu0 0.0
        %1443 = vmatprep.subr.mxu0 0.0
        %1444 = vmatpush1.xpose.msra.mxu0 0.0
        %1445 = vmatprep.subr.mxu0 0.0
        %1446 = vmatpush1.xpose.msra.mxu0 0.0
        %1447 = vmatprep.subr.mxu0 0.0
        %1448 = vmatpush1.xpose.msra.mxu0 0.0
        %1449 = vmatprep.subr.mxu0 0.0
        %1450 = vmatpush1.xpose.msra.mxu0 0.0
        %1451 = vmatprep.subr.mxu0 0.0
        %1452 = vmatpush1.xpose.msra.mxu0 0.0
        %1453 = vmatprep.subr.mxu0 0.0
        %1454 = vmatpush1.xpose.msra.mxu0 0.0
        %1455 = vmatprep.subr.mxu0 0.0
        %1456 = vmatpush1.xpose.msra.mxu0 0.0
        %1457 = vmatprep.subr.mxu0 0.0
        %1458 = vmatpush1.xpose.msra.mxu0 0.0
        %1459 = vmatprep.subr.mxu0 0.0
        %1460 = vmatpush1.xpose.msra.mxu0 0.0
        %1461 = vmatprep.subr.mxu0 0.0
        %1462 = vmatpush1.xpose.msra.mxu0 0.0
        %1463 = vmatprep.subr.mxu0 0.0
        %1464 = vmatpush1.xpose.msra.mxu0 0.0
        %1465 = vmatprep.subr.mxu0 0.0
        %1466 = vmatpush1.xpose.msra.mxu0 0.0
        %1467 = vmatprep.subr.mxu0 0.0
        %1468 = vmatpush1.xpose.msra.mxu0 0.0
        %1469 = vmatprep.subr.mxu0 0.0
        %1470 = vmatpush1.xpose.msra.mxu0 0.0
        %1471 = vmatprep.subr.mxu0 0.0
        %1472 = vmatpush1.xpose.msra.mxu0 0.0
        %1473 = vmatprep.subr.mxu0 0.0
        %1474 = vmatpush1.xpose.msra.mxu0 0.0
        %1475 = vmatprep.subr.mxu0 0.0
        %1476 = vmatpush1.xpose.msra.mxu0 0.0
        %1477 = vmatprep.subr.mxu0 0.0
        %1478 = vmatpush1.xpose.msra.mxu0 0.0
        %1479 = vmatprep.subr.mxu0 0.0
        %1480 = vmatpush1.xpose.msra.mxu0 0.0
        %1481 = vmatprep.subr.mxu0 0.0
        %1482 = vmatpush1.xpose.msra.mxu0 0.0
        %1483 = vmatprep.subr.mxu0 0.0
        %1484 = vmatpush1.xpose.msra.mxu0 0.0
        %1485 = vmatprep.mubr.f32.mxu0 0.0
        %1486 = vmatmul.mubr.f32.gmra.mrb[0].mxu0 %v1416
        %v1487 = vpop.f32.mrb[0].mxu0
        %v1488 = vadd.f32 0.0, %v1487
        %v1489 = vpop.f32.mrb[0].mxu0
        %1490 = vmatprep.mubr.f32.mxu0 0.0
        %1491 = vmatmul.mubr.f32.gmra.mrb[0].mxu0 %v1419
        %v1492 = vpop.f32.mrb[0].mxu0
        %v1493 = vadd.f32 0.0, %v1492
        %v1494 = vpop.f32.mrb[0].mxu0
        %1495 = vdwg.mxu0
        %v1496 = vld [vmem:[%s1008] sm:$0x1]
        %v1498 = vlaneseq
        %v1499 = vshrl.u32 %v1498, 7
        %v1500 = vsub.s32 0, %v1499
        %v1501 = vrot.slane %v1496, %v1500
        %1502 = vset.pattern.permute.xlu0 0
        %1503 = vperm.xlu0 %1502, %v1501
        %v1504 = vpop.permute.xlu0 %1503
        %v1506 = vmul.f32 %v1488, %v1504
        %v1507 = vmul.f32 %v1493, %v1504
        %v1508 = vld [vmem:[#allocation22] sm:$0xff]
        %v1509 = vld [vmem:[#allocation22 + $0x8] sm:$0xff]
        %v1510 = vadd.f32 %v1506, %v1508
        %v1511 = vadd.f32 %v1507, %v1509
        %v1512 = vsel %vm1319, %v1510, -inf
        %1513 = vmax.xlane.f32.xlu0 %v1512
        %v1514 = vpop.xlane.xlu0 %1513
        %v1515 = vsel %vm1319, %v1511, -inf
        %1516 = vmax.xlane.f32.xlu0 %v1515
        %v1517 = vpop.xlane.xlu0 %1516
        %v1518 = vsub.f32 %v1510, %v1514
        %v1519 = vsub.f32 %v1511, %v1517
        %v1520 = vmul.f32 %v1518, 1.442695
        %v1521 = vpow.pop %v1520
        %v1522 = vmul.f32 %v1519, 1.442695
        %v1523 = vpow.pop %v1522
        %v1524 = vsel %vm1319, %v1521, 0.0
        %1525 = vadd.xlane.f32.xlu0 %v1524
        %v1526 = vpop.xlane.xlu0 %1525
        %v1527 = vsel %vm1319, %v1523, 0.0
        %1528 = vadd.xlane.f32.xlu0 %v1527
        %v1529 = vpop.xlane.xlu0 %1528
        %v1530 = vrcp.pop %v1526
        %v1531 = vrcp.pop %v1529
        %v1532 = vmul.f32 %v1521, %v1530
        %v1533 = vmul.f32 %v1523, %v1531
        %v1535 = vsel %vm1319, %v1532, 0
        %v1538 = vsel %vm1319, %v1533, 0
        %1540 = vmatprep.subr.mxu0 0.0
        %1541 = vmatpush1.msra.mxu0 %v1407
        %1542 = vmatprep.subr.mxu0 0.0
        %1543 = vmatpush1.msra.mxu0 %v1412
        %1544 = vmatprep.subr.mxu0 0.0
        %1545 = vmatpush1.msra.mxu0 0.0
        %1546 = vmatprep.subr.mxu0 0.0
        %1547 = vmatpush1.msra.mxu0 0.0
        %1548 = vmatprep.subr.mxu0 0.0
        %1549 = vmatpush1.msra.mxu0 0.0
        %1550 = vmatprep.subr.mxu0 0.0
        %1551 = vmatpush1.msra.mxu0 0.0
        %1552 = vmatprep.subr.mxu0 0.0
        %1553 = vmatpush1.msra.mxu0 0.0
        %1554 = vmatprep.subr.mxu0 0.0
        %1555 = vmatpush1.msra.mxu0 0.0
        %1556 = vmatprep.subr.mxu0 0.0
        %1557 = vmatpush1.msra.mxu0 0.0
        %1558 = vmatprep.subr.mxu0 0.0
        %1559 = vmatpush1.msra.mxu0 0.0
        %1560 = vmatprep.subr.mxu0 0.0
        %1561 = vmatpush1.msra.mxu0 0.0
        %1562 = vmatprep.subr.mxu0 0.0
        %1563 = vmatpush1.msra.mxu0 0.0
        %1564 = vmatprep.subr.mxu0 0.0
        %1565 = vmatpush1.msra.mxu0 0.0
        %1566 = vmatprep.subr.mxu0 0.0
        %1567 = vmatpush1.msra.mxu0 0.0
        %1568 = vmatprep.subr.mxu0 0.0
        %1569 = vmatpush1.msra.mxu0 0.0
        %1570 = vmatprep.subr.mxu0 0.0
        %1571 = vmatpush1.msra.mxu0 0.0
        %1572 = vmatprep.subr.mxu0 0.0
        %1573 = vmatpush1.msra.mxu0 0.0
        %1574 = vmatprep.subr.mxu0 0.0
        %1575 = vmatpush1.msra.mxu0 0.0
        %1576 = vmatprep.subr.mxu0 0.0
        %1577 = vmatpush1.msra.mxu0 0.0
        %1578 = vmatprep.subr.mxu0 0.0
        %1579 = vmatpush1.msra.mxu0 0.0
        %1580 = vmatprep.subr.mxu0 0.0
        %1581 = vmatpush1.msra.mxu0 0.0
        %1582 = vmatprep.subr.mxu0 0.0
        %1583 = vmatpush1.msra.mxu0 0.0
        %1584 = vmatprep.subr.mxu0 0.0
        %1585 = vmatpush1.msra.mxu0 0.0
        %1586 = vmatprep.subr.mxu0 0.0
        %1587 = vmatpush1.msra.mxu0 0.0
        %1588 = vmatprep.subr.mxu0 0.0
        %1589 = vmatpush1.msra.mxu0 0.0
        %1590 = vmatprep.subr.mxu0 0.0
        %1591 = vmatpush1.msra.mxu0 0.0
        %1592 = vmatprep.subr.mxu0 0.0
        %1593 = vmatpush1.msra.mxu0 0.0
        %1594 = vmatprep.subr.mxu0 0.0
        %1595 = vmatpush1.msra.mxu0 0.0
        %1596 = vmatprep.subr.mxu0 0.0
        %1597 = vmatpush1.msra.mxu0 0.0
        %1598 = vmatprep.subr.mxu0 0.0
        %1599 = vmatpush1.msra.mxu0 0.0
        %1600 = vmatprep.subr.mxu0 0.0
        %1601 = vmatpush1.msra.mxu0 0.0
        %1602 = vmatprep.subr.mxu0 0.0
        %1603 = vmatpush1.msra.mxu0 0.0
        %1604 = vmatprep.mubr.f32.mxu0 0.0
        %1605 = vmatmul.mubr.f32.gmra.mrb[0].mxu0 %v1535
        %v1606 = vpop.f32.mrb[0].mxu0
        %v1607 = vadd.f32 0.0, %v1606
        %v1608 = vpop.f32.mrb[0].mxu0
        %1609 = vmatprep.mubr.f32.mxu0 0.0
        %1610 = vmatmul.mubr.f32.gmra.mrb[0].mxu0 %v1538
        %v1611 = vpop.f32.mrb[0].mxu0
        %v1612 = vadd.f32 0.0, %v1611
        %v1613 = vpop.f32.mrb[0].mxu0
        %1614 = vdwg.mxu0
        %vm1615 = vcmp.ge.f32.partialorder %v1607, 0.0
        %vm1616 = vcmp.ge.f32.partialorder %v1612, 0.0
        %v1617 = vmul.f32 %v1607, 0.01
        %v1618 = vmul.f32 %v1612, 0.01
        %v1619 = vsel %vm1615, %v1607, %v1617
        %v1620 = vsel %vm1616, %v1612, %v1618
        %v1621 = vld [vmem:[%s975] sm:$0xff]
        %v1622 = vld [vmem:[%s975 + $0x8] sm:$0xff]
        %v1623 = vld [vmem:[%s983] sm:$0x1]
        %v1625 = vlaneseq
        %v1626 = vshrl.u32 %v1625, 7
        %v1627 = vsub.s32 0, %v1626
        %v1628 = vrot.slane %v1623, %v1627
        %1630 = vmatprep.subr.mxu0 0.0
        %1631 = vmatpush1.msra.mxu0 %v1621
        %1632 = vmatprep.subr.mxu0 0.0
        %1633 = vmatpush1.msra.mxu0 %v1622
        %1634 = vmatprep.subr.mxu0 0.0
        %1635 = vmatpush1.msra.mxu0 0.0
        %1636 = vmatprep.subr.mxu0 0.0
        %1637 = vmatpush1.msra.mxu0 0.0
        %1638 = vmatprep.subr.mxu0 0.0
        %1639 = vmatpush1.msra.mxu0 0.0
        %1640 = vmatprep.subr.mxu0 0.0
        %1641 = vmatpush1.msra.mxu0 0.0
        %1642 = vmatprep.subr.mxu0 0.0
        %1643 = vmatpush1.msra.mxu0 0.0
        %1644 = vmatprep.subr.mxu0 0.0
        %1645 = vmatpush1.msra.mxu0 0.0
        %1646 = vmatprep.subr.mxu0 0.0
        %1647 = vmatpush1.msra.mxu0 0.0
        %1648 = vmatprep.subr.mxu0 0.0
        %1649 = vmatpush1.msra.mxu0 0.0
        %1650 = vmatprep.subr.mxu0 0.0
        %1651 = vmatpush1.msra.mxu0 0.0
        %1652 = vmatprep.subr.mxu0 0.0
        %1653 = vmatpush1.msra.mxu0 0.0
        %1654 = vmatprep.subr.mxu0 0.0
        %1655 = vmatpush1.msra.mxu0 0.0
        %1656 = vmatprep.subr.mxu0 0.0
        %1657 = vmatpush1.msra.mxu0 0.0
        %1658 = vmatprep.subr.mxu0 0.0
        %1659 = vmatpush1.msra.mxu0 0.0
        %1660 = vmatprep.subr.mxu0 0.0
        %1661 = vmatpush1.msra.mxu0 0.0
        %1662 = vmatprep.subr.mxu0 0.0
        %1663 = vmatpush1.msra.mxu0 0.0
        %1664 = vmatprep.subr.mxu0 0.0
        %1665 = vmatpush1.msra.mxu0 0.0
        %1666 = vmatprep.subr.mxu0 0.0
        %1667 = vmatpush1.msra.mxu0 0.0
        %1668 = vmatprep.subr.mxu0 0.0
        %1669 = vmatpush1.msra.mxu0 0.0
        %1670 = vmatprep.subr.mxu0 0.0
        %1671 = vmatpush1.msra.mxu0 0.0
        %1672 = vmatprep.subr.mxu0 0.0
        %1673 = vmatpush1.msra.mxu0 0.0
        %1674 = vmatprep.subr.mxu0 0.0
        %1675 = vmatpush1.msra.mxu0 0.0
        %1676 = vmatprep.subr.mxu0 0.0
        %1677 = vmatpush1.msra.mxu0 0.0
        %1678 = vmatprep.subr.mxu0 0.0
        %1679 = vmatpush1.msra.mxu0 0.0
        %1680 = vmatprep.subr.mxu0 0.0
        %1681 = vmatpush1.msra.mxu0 0.0
        %1682 = vmatprep.subr.mxu0 0.0
        %1683 = vmatpush1.msra.mxu0 0.0
        %1684 = vmatprep.subr.mxu0 0.0
        %1685 = vmatpush1.msra.mxu0 0.0
        %1686 = vmatprep.subr.mxu0 0.0
        %1687 = vmatpush1.msra.mxu0 0.0
        %1688 = vmatprep.subr.mxu0 0.0
        %1689 = vmatpush1.msra.mxu0 0.0
        %1690 = vmatprep.subr.mxu0 0.0
        %1691 = vmatpush1.msra.mxu0 0.0
        %1692 = vmatprep.subr.mxu0 0.0
        %1693 = vmatpush1.msra.mxu0 0.0
        %1694 = vmatprep.mubr.f32.mxu0 0.0
        %1695 = vmatmul.mubr.f32.gmra.mrb[0].mxu0 %v1335
        %v1696 = vpop.f32.mrb[0].mxu0
        %v1697 = vadd.f32 %v1628, %v1696
        %v1698 = vpop.f32.mrb[0].mxu0
        %1699 = vmatprep.mubr.f32.mxu0 0.0
        %1700 = vmatmul.mubr.f32.gmra.mrb[0].mxu0 %v1338
        %v1701 = vpop.f32.mrb[0].mxu0
        %v1702 = vadd.f32 %v1628, %v1701
        %v1703 = vpop.f32.mrb[0].mxu0
        %1704 = vdwg.mxu0
        %vm1705 = vcmp.ge.f32.partialorder %v1697, 0.0
        %vm1706 = vcmp.ge.f32.partialorder %v1702, 0.0
        %v1707 = vmul.f32 %v1697, 0.01
        %v1708 = vmul.f32 %v1702, 0.01
        %v1709 = vsel %vm1705, %v1697, %v1707
        %v1710 = vsel %vm1706, %v1702, %v1708
        %v1711 = vld [vmem:[#allocation24] sm:$0xff]
        %v1712 = vld [vmem:[#allocation24 + $0x8] sm:$0xff]
        %v1713 = vadd.f32 %v1709, %v1711
        %v1714 = vadd.f32 %v1710, %v1712
        %v1715 = vld [vmem:[%s992] sm:$0xff]
        %v1716 = vld [vmem:[%s992 + $0x8] sm:$0xff]
        %v1717 = vld [vmem:[%s1000] sm:$0x1]
        %v1719 = vlaneseq
        %v1720 = vshrl.u32 %v1719, 7
        %v1721 = vsub.s32 0, %v1720
        %v1722 = vrot.slane %v1717, %v1721
        %v1725 = vsel %vm1319, %v1619, 0
        %v1728 = vsel %vm1319, %v1620, 0
        %1730 = vmatprep.subr.mxu0 0.0
        %1731 = vmatpush1.msra.mxu0 %v1715
        %1732 = vmatprep.subr.mxu0 0.0
        %1733 = vmatpush1.msra.mxu0 %v1716
        %1734 = vmatprep.subr.mxu0 0.0
        %1735 = vmatpush1.msra.mxu0 0.0
        %1736 = vmatprep.subr.mxu0 0.0
        %1737 = vmatpush1.msra.mxu0 0.0
        %1738 = vmatprep.subr.mxu0 0.0
        %1739 = vmatpush1.msra.mxu0 0.0
        %1740 = vmatprep.subr.mxu0 0.0
        %1741 = vmatpush1.msra.mxu0 0.0
        %1742 = vmatprep.subr.mxu0 0.0
        %1743 = vmatpush1.msra.mxu0 0.0
        %1744 = vmatprep.subr.mxu0 0.0
        %1745 = vmatpush1.msra.mxu0 0.0
        %1746 = vmatprep.subr.mxu0 0.0
        %1747 = vmatpush1.msra.mxu0 0.0
        %1748 = vmatprep.subr.mxu0 0.0
        %1749 = vmatpush1.msra.mxu0 0.0
        %1750 = vmatprep.subr.mxu0 0.0
        %1751 = vmatpush1.msra.mxu0 0.0
        %1752 = vmatprep.subr.mxu0 0.0
        %1753 = vmatpush1.msra.mxu0 0.0
        %1754 = vmatprep.subr.mxu0 0.0
        %1755 = vmatpush1.msra.mxu0 0.0
        %1756 = vmatprep.subr.mxu0 0.0
        %1757 = vmatpush1.msra.mxu0 0.0
        %1758 = vmatprep.subr.mxu0 0.0
        %1759 = vmatpush1.msra.mxu0 0.0
        %1760 = vmatprep.subr.mxu0 0.0
        %1761 = vmatpush1.msra.mxu0 0.0
        %1762 = vmatprep.subr.mxu0 0.0
        %1763 = vmatpush1.msra.mxu0 0.0
        %1764 = vmatprep.subr.mxu0 0.0
        %1765 = vmatpush1.msra.mxu0 0.0
        %1766 = vmatprep.subr.mxu0 0.0
        %1767 = vmatpush1.msra.mxu0 0.0
        %1768 = vmatprep.subr.mxu0 0.0
        %1769 = vmatpush1.msra.mxu0 0.0
        %1770 = vmatprep.subr.mxu0 0.0
        %1771 = vmatpush1.msra.mxu0 0.0
        %1772 = vmatprep.subr.mxu0 0.0
        %1773 = vmatpush1.msra.mxu0 0.0
        %1774 = vmatprep.subr.mxu0 0.0
        %1775 = vmatpush1.msra.mxu0 0.0
        %1776 = vmatprep.subr.mxu0 0.0
        %1777 = vmatpush1.msra.mxu0 0.0
        %1778 = vmatprep.subr.mxu0 0.0
        %1779 = vmatpush1.msra.mxu0 0.0
        %1780 = vmatprep.subr.mxu0 0.0
        %1781 = vmatpush1.msra.mxu0 0.0
        %1782 = vmatprep.subr.mxu0 0.0
        %1783 = vmatpush1.msra.mxu0 0.0
        %1784 = vmatprep.subr.mxu0 0.0
        %1785 = vmatpush1.msra.mxu0 0.0
        %1786 = vmatprep.subr.mxu0 0.0
        %1787 = vmatpush1.msra.mxu0 0.0
        %1788 = vmatprep.subr.mxu0 0.0
        %1789 = vmatpush1.msra.mxu0 0.0
        %1790 = vmatprep.subr.mxu0 0.0
        %1791 = vmatpush1.msra.mxu0 0.0
        %1792 = vmatprep.subr.mxu0 0.0
        %1793 = vmatpush1.msra.mxu0 0.0
        %1794 = vmatprep.mubr.f32.mxu0 0.0
        %1795 = vmatmul.mubr.f32.gmra.mrb[0].mxu0 %v1725
        %v1796 = vpop.f32.mrb[0].mxu0
        %v1797 = vadd.f32 %v1722, %v1796
        %v1798 = vpop.f32.mrb[0].mxu0
        %1799 = vmatprep.mubr.f32.mxu0 0.0
        %1800 = vmatmul.mubr.f32.gmra.mrb[0].mxu0 %v1728
        %v1801 = vpop.f32.mrb[0].mxu0
        %v1802 = vadd.f32 %v1722, %v1801
        %v1803 = vpop.f32.mrb[0].mxu0
        %1804 = vdwg.mxu0
        %v1805 = vadd.f32 %v1797, %v1713
        %v1806 = vadd.f32 %v1802, %v1714
        %vm1807 = vcmp.ge.f32.partialorder %v1805, 0.0
        %vm1808 = vcmp.ge.f32.partialorder %v1806, 0.0
        %v1809 = vmul.f32 %v1805, 0.01
        %v1810 = vmul.f32 %v1806, 0.01
        %v1811 = vsel %vm1807, %v1805, %v1809
        %v1812 = vsel %vm1808, %v1806, %v1810
        %v1813 = vld [vmem:[#allocation27] sm:$0xff]
        %v1814 = vld [vmem:[#allocation27 + $0x8] sm:$0xff]
        %v1815 = vmul.f32 %v1811, 0.25
        %v1816 = vmul.f32 %v1812, 0.25
        %v1817 = vadd.f32 %v1813, %v1815
        %v1818 = vadd.f32 %v1814, %v1816
        %1819 = vst.msk [vmem:[#allocation27] sm:$0xff] %vm1319, %v1817
        %1820 = vst.msk [vmem:[#allocation27 + $0x8] sm:$0xff] %vm1319, %v1818
        %v1821 = vlaneseq
        %v1822 = vand.u32 %v1821, 127
        %v1823 = vld [vmem:[%s14] sm:$0xf]
        %1824 = vset.pattern.permute.xlu0 0
        %1825 = vperm.xlu0 %1824, %v1823
        %v1826 = vpop.permute.xlu0 %1825
        %vm1827 = vcmp.eq.s32.totalorder %v1822, %v1826
        %v1828 = vsel %vm1827, 1, 0
        %v1829 = vcvt.s32.f32 %v1828
        %vm1830 = vcmask 125952
        %v1831 = vsel %vm1830, %v1829, 0.0
        %v1832 = vrot.slane %v1831, 4
        %v1833 = vadd.f32 %v1831, %v1832
        %v1834 = vrot.slane %v1833, 2
        %v1835 = vadd.f32 %v1833, %v1834
        %v1836 = vrot.slane %v1835, 1
        %v1837 = vadd.f32 %v1835, %v1836
        %v1838 = vmul.f32 %v1837, 0.25
        %v1840 = vsel %vm1319, %v1838, 0
        %1842 = vmatprep.subr.mxu0 0.0
        %1843 = vmatpush1.msra.mxu0 %v1811
        %1844 = vmatprep.subr.mxu0 0.0
        %1845 = vmatpush1.msra.mxu0 %v1812
        %1846 = vmatprep.subr.mxu0 0.0
        %1847 = vmatpush1.msra.mxu0 0.0
        %1848 = vmatprep.subr.mxu0 0.0
        %1849 = vmatpush1.msra.mxu0 0.0
        %1850 = vmatprep.subr.mxu0 0.0
        %1851 = vmatpush1.msra.mxu0 0.0
        %1852 = vmatprep.subr.mxu0 0.0
        %1853 = vmatpush1.msra.mxu0 0.0
        %1854 = vmatprep.subr.mxu0 0.0
        %1855 = vmatpush1.msra.mxu0 0.0
        %1856 = vmatprep.subr.mxu0 0.0
        %1857 = vmatpush1.msra.mxu0 0.0
        %1858 = vmatprep.subr.mxu0 0.0
        %1859 = vmatpush1.msra.mxu0 0.0
        %1860 = vmatprep.subr.mxu0 0.0
        %1861 = vmatpush1.msra.mxu0 0.0
        %1862 = vmatprep.subr.mxu0 0.0
        %1863 = vmatpush1.msra.mxu0 0.0
        %1864 = vmatprep.subr.mxu0 0.0
        %1865 = vmatpush1.msra.mxu0 0.0
        %1866 = vmatprep.subr.mxu0 0.0
        %1867 = vmatpush1.msra.mxu0 0.0
        %1868 = vmatprep.subr.mxu0 0.0
        %1869 = vmatpush1.msra.mxu0 0.0
        %1870 = vmatprep.subr.mxu0 0.0
        %1871 = vmatpush1.msra.mxu0 0.0
        %1872 = vmatprep.subr.mxu0 0.0
        %1873 = vmatpush1.msra.mxu0 0.0
        %1874 = vmatprep.subr.mxu0 0.0
        %1875 = vmatpush1.msra.mxu0 0.0
        %1876 = vmatprep.subr.mxu0 0.0
        %1877 = vmatpush1.msra.mxu0 0.0
        %1878 = vmatprep.subr.mxu0 0.0
        %1879 = vmatpush1.msra.mxu0 0.0
        %1880 = vmatprep.subr.mxu0 0.0
        %1881 = vmatpush1.msra.mxu0 0.0
        %1882 = vmatprep.subr.mxu0 0.0
        %1883 = vmatpush1.msra.mxu0 0.0
        %1884 = vmatprep.subr.mxu0 0.0
        %1885 = vmatpush1.msra.mxu0 0.0
        %1886 = vmatprep.subr.mxu0 0.0
        %1887 = vmatpush1.msra.mxu0 0.0
        %1888 = vmatprep.subr.mxu0 0.0
        %1889 = vmatpush1.msra.mxu0 0.0
        %1890 = vmatprep.subr.mxu0 0.0
        %1891 = vmatpush1.msra.mxu0 0.0
        %1892 = vmatprep.subr.mxu0 0.0
        %1893 = vmatpush1.msra.mxu0 0.0
        %1894 = vmatprep.subr.mxu0 0.0
        %1895 = vmatpush1.msra.mxu0 0.0
        %1896 = vmatprep.subr.mxu0 0.0
        %1897 = vmatpush1.msra.mxu0 0.0
        %1898 = vmatprep.subr.mxu0 0.0
        %1899 = vmatpush1.msra.mxu0 0.0
        %1900 = vmatprep.subr.mxu0 0.0
        %1901 = vmatpush1.msra.mxu0 0.0
        %1902 = vmatprep.subr.mxu0 0.0
        %1903 = vmatpush1.msra.mxu0 0.0
        %1904 = vmatprep.subr.mxu0 0.0
        %1905 = vmatpush1.msra.mxu0 0.0
        %1906 = vmatprep.mubr.f32.mxu0 0.0
        %1907 = vmatmul.mubr.f32.gmra.mrb[0].mxu0 %v1840
        %v1908 = vpop.f32.mrb[0].mxu0
        %v1909 = vadd.f32 0.0, %v1908
        %v1910 = vpop.f32.mrb[0].mxu0
        %1911 = vdwg.mxu0
        %v1912 = vlaneseq
        %v1913 = vshrl.u32 %v1912, 7
        %v1914 = vld [vmem:[#allocation2] sm:$0xf]
        %v1915 = vstv %s58
        %vm1916 = vcmp.eq.s32.totalorder %v1913, %v1915
        %v1917 = vsel %vm1916, 1, 0
        %v1918 = vcvt.s32.f32 %v1917
        %v1919 = vlaneseq
        %v1920 = vshrl.u32 %v1919, 7
        %v1921 = vsub.s32 0, %v1920
        %v1922 = vrot.slane %v1909, %v1921
        %v1923 = vmul.f32 %v1918, %v1922
        %v1924 = vadd.f32 %v1914, %v1923
        %1925 = vst.msk [vmem:[#allocation2] sm:$0xf] %vm1830, %v1924
        %p1926 = scmp.eq.s32.totalorder %s58, 3
        // Predicated region
        $region177: #{nft_mars_forward.1} parent=115 // pred_check
          %p1927 = pneg %p1926
        $region178: #{nft_mars_forward.1} parent=115 // pred_check_branch
          %1929 = sbr.rel (%p1927) target = $region180
        $region179: #{nft_mars_forward.1} parent=115 // pred_region
          %v1930 = vld [vmem:[#allocation27] sm:$0xff]
          %v1931 = vld [vmem:[#allocation27 + $0x8] sm:$0xff]
          %v1932 = vld [vmem:[%s13] sm:$0xf]
          %1933 = vset.pattern.permute.xlu0 0
          %1934 = vperm.xlu0 %1933, %v1932
          %v1935 = vpop.permute.xlu0 %1934
          %vm1936 = vcmp.eq.s32.totalorder %v1822, %v1935
          %v1937 = vsel %vm1936, 1, 0
          %v1938 = vcvt.s32.f32 %v1937
          %v1939 = vld [vmem:[%s15] sm:$0xf]
          %1940 = vset.pattern.permute.xlu0 0
          %1941 = vperm.xlu0 %1940, %v1939
          %v1942 = vpop.permute.xlu0 %1941
          %vm1943 = vcmp.eq.s32.totalorder %v1822, %v1942
          %v1944 = vsel %vm1943, 1, 0
          %v1945 = vcvt.s32.f32 %v1944
          %v1947 = vsel %vm1319, %v1938, 0
          %1949 = vmatprep.subr.mxu0 0.0
          %1950 = vmatpush1.msra.mxu0 %v1930
          %1951 = vmatprep.subr.mxu0 0.0
          %1952 = vmatpush1.msra.mxu0 %v1931
          %1953 = vmatprep.subr.mxu0 0.0
          %1954 = vmatpush1.msra.mxu0 0.0
          %1955 = vmatprep.subr.mxu0 0.0
          %1956 = vmatpush1.msra.mxu0 0.0
          %1957 = vmatprep.subr.mxu0 0.0
          %1958 = vmatpush1.msra.mxu0 0.0
          %1959 = vmatprep.subr.mxu0 0.0
          %1960 = vmatpush1.msra.mxu0 0.0
          %1961 = vmatprep.subr.mxu0 0.0
          %1962 = vmatpush1.msra.mxu0 0.0
          %1963 = vmatprep.subr.mxu0 0.0
          %1964 = vmatpush1.msra.mxu0 0.0
          %1965 = vmatprep.subr.mxu0 0.0
          %1966 = vmatpush1.msra.mxu0 0.0
          %1967 = vmatprep.subr.mxu0 0.0
          %1968 = vmatpush1.msra.mxu0 0.0
          %1969 = vmatprep.subr.mxu0 0.0
          %1970 = vmatpush1.msra.mxu0 0.0
          %1971 = vmatprep.subr.mxu0 0.0
          %1972 = vmatpush1.msra.mxu0 0.0
          %1973 = vmatprep.subr.mxu0 0.0
          %1974 = vmatpush1.msra.mxu0 0.0
          %1975 = vmatprep.subr.mxu0 0.0
          %1976 = vmatpush1.msra.mxu0 0.0
          %1977 = vmatprep.subr.mxu0 0.0
          %1978 = vmatpush1.msra.mxu0 0.0
          %1979 = vmatprep.subr.mxu0 0.0
          %1980 = vmatpush1.msra.mxu0 0.0
          %1981 = vmatprep.subr.mxu0 0.0
          %1982 = vmatpush1.msra.mxu0 0.0
          %1983 = vmatprep.subr.mxu0 0.0
          %1984 = vmatpush1.msra.mxu0 0.0
          %1985 = vmatprep.subr.mxu0 0.0
          %1986 = vmatpush1.msra.mxu0 0.0
          %1987 = vmatprep.subr.mxu0 0.0
          %1988 = vmatpush1.msra.mxu0 0.0
          %1989 = vmatprep.subr.mxu0 0.0
          %1990 = vmatpush1.msra.mxu0 0.0
          %1991 = vmatprep.subr.mxu0 0.0
          %1992 = vmatpush1.msra.mxu0 0.0
          %1993 = vmatprep.subr.mxu0 0.0
          %1994 = vmatpush1.msra.mxu0 0.0
          %1995 = vmatprep.subr.mxu0 0.0
          %1996 = vmatpush1.msra.mxu0 0.0
          %1997 = vmatprep.subr.mxu0 0.0
          %1998 = vmatpush1.msra.mxu0 0.0
          %1999 = vmatprep.subr.mxu0 0.0
          %2000 = vmatpush1.msra.mxu0 0.0
          %2001 = vmatprep.subr.mxu0 0.0
          %2002 = vmatpush1.msra.mxu0 0.0
          %2003 = vmatprep.subr.mxu0 0.0
          %2004 = vmatpush1.msra.mxu0 0.0
          %2005 = vmatprep.subr.mxu0 0.0
          %2006 = vmatpush1.msra.mxu0 0.0
          %2007 = vmatprep.subr.mxu0 0.0
          %2008 = vmatpush1.msra.mxu0 0.0
          %2009 = vmatprep.subr.mxu0 0.0
          %2010 = vmatpush1.msra.mxu0 0.0
          %2011 = vmatprep.subr.mxu0 0.0
          %2012 = vmatpush1.msra.mxu0 0.0
          %2013 = vmatprep.mubr.f32.mxu0 0.0
          %2014 = vmatmul.mubr.f32.gmra.mrb[0].mxu0 %v1947
          %v2015 = vpop.f32.mrb[0].mxu0
          %v2016 = vadd.f32 0.0, %v2015
          %v2017 = vpop.f32.mrb[0].mxu0
          %2018 = vdwg.mxu0
          %v2020 = vsel %vm1319, %v1829, 0
          %2022 = vmatprep.subr.mxu0 0.0
          %2023 = vmatpush1.msra.mxu0 %v1930
          %2024 = vmatprep.subr.mxu0 0.0
          %2025 = vmatpush1.msra.mxu0 %v1931
          %2026 = vmatprep.subr.mxu0 0.0
          %2027 = vmatpush1.msra.mxu0 0.0
          %2028 = vmatprep.subr.mxu0 0.0
          %2029 = vmatpush1.msra.mxu0 0.0
          %2030 = vmatprep.subr.mxu0 0.0
          %2031 = vmatpush1.msra.mxu0 0.0
          %2032 = vmatprep.subr.mxu0 0.0
          %2033 = vmatpush1.msra.mxu0 0.0
          %2034 = vmatprep.subr.mxu0 0.0
          %2035 = vmatpush1.msra.mxu0 0.0
          %2036 = vmatprep.subr.mxu0 0.0
          %2037 = vmatpush1.msra.mxu0 0.0
          %2038 = vmatprep.subr.mxu0 0.0
          %2039 = vmatpush1.msra.mxu0 0.0
          %2040 = vmatprep.subr.mxu0 0.0
          %2041 = vmatpush1.msra.mxu0 0.0
          %2042 = vmatprep.subr.mxu0 0.0
          %2043 = vmatpush1.msra.mxu0 0.0
          %2044 = vmatprep.subr.mxu0 0.0
          %2045 = vmatpush1.msra.mxu0 0.0
          %2046 = vmatprep.subr.mxu0 0.0
          %2047 = vmatpush1.msra.mxu0 0.0
          %2048 = vmatprep.subr.mxu0 0.0
          %2049 = vmatpush1.msra.mxu0 0.0
          %2050 = vmatprep.subr.mxu0 0.0
          %2051 = vmatpush1.msra.mxu0 0.0
          %2052 = vmatprep.subr.mxu0 0.0
          %2053 = vmatpush1.msra.mxu0 0.0
          %2054 = vmatprep.subr.mxu0 0.0
          %2055 = vmatpush1.msra.mxu0 0.0
          %2056 = vmatprep.subr.mxu0 0.0
          %2057 = vmatpush1.msra.mxu0 0.0
          %2058 = vmatprep.subr.mxu0 0.0
          %2059 = vmatpush1.msra.mxu0 0.0
          %2060 = vmatprep.subr.mxu0 0.0
          %2061 = vmatpush1.msra.mxu0 0.0
          %2062 = vmatprep.subr.mxu0 0.0
          %2063 = vmatpush1.msra.mxu0 0.0
          %2064 = vmatprep.subr.mxu0 0.0
          %2065 = vmatpush1.msra.mxu0 0.0
          %2066 = vmatprep.subr.mxu0 0.0
          %2067 = vmatpush1.msra.mxu0 0.0
          %2068 = vmatprep.subr.mxu0 0.0
          %2069 = vmatpush1.msra.mxu0 0.0
          %2070 = vmatprep.subr.mxu0 0.0
          %2071 = vmatpush1.msra.mxu0 0.0
          %2072 = vmatprep.subr.mxu0 0.0
          %2073 = vmatpush1.msra.mxu0 0.0
          %2074 = vmatprep.subr.mxu0 0.0
          %2075 = vmatpush1.msra.mxu0 0.0
          %2076 = vmatprep.subr.mxu0 0.0
          %2077 = vmatpush1.msra.mxu0 0.0
          %2078 = vmatprep.subr.mxu0 0.0
          %2079 = vmatpush1.msra.mxu0 0.0
          %2080 = vmatprep.subr.mxu0 0.0
          %2081 = vmatpush1.msra.mxu0 0.0
          %2082 = vmatprep.subr.mxu0 0.0
          %2083 = vmatpush1.msra.mxu0 0.0
          %2084 = vmatprep.subr.mxu0 0.0
          %2085 = vmatpush1.msra.mxu0 0.0
          %2086 = vmatprep.mubr.f32.mxu0 0.0
          %2087 = vmatmul.mubr.f32.gmra.mrb[0].mxu0 %v2020
          %v2088 = vpop.f32.mrb[0].mxu0
          %v2089 = vadd.f32 0.0, %v2088
          %v2090 = vpop.f32.mrb[0].mxu0
          %2091 = vdwg.mxu0
          %v2093 = vsel %vm1319, %v1945, 0
          %2095 = vmatprep.subr.mxu0 0.0
          %2096 = vmatpush1.msra.mxu0 %v1930
          %2097 = vmatprep.subr.mxu0 0.0
          %2098 = vmatpush1.msra.mxu0 %v1931
          %2099 = vmatprep.subr.mxu0 0.0
          %2100 = vmatpush1.msra.mxu0 0.0
          %2101 = vmatprep.subr.mxu0 0.0
          %2102 = vmatpush1.msra.mxu0 0.0
          %2103 = vmatprep.subr.mxu0 0.0
          %2104 = vmatpush1.msra.mxu0 0.0
          %2105 = vmatprep.subr.mxu0 0.0
          %2106 = vmatpush1.msra.mxu0 0.0
          %2107 = vmatprep.subr.mxu0 0.0
          %2108 = vmatpush1.msra.mxu0 0.0
          %2109 = vmatprep.subr.mxu0 0.0
          %2110 = vmatpush1.msra.mxu0 0.0
          %2111 = vmatprep.subr.mxu0 0.0
          %2112 = vmatpush1.msra.mxu0 0.0
          %2113 = vmatprep.subr.mxu0 0.0
          %2114 = vmatpush1.msra.mxu0 0.0
          %2115 = vmatprep.subr.mxu0 0.0
          %2116 = vmatpush1.msra.mxu0 0.0
          %2117 = vmatprep.subr.mxu0 0.0
          %2118 = vmatpush1.msra.mxu0 0.0
          %2119 = vmatprep.subr.mxu0 0.0
          %2120 = vmatpush1.msra.mxu0 0.0
          %2121 = vmatprep.subr.mxu0 0.0
          %2122 = vmatpush1.msra.mxu0 0.0
          %2123 = vmatprep.subr.mxu0 0.0
          %2124 = vmatpush1.msra.mxu0 0.0
          %2125 = vmatprep.subr.mxu0 0.0
          %2126 = vmatpush1.msra.mxu0 0.0
          %2127 = vmatprep.subr.mxu0 0.0
          %2128 = vmatpush1.msra.mxu0 0.0
          %2129 = vmatprep.subr.mxu0 0.0
          %2130 = vmatpush1.msra.mxu0 0.0
          %2131 = vmatprep.subr.mxu0 0.0
          %2132 = vmatpush1.msra.mxu0 0.0
          %2133 = vmatprep.subr.mxu0 0.0
          %2134 = vmatpush1.msra.mxu0 0.0
          %2135 = vmatprep.subr.mxu0 0.0
          %2136 = vmatpush1.msra.mxu0 0.0
          %2137 = vmatprep.subr.mxu0 0.0
          %2138 = vmatpush1.msra.mxu0 0.0
          %2139 = vmatprep.subr.mxu0 0.0
          %2140 = vmatpush1.msra.mxu0 0.0
          %2141 = vmatprep.subr.mxu0 0.0
          %2142 = vmatpush1.msra.mxu0 0.0
          %2143 = vmatprep.subr.mxu0 0.0
          %2144 = vmatpush1.msra.mxu0 0.0
          %2145 = vmatprep.subr.mxu0 0.0
          %2146 = vmatpush1.msra.mxu0 0.0
          %2147 = vmatprep.subr.mxu0 0.0
          %2148 = vmatpush1.msra.mxu0 0.0
          %2149 = vmatprep.subr.mxu0 0.0
          %2150 = vmatpush1.msra.mxu0 0.0
          %2151 = vmatprep.subr.mxu0 0.0
          %2152 = vmatpush1.msra.mxu0 0.0
          %2153 = vmatprep.subr.mxu0 0.0
          %2154 = vmatpush1.msra.mxu0 0.0
          %2155 = vmatprep.subr.mxu0 0.0
          %2156 = vmatpush1.msra.mxu0 0.0
          %2157 = vmatprep.subr.mxu0 0.0
          %2158 = vmatpush1.msra.mxu0 0.0
          %2159 = vmatprep.mubr.f32.mxu0 0.0
          %2160 = vmatmul.mubr.f32.gmra.mrb[0].mxu0 %v2093
          %v2161 = vpop.f32.mrb[0].mxu0
          %v2162 = vadd.f32 0.0, %v2161
          %v2163 = vpop.f32.mrb[0].mxu0
          %2164 = vdwg.mxu0
          %v2165 = vld [vmem:[#allocation2] sm:$0xf]
          %v2166 = vld [vmem:[#allocation25] sm:$0xff]
          %v2167 = vld [vmem:[#allocation25 + $0x8] sm:$0xff]
          %v2169 = vsel %vm1319, %v2016, 0
          %2171 = vmatprep.subr.mxu0 0.0
          %2172 = vmatpush1.msra.mxu0 %v2166
          %2173 = vmatprep.subr.mxu0 0.0
          %2174 = vmatpush1.msra.mxu0 %v2167
          %2175 = vmatprep.subr.mxu0 0.0
          %2176 = vmatpush1.msra.mxu0 0.0
          %2177 = vmatprep.subr.mxu0 0.0
          %2178 = vmatpush1.msra.mxu0 0.0
          %2179 = vmatprep.subr.mxu0 0.0
          %2180 = vmatpush1.msra.mxu0 0.0
          %2181 = vmatprep.subr.mxu0 0.0
          %2182 = vmatpush1.msra.mxu0 0.0
          %2183 = vmatprep.subr.mxu0 0.0
          %2184 = vmatpush1.msra.mxu0 0.0
          %2185 = vmatprep.subr.mxu0 0.0
          %2186 = vmatpush1.msra.mxu0 0.0
          %2187 = vmatprep.subr.mxu0 0.0
          %2188 = vmatpush1.msra.mxu0 0.0
          %2189 = vmatprep.subr.mxu0 0.0
          %2190 = vmatpush1.msra.mxu0 0.0
          %2191 = vmatprep.subr.mxu0 0.0
          %2192 = vmatpush1.msra.mxu0 0.0
          %2193 = vmatprep.subr.mxu0 0.0
          %2194 = vmatpush1.msra.mxu0 0.0
          %2195 = vmatprep.subr.mxu0 0.0
          %2196 = vmatpush1.msra.mxu0 0.0
          %2197 = vmatprep.subr.mxu0 0.0
          %2198 = vmatpush1.msra.mxu0 0.0
          %2199 = vmatprep.subr.mxu0 0.0
          %2200 = vmatpush1.msra.mxu0 0.0
          %2201 = vmatprep.subr.mxu0 0.0
          %2202 = vmatpush1.msra.mxu0 0.0
          %2203 = vmatprep.subr.mxu0 0.0
          %2204 = vmatpush1.msra.mxu0 0.0
          %2205 = vmatprep.subr.mxu0 0.0
          %2206 = vmatpush1.msra.mxu0 0.0
          %2207 = vmatprep.subr.mxu0 0.0
          %2208 = vmatpush1.msra.mxu0 0.0
          %2209 = vmatprep.subr.mxu0 0.0
          %2210 = vmatpush1.msra.mxu0 0.0
          %2211 = vmatprep.subr.mxu0 0.0
          %2212 = vmatpush1.msra.mxu0 0.0
          %2213 = vmatprep.subr.mxu0 0.0
          %2214 = vmatpush1.msra.mxu0 0.0
          %2215 = vmatprep.subr.mxu0 0.0
          %2216 = vmatpush1.msra.mxu0 0.0
          %2217 = vmatprep.subr.mxu0 0.0
          %2218 = vmatpush1.msra.mxu0 0.0
          %2219 = vmatprep.subr.mxu0 0.0
          %2220 = vmatpush1.msra.mxu0 0.0
          %2221 = vmatprep.subr.mxu0 0.0
          %2222 = vmatpush1.msra.mxu0 0.0
          %2223 = vmatprep.subr.mxu0 0.0
          %2224 = vmatpush1.msra.mxu0 0.0
          %2225 = vmatprep.subr.mxu0 0.0
          %2226 = vmatpush1.msra.mxu0 0.0
          %2227 = vmatprep.subr.mxu0 0.0
          %2228 = vmatpush1.msra.mxu0 0.0
          %2229 = vmatprep.subr.mxu0 0.0
          %2230 = vmatpush1.msra.mxu0 0.0
          %2231 = vmatprep.subr.mxu0 0.0
          %2232 = vmatpush1.msra.mxu0 0.0
          %2233 = vmatprep.subr.mxu0 0.0
          %2234 = vmatpush1.msra.mxu0 0.0
          %2235 = vmatprep.mubr.f32.mxu0 0.0
          %2236 = vmatmul.mubr.f32.gmra.mrb[0].mxu0 %v2169
          %v2237 = vpop.f32.mrb[0].mxu0
          %v2238 = vadd.f32 0.0, %v2237
          %v2239 = vpop.f32.mrb[0].mxu0
          %2240 = vdwg.mxu0
          %v2241 = vld [vmem:[%s17] sm:$0xff]
          %v2242 = vld [vmem:[%s17 + $0x8] sm:$0xff]
          %v2244 = vsel %vm1319, %v2165, 0
          %2246 = vmatprep.subr.mxu0 0.0
          %2247 = vmatpush1.msra.mxu0 %v2241
          %2248 = vmatprep.subr.mxu0 0.0
          %2249 = vmatpush1.msra.mxu0 %v2242
          %2250 = vmatprep.subr.mxu0 0.0
          %2251 = vmatpush1.msra.mxu0 0.0
          %2252 = vmatprep.subr.mxu0 0.0
          %2253 = vmatpush1.msra.mxu0 0.0
          %2254 = vmatprep.subr.mxu0 0.0
          %2255 = vmatpush1.msra.mxu0 0.0
          %2256 = vmatprep.subr.mxu0 0.0
          %2257 = vmatpush1.msra.mxu0 0.0
          %2258 = vmatprep.subr.mxu0 0.0
          %2259 = vmatpush1.msra.mxu0 0.0
          %2260 = vmatprep.subr.mxu0 0.0
          %2261 = vmatpush1.msra.mxu0 0.0
          %2262 = vmatprep.subr.mxu0 0.0
          %2263 = vmatpush1.msra.mxu0 0.0
          %2264 = vmatprep.subr.mxu0 0.0
          %2265 = vmatpush1.msra.mxu0 0.0
          %2266 = vmatprep.subr.mxu0 0.0
          %2267 = vmatpush1.msra.mxu0 0.0
          %2268 = vmatprep.subr.mxu0 0.0
          %2269 = vmatpush1.msra.mxu0 0.0
          %2270 = vmatprep.subr.mxu0 0.0
          %2271 = vmatpush1.msra.mxu0 0.0
          %2272 = vmatprep.subr.mxu0 0.0
          %2273 = vmatpush1.msra.mxu0 0.0
          %2274 = vmatprep.subr.mxu0 0.0
          %2275 = vmatpush1.msra.mxu0 0.0
          %2276 = vmatprep.subr.mxu0 0.0
          %2277 = vmatpush1.msra.mxu0 0.0
          %2278 = vmatprep.subr.mxu0 0.0
          %2279 = vmatpush1.msra.mxu0 0.0
          %2280 = vmatprep.subr.mxu0 0.0
          %2281 = vmatpush1.msra.mxu0 0.0
          %2282 = vmatprep.subr.mxu0 0.0
          %2283 = vmatpush1.msra.mxu0 0.0
          %2284 = vmatprep.subr.mxu0 0.0
          %2285 = vmatpush1.msra.mxu0 0.0
          %2286 = vmatprep.subr.mxu0 0.0
          %2287 = vmatpush1.msra.mxu0 0.0
          %2288 = vmatprep.subr.mxu0 0.0
          %2289 = vmatpush1.msra.mxu0 0.0
          %2290 = vmatprep.subr.mxu0 0.0
          %2291 = vmatpush1.msra.mxu0 0.0
          %2292 = vmatprep.subr.mxu0 0.0
          %2293 = vmatpush1.msra.mxu0 0.0
          %2294 = vmatprep.subr.mxu0 0.0
          %2295 = vmatpush1.msra.mxu0 0.0
          %2296 = vmatprep.subr.mxu0 0.0
          %2297 = vmatpush1.msra.mxu0 0.0
          %2298 = vmatprep.subr.mxu0 0.0
          %2299 = vmatpush1.msra.mxu0 0.0
          %2300 = vmatprep.subr.mxu0 0.0
          %2301 = vmatpush1.msra.mxu0 0.0
          %2302 = vmatprep.subr.mxu0 0.0
          %2303 = vmatpush1.msra.mxu0 0.0
          %2304 = vmatprep.subr.mxu0 0.0
          %2305 = vmatpush1.msra.mxu0 0.0
          %2306 = vmatprep.subr.mxu0 0.0
          %2307 = vmatpush1.msra.mxu0 0.0
          %2308 = vmatprep.subr.mxu0 0.0
          %2309 = vmatpush1.msra.mxu0 0.0
          %2310 = vmatprep.mubr.f32.mxu0 0.0
          %2311 = vmatmul.mubr.f32.gmra.mrb[0].mxu0 %v2244
          %v2312 = vpop.f32.mrb[0].mxu0
          %v2313 = vadd.f32 0.0, %v2312
          %v2314 = vpop.f32.mrb[0].mxu0
          %2315 = vdwg.mxu0
          %v2316 = vld [vmem:[%s18] sm:$0xff]
          %v2317 = vld [vmem:[%s18 + $0x8] sm:$0xff]
          %2318 = vmatprep.subr.mxu0 0.0
          %2319 = vmatpush1.msra.mxu0 %v2316
          %2320 = vmatprep.subr.mxu0 0.0
          %2321 = vmatpush1.msra.mxu0 %v2317
          %2322 = vmatprep.subr.mxu0 0.0
          %2323 = vmatpush1.msra.mxu0 0.0
          %2324 = vmatprep.subr.mxu0 0.0
          %2325 = vmatpush1.msra.mxu0 0.0
          %2326 = vmatprep.subr.mxu0 0.0
          %2327 = vmatpush1.msra.mxu0 0.0
          %2328 = vmatprep.subr.mxu0 0.0
          %2329 = vmatpush1.msra.mxu0 0.0
          %2330 = vmatprep.subr.mxu0 0.0
          %2331 = vmatpush1.msra.mxu0 0.0
          %2332 = vmatprep.subr.mxu0 0.0
          %2333 = vmatpush1.msra.mxu0 0.0
          %2334 = vmatprep.subr.mxu0 0.0
          %2335 = vmatpush1.msra.mxu0 0.0
          %2336 = vmatprep.subr.mxu0 0.0
          %2337 = vmatpush1.msra.mxu0 0.0
          %2338 = vmatprep.subr.mxu0 0.0
          %2339 = vmatpush1.msra.mxu0 0.0
          %2340 = vmatprep.subr.mxu0 0.0
          %2341 = vmatpush1.msra.mxu0 0.0
          %2342 = vmatprep.subr.mxu0 0.0
          %2343 = vmatpush1.msra.mxu0 0.0
          %2344 = vmatprep.subr.mxu0 0.0
          %2345 = vmatpush1.msra.mxu0 0.0
          %2346 = vmatprep.subr.mxu0 0.0
          %2347 = vmatpush1.msra.mxu0 0.0
          %2348 = vmatprep.subr.mxu0 0.0
          %2349 = vmatpush1.msra.mxu0 0.0
          %2350 = vmatprep.subr.mxu0 0.0
          %2351 = vmatpush1.msra.mxu0 0.0
          %2352 = vmatprep.subr.mxu0 0.0
          %2353 = vmatpush1.msra.mxu0 0.0
          %2354 = vmatprep.subr.mxu0 0.0
          %2355 = vmatpush1.msra.mxu0 0.0
          %2356 = vmatprep.subr.mxu0 0.0
          %2357 = vmatpush1.msra.mxu0 0.0
          %2358 = vmatprep.subr.mxu0 0.0
          %2359 = vmatpush1.msra.mxu0 0.0
          %2360 = vmatprep.subr.mxu0 0.0
          %2361 = vmatpush1.msra.mxu0 0.0
          %2362 = vmatprep.subr.mxu0 0.0
          %2363 = vmatpush1.msra.mxu0 0.0
          %2364 = vmatprep.subr.mxu0 0.0
          %2365 = vmatpush1.msra.mxu0 0.0
          %2366 = vmatprep.subr.mxu0 0.0
          %2367 = vmatpush1.msra.mxu0 0.0
          %2368 = vmatprep.subr.mxu0 0.0
          %2369 = vmatpush1.msra.mxu0 0.0
          %2370 = vmatprep.subr.mxu0 0.0
          %2371 = vmatpush1.msra.mxu0 0.0
          %2372 = vmatprep.subr.mxu0 0.0
          %2373 = vmatpush1.msra.mxu0 0.0
          %2374 = vmatprep.subr.mxu0 0.0
          %2375 = vmatpush1.msra.mxu0 0.0
          %2376 = vmatprep.subr.mxu0 0.0
          %2377 = vmatpush1.msra.mxu0 0.0
          %2378 = vmatprep.subr.mxu0 0.0
          %2379 = vmatpush1.msra.mxu0 0.0
          %2380 = vmatprep.subr.mxu0 0.0
          %2381 = vmatpush1.msra.mxu0 0.0
          %2382 = vmatprep.mubr.f32.mxu0 0.0
          %2383 = vmatmul.mubr.f32.gmra.mrb[0].mxu0 %v2244
          %v2384 = vpop.f32.mrb[0].mxu0
          %v2385 = vadd.f32 0.0, %v2384
          %v2386 = vpop.f32.mrb[0].mxu0
          %2387 = vdwg.mxu0
          %v2389 = vsel %vm1319, %v2238, 0
          %v2392 = vsel %vm1319, %v2313, 0
          %2394 = vmatprep.subr.mxu0 0.0
          %2395 = vmatpush1.xpose.msra.mxu0 %v2392
          %2396 = vmatprep.subr.mxu0 0.0
          %2397 = vmatpush1.xpose.msra.mxu0 0.0
          %2398 = vmatprep.subr.mxu0 0.0
          %2399 = vmatpush1.xpose.msra.mxu0 0.0
          %2400 = vmatprep.subr.mxu0 0.0
          %2401 = vmatpush1.xpose.msra.mxu0 0.0
          %2402 = vmatprep.subr.mxu0 0.0
          %2403 = vmatpush1.xpose.msra.mxu0 0.0
          %2404 = vmatprep.subr.mxu0 0.0
          %2405 = vmatpush1.xpose.msra.mxu0 0.0
          %2406 = vmatprep.subr.mxu0 0.0
          %2407 = vmatpush1.xpose.msra.mxu0 0.0
          %2408 = vmatprep.subr.mxu0 0.0
          %2409 = vmatpush1.xpose.msra.mxu0 0.0
          %2410 = vmatprep.subr.mxu0 0.0
          %2411 = vmatpush1.xpose.msra.mxu0 0.0
          %2412 = vmatprep.subr.mxu0 0.0
          %2413 = vmatpush1.xpose.msra.mxu0 0.0
          %2414 = vmatprep.subr.mxu0 0.0
          %2415 = vmatpush1.xpose.msra.mxu0 0.0
          %2416 = vmatprep.subr.mxu0 0.0
          %2417 = vmatpush1.xpose.msra.mxu0 0.0
          %2418 = vmatprep.subr.mxu0 0.0
          %2419 = vmatpush1.xpose.msra.mxu0 0.0
          %2420 = vmatprep.subr.mxu0 0.0
          %2421 = vmatpush1.xpose.msra.mxu0 0.0
          %2422 = vmatprep.subr.mxu0 0.0
          %2423 = vmatpush1.xpose.msra.mxu0 0.0
          %2424 = vmatprep.subr.mxu0 0.0
          %2425 = vmatpush1.xpose.msra.mxu0 0.0
          %2426 = vmatprep.subr.mxu0 0.0
          %2427 = vmatpush1.xpose.msra.mxu0 0.0
          %2428 = vmatprep.subr.mxu0 0.0
          %2429 = vmatpush1.xpose.msra.mxu0 0.0
          %2430 = vmatprep.subr.mxu0 0.0
          %2431 = vmatpush1.xpose.msra.mxu0 0.0
          %2432 = vmatprep.subr.mxu0 0.0
          %2433 = vmatpush1.xpose.msra.mxu0 0.0
          %2434 = vmatprep.subr.mxu0 0.0
          %2435 = vmatpush1.xpose.msra.mxu0 0.0
          %2436 = vmatprep.subr.mxu0 0.0
          %2437 = vmatpush1.xpose.msra.mxu0 0.0
          %2438 = vmatprep.subr.mxu0 0.0
          %2439 = vmatpush1.xpose.msra.mxu0 0.0
          %2440 = vmatprep.subr.mxu0 0.0
          %2441 = vmatpush1.xpose.msra.mxu0 0.0
          %2442 = vmatprep.subr.mxu0 0.0
          %2443 = vmatpush1.xpose.msra.mxu0 0.0
          %2444 = vmatprep.subr.mxu0 0.0
          %2445 = vmatpush1.xpose.msra.mxu0 0.0
          %2446 = vmatprep.subr.mxu0 0.0
          %2447 = vmatpush1.xpose.msra.mxu0 0.0
          %2448 = vmatprep.subr.mxu0 0.0
          %2449 = vmatpush1.xpose.msra.mxu0 0.0
          %2450 = vmatprep.subr.mxu0 0.0
          %2451 = vmatpush1.xpose.msra.mxu0 0.0
          %2452 = vmatprep.subr.mxu0 0.0
          %2453 = vmatpush1.xpose.msra.mxu0 0.0
          %2454 = vmatprep.subr.mxu0 0.0
          %2455 = vmatpush1.xpose.msra.mxu0 0.0
          %2456 = vmatprep.subr.mxu0 0.0
          %2457 = vmatpush1.xpose.msra.mxu0 0.0
          %2458 = vmatprep.mubr.f32.mxu0 0.0
          %2459 = vmatmul.mubr.f32.gmra.mrb[0].mxu0 %v2389
          %v2460 = vpop.f32.mrb[0].mxu0
          %v2461 = vadd.f32 0.0, %v2460
          %v2462 = vpop.f32.mrb[0].mxu0
          %2463 = vdwg.mxu0
          %v2464 = vmul.f32 %v2461, 0.25
          %vm2465 = vcmask 27648
          %v2466 = vsel %vm2465, %v2464, -inf
          %2467 = vmax.xlane.f32.xlu0 %v2466
          %v2468 = vpop.xlane.xlu0 %2467
          %v2469 = vsub.f32 %v2464, %v2468
          %v2470 = vmul.f32 %v2469, 1.442695
          %v2471 = vpow.pop %v2470
          %v2472 = vsel %vm2465, %v2471, 0.0
          %2473 = vadd.xlane.f32.xlu0 %v2472
          %v2474 = vpop.xlane.xlu0 %2473
          %v2475 = vrcp.pop %v2474
          %v2476 = vmul.f32 %v2471, %v2475
          %vm2477 = vcmask 31744
          %v2479 = vsel %vm2477, %v2476, 0
          %vm2481 = vcmask 1043456
          %v2483 = vsel %vm2481, %v2385, 0
          %2485 = vmatprep.subr.mxu0 0.0
          %2486 = vmatpush1.msra.mxu0 %v2483
          %2487 = vmatprep.subr.mxu0 0.0
          %2488 = vmatpush1.msra.mxu0 0.0
          %2489 = vmatprep.subr.mxu0 0.0
          %2490 = vmatpush1.msra.mxu0 0.0
          %2491 = vmatprep.subr.mxu0 0.0
          %2492 = vmatpush1.msra.mxu0 0.0
          %2493 = vmatprep.subr.mxu0 0.0
          %2494 = vmatpush1.msra.mxu0 0.0
          %2495 = vmatprep.subr.mxu0 0.0
          %2496 = vmatpush1.msra.mxu0 0.0
          %2497 = vmatprep.subr.mxu0 0.0
          %2498 = vmatpush1.msra.mxu0 0.0
          %2499 = vmatprep.subr.mxu0 0.0
          %2500 = vmatpush1.msra.mxu0 0.0
          %2501 = vmatprep.subr.mxu0 0.0
          %2502 = vmatpush1.msra.mxu0 0.0
          %2503 = vmatprep.subr.mxu0 0.0
          %2504 = vmatpush1.msra.mxu0 0.0
          %2505 = vmatprep.subr.mxu0 0.0
          %2506 = vmatpush1.msra.mxu0 0.0
          %2507 = vmatprep.subr.mxu0 0.0
          %2508 = vmatpush1.msra.mxu0 0.0
          %2509 = vmatprep.subr.mxu0 0.0
          %2510 = vmatpush1.msra.mxu0 0.0
          %2511 = vmatprep.subr.mxu0 0.0
          %2512 = vmatpush1.msra.mxu0 0.0
          %2513 = vmatprep.subr.mxu0 0.0
          %2514 = vmatpush1.msra.mxu0 0.0
          %2515 = vmatprep.subr.mxu0 0.0
          %2516 = vmatpush1.msra.mxu0 0.0
          %2517 = vmatprep.subr.mxu0 0.0
          %2518 = vmatpush1.msra.mxu0 0.0
          %2519 = vmatprep.subr.mxu0 0.0
          %2520 = vmatpush1.msra.mxu0 0.0
          %2521 = vmatprep.subr.mxu0 0.0
          %2522 = vmatpush1.msra.mxu0 0.0
          %2523 = vmatprep.subr.mxu0 0.0
          %2524 = vmatpush1.msra.mxu0 0.0
          %2525 = vmatprep.subr.mxu0 0.0
          %2526 = vmatpush1.msra.mxu0 0.0
          %2527 = vmatprep.subr.mxu0 0.0
          %2528 = vmatpush1.msra.mxu0 0.0
          %2529 = vmatprep.subr.mxu0 0.0
          %2530 = vmatpush1.msra.mxu0 0.0
          %2531 = vmatprep.subr.mxu0 0.0
          %2532 = vmatpush1.msra.mxu0 0.0
          %2533 = vmatprep.subr.mxu0 0.0
          %2534 = vmatpush1.msra.mxu0 0.0
          %2535 = vmatprep.subr.mxu0 0.0
          %2536 = vmatpush1.msra.mxu0 0.0
          %2537 = vmatprep.subr.mxu0 0.0
          %2538 = vmatpush1.msra.mxu0 0.0
          %2539 = vmatprep.subr.mxu0 0.0
          %2540 = vmatpush1.msra.mxu0 0.0
          %2541 = vmatprep.subr.mxu0 0.0
          %2542 = vmatpush1.msra.mxu0 0.0
          %2543 = vmatprep.subr.mxu0 0.0
          %2544 = vmatpush1.msra.mxu0 0.0
          %2545 = vmatprep.subr.mxu0 0.0
          %2546 = vmatpush1.msra.mxu0 0.0
          %2547 = vmatprep.subr.mxu0 0.0
          %2548 = vmatpush1.msra.mxu0 0.0
          %2549 = vmatprep.mubr.f32.mxu0 0.0
          %2550 = vmatmul.mubr.f32.gmra.mrb[0].mxu0 %v2479
          %v2551 = vpop.f32.mrb[0].mxu0
          %v2552 = vadd.f32 0.0, %v2551
          %v2553 = vpop.f32.mrb[0].mxu0
          %2554 = vdwg.mxu0
          %v2555 = vmul.f32 %v2552, %v2089
          %v2556 = vsel %vm1830, %v2555, 0.0
          %2557 = vadd.xlane.f32.xlu0 %v2556
          %v2558 = vpop.xlane.xlu0 %2557
          %v2559 = vmul.f32 %v2552, %v2162
          %v2560 = vsel %vm1830, %v2559, 0.0
          %2561 = vadd.xlane.f32.xlu0 %v2560
          %v2562 = vpop.xlane.xlu0 %2561
          %v2563 = vld [vmem:[%s19] sm:$0xff]
          %v2564 = vld [vmem:[%s19 + $0x8] sm:$0xff]
          %v2565 = vld [vmem:[%s20] sm:$0xff]
          %v2566 = vld [vmem:[%s20 + $0x8] sm:$0xff]
          %v2568 = vsel %vm1319, %v2089, 0
          %2570 = vmatprep.subr.mxu0 0.0
          %2571 = vmatpush1.msra.mxu0 %v2565
          %2572 = vmatprep.subr.mxu0 0.0
          %2573 = vmatpush1.msra.mxu0 %v2566
          %2574 = vmatprep.subr.mxu0 0.0
          %2575 = vmatpush1.msra.mxu0 0.0
          %2576 = vmatprep.subr.mxu0 0.0
          %2577 = vmatpush1.msra.mxu0 0.0
          %2578 = vmatprep.subr.mxu0 0.0
          %2579 = vmatpush1.msra.mxu0 0.0
          %2580 = vmatprep.subr.mxu0 0.0
          %2581 = vmatpush1.msra.mxu0 0.0
          %2582 = vmatprep.subr.mxu0 0.0
          %2583 = vmatpush1.msra.mxu0 0.0
          %2584 = vmatprep.subr.mxu0 0.0
          %2585 = vmatpush1.msra.mxu0 0.0
          %2586 = vmatprep.subr.mxu0 0.0
          %2587 = vmatpush1.msra.mxu0 0.0
          %2588 = vmatprep.subr.mxu0 0.0
          %2589 = vmatpush1.msra.mxu0 0.0
          %2590 = vmatprep.subr.mxu0 0.0
          %2591 = vmatpush1.msra.mxu0 0.0
          %2592 = vmatprep.subr.mxu0 0.0
          %2593 = vmatpush1.msra.mxu0 0.0
          %2594 = vmatprep.subr.mxu0 0.0
          %2595 = vmatpush1.msra.mxu0 0.0
          %2596 = vmatprep.subr.mxu0 0.0
          %2597 = vmatpush1.msra.mxu0 0.0
          %2598 = vmatprep.subr.mxu0 0.0
          %2599 = vmatpush1.msra.mxu0 0.0
          %2600 = vmatprep.subr.mxu0 0.0
          %2601 = vmatpush1.msra.mxu0 0.0
          %2602 = vmatprep.subr.mxu0 0.0
          %2603 = vmatpush1.msra.mxu0 0.0
          %2604 = vmatprep.subr.mxu0 0.0
          %2605 = vmatpush1.msra.mxu0 0.0
          %2606 = vmatprep.subr.mxu0 0.0
          %2607 = vmatpush1.msra.mxu0 0.0
          %2608 = vmatprep.subr.mxu0 0.0
          %2609 = vmatpush1.msra.mxu0 0.0
          %2610 = vmatprep.subr.mxu0 0.0
          %2611 = vmatpush1.msra.mxu0 0.0
          %2612 = vmatprep.subr.mxu0 0.0
          %2613 = vmatpush1.msra.mxu0 0.0
          %2614 = vmatprep.subr.mxu0 0.0
          %2615 = vmatpush1.msra.mxu0 0.0
          %2616 = vmatprep.subr.mxu0 0.0
          %2617 = vmatpush1.msra.mxu0 0.0
          %2618 = vmatprep.subr.mxu0 0.0
          %2619 = vmatpush1.msra.mxu0 0.0
          %2620 = vmatprep.subr.mxu0 0.0
          %2621 = vmatpush1.msra.mxu0 0.0
          %2622 = vmatprep.subr.mxu0 0.0
          %2623 = vmatpush1.msra.mxu0 0.0
          %2624 = vmatprep.subr.mxu0 0.0
          %2625 = vmatpush1.msra.mxu0 0.0
          %2626 = vmatprep.subr.mxu0 0.0
          %2627 = vmatpush1.msra.mxu0 0.0
          %2628 = vmatprep.subr.mxu0 0.0
          %2629 = vmatpush1.msra.mxu0 0.0
          %2630 = vmatprep.subr.mxu0 0.0
          %2631 = vmatpush1.msra.mxu0 0.0
          %2632 = vmatprep.subr.mxu0 0.0
          %2633 = vmatpush1.msra.mxu0 0.0
          %2634 = vmatprep.mubr.f32.mxu0 0.0
          %2635 = vmatmul.mubr.f32.gmra.mrb[0].mxu0 %v2568
          %v2636 = vpop.f32.mrb[0].mxu0
          %v2637 = vadd.f32 0.0, %v2636
          %v2638 = vpop.f32.mrb[0].mxu0
          %2639 = vdwg.mxu0
          %v2641 = vsel %vm1319, %v2552, 0
          %2643 = vmatprep.subr.mxu0 0.0
          %2644 = vmatpush1.msra.mxu0 %v2563
          %2645 = vmatprep.subr.mxu0 0.0
          %2646 = vmatpush1.msra.mxu0 %v2564
          %2647 = vmatprep.subr.mxu0 0.0
          %2648 = vmatpush1.msra.mxu0 0.0
          %2649 = vmatprep.subr.mxu0 0.0
          %2650 = vmatpush1.msra.mxu0 0.0
          %2651 = vmatprep.subr.mxu0 0.0
          %2652 = vmatpush1.msra.mxu0 0.0
          %2653 = vmatprep.subr.mxu0 0.0
          %2654 = vmatpush1.msra.mxu0 0.0
          %2655 = vmatprep.subr.mxu0 0.0
          %2656 = vmatpush1.msra.mxu0 0.0
          %2657 = vmatprep.subr.mxu0 0.0
          %2658 = vmatpush1.msra.mxu0 0.0
          %2659 = vmatprep.subr.mxu0 0.0
          %2660 = vmatpush1.msra.mxu0 0.0
          %2661 = vmatprep.subr.mxu0 0.0
          %2662 = vmatpush1.msra.mxu0 0.0
          %2663 = vmatprep.subr.mxu0 0.0
          %2664 = vmatpush1.msra.mxu0 0.0
          %2665 = vmatprep.subr.mxu0 0.0
          %2666 = vmatpush1.msra.mxu0 0.0
          %2667 = vmatprep.subr.mxu0 0.0
          %2668 = vmatpush1.msra.mxu0 0.0
          %2669 = vmatprep.subr.mxu0 0.0
          %2670 = vmatpush1.msra.mxu0 0.0
          %2671 = vmatprep.subr.mxu0 0.0
          %2672 = vmatpush1.msra.mxu0 0.0
          %2673 = vmatprep.subr.mxu0 0.0
          %2674 = vmatpush1.msra.mxu0 0.0
          %2675 = vmatprep.subr.mxu0 0.0
          %2676 = vmatpush1.msra.mxu0 0.0
          %2677 = vmatprep.subr.mxu0 0.0
          %2678 = vmatpush1.msra.mxu0 0.0
          %2679 = vmatprep.subr.mxu0 0.0
          %2680 = vmatpush1.msra.mxu0 0.0
          %2681 = vmatprep.subr.mxu0 0.0
          %2682 = vmatpush1.msra.mxu0 0.0
          %2683 = vmatprep.subr.mxu0 0.0
          %2684 = vmatpush1.msra.mxu0 0.0
          %2685 = vmatprep.subr.mxu0 0.0
          %2686 = vmatpush1.msra.mxu0 0.0
          %2687 = vmatprep.subr.mxu0 0.0
          %2688 = vmatpush1.msra.mxu0 0.0
          %2689 = vmatprep.subr.mxu0 0.0
          %2690 = vmatpush1.msra.mxu0 0.0
          %2691 = vmatprep.subr.mxu0 0.0
          %2692 = vmatpush1.msra.mxu0 0.0
          %2693 = vmatprep.subr.mxu0 0.0
          %2694 = vmatpush1.msra.mxu0 0.0
          %2695 = vmatprep.subr.mxu0 0.0
          %2696 = vmatpush1.msra.mxu0 0.0
          %2697 = vmatprep.subr.mxu0 0.0
          %2698 = vmatpush1.msra.mxu0 0.0
          %2699 = vmatprep.subr.mxu0 0.0
          %2700 = vmatpush1.msra.mxu0 0.0
          %2701 = vmatprep.subr.mxu0 0.0
          %2702 = vmatpush1.msra.mxu0 0.0
          %2703 = vmatprep.subr.mxu0 0.0
          %2704 = vmatpush1.msra.mxu0 0.0
          %2705 = vmatprep.subr.mxu0 0.0
          %2706 = vmatpush1.msra.mxu0 0.0
          %2707 = vmatprep.mubr.f32.mxu0 0.0
          %2708 = vmatmul.mubr.f32.gmra.mrb[0].mxu0 %v2641
          %v2709 = vpop.f32.mrb[0].mxu0
          %v2710 = vadd.f32 %v2637, %v2709
          %v2711 = vpop.f32.mrb[0].mxu0
          %2712 = vdwg.mxu0
          %v2713 = vld [vmem:[%s21] sm:$0x1]
          %v2715 = vlaneseq
          %v2716 = vshrl.u32 %v2715, 7
          %v2717 = vsub.s32 0, %v2716
          %v2718 = vrot.slane %v2713, %v2717
          %v2720 = vadd.f32 %v2710, %v2718
          %vm2721 = vcmp.ge.f32.partialorder %v2720, 0.0
          %v2722 = vmul.f32 %v2720, 0.01
          %v2723 = vsel %vm2721, %v2720, %v2722
          %v2724 = vld [vmem:[%s22] sm:$0xff]
          %v2725 = vld [vmem:[%s22 + $0x8] sm:$0xff]
          %v2726 = vld [vmem:[#allocation3] sm:$0x1]
          %v2728 = vlaneseq
          %v2729 = vshrl.u32 %v2728, 7
          %v2730 = vsub.s32 0, %v2729
          %v2731 = vrot.slane %v2726, %v2730
          %v2734 = vsel %vm1319, %v2723, 0
          %2736 = vmatprep.subr.mxu0 0.0
          %2737 = vmatpush1.msra.mxu0 %v2724
          %2738 = vmatprep.subr.mxu0 0.0
          %2739 = vmatpush1.msra.mxu0 %v2725
          %2740 = vmatprep.subr.mxu0 0.0
          %2741 = vmatpush1.msra.mxu0 0.0
          %2742 = vmatprep.subr.mxu0 0.0
          %2743 = vmatpush1.msra.mxu0 0.0
          %2744 = vmatprep.subr.mxu0 0.0
          %2745 = vmatpush1.msra.mxu0 0.0
          %2746 = vmatprep.subr.mxu0 0.0
          %2747 = vmatpush1.msra.mxu0 0.0
          %2748 = vmatprep.subr.mxu0 0.0
          %2749 = vmatpush1.msra.mxu0 0.0
          %2750 = vmatprep.subr.mxu0 0.0
          %2751 = vmatpush1.msra.mxu0 0.0
          %2752 = vmatprep.subr.mxu0 0.0
          %2753 = vmatpush1.msra.mxu0 0.0
          %2754 = vmatprep.subr.mxu0 0.0
          %2755 = vmatpush1.msra.mxu0 0.0
          %2756 = vmatprep.subr.mxu0 0.0
          %2757 = vmatpush1.msra.mxu0 0.0
          %2758 = vmatprep.subr.mxu0 0.0
          %2759 = vmatpush1.msra.mxu0 0.0
          %2760 = vmatprep.subr.mxu0 0.0
          %2761 = vmatpush1.msra.mxu0 0.0
          %2762 = vmatprep.subr.mxu0 0.0
          %2763 = vmatpush1.msra.mxu0 0.0
          %2764 = vmatprep.subr.mxu0 0.0
          %2765 = vmatpush1.msra.mxu0 0.0
          %2766 = vmatprep.subr.mxu0 0.0
          %2767 = vmatpush1.msra.mxu0 0.0
          %2768 = vmatprep.subr.mxu0 0.0
          %2769 = vmatpush1.msra.mxu0 0.0
          %2770 = vmatprep.subr.mxu0 0.0
          %2771 = vmatpush1.msra.mxu0 0.0
          %2772 = vmatprep.subr.mxu0 0.0
          %2773 = vmatpush1.msra.mxu0 0.0
          %2774 = vmatprep.subr.mxu0 0.0
          %2775 = vmatpush1.msra.mxu0 0.0
          %2776 = vmatprep.subr.mxu0 0.0
          %2777 = vmatpush1.msra.mxu0 0.0
          %2778 = vmatprep.subr.mxu0 0.0
          %2779 = vmatpush1.msra.mxu0 0.0
          %2780 = vmatprep.subr.mxu0 0.0
          %2781 = vmatpush1.msra.mxu0 0.0
          %2782 = vmatprep.subr.mxu0 0.0
          %2783 = vmatpush1.msra.mxu0 0.0
          %2784 = vmatprep.subr.mxu0 0.0
          %2785 = vmatpush1.msra.mxu0 0.0
          %2786 = vmatprep.subr.mxu0 0.0
          %2787 = vmatpush1.msra.mxu0 0.0
          %2788 = vmatprep.subr.mxu0 0.0
          %2789 = vmatpush1.msra.mxu0 0.0
          %2790 = vmatprep.subr.mxu0 0.0
          %2791 = vmatpush1.msra.mxu0 0.0
          %2792 = vmatprep.subr.mxu0 0.0
          %2793 = vmatpush1.msra.mxu0 0.0
          %2794 = vmatprep.subr.mxu0 0.0
          %2795 = vmatpush1.msra.mxu0 0.0
          %2796 = vmatprep.subr.mxu0 0.0
          %2797 = vmatpush1.msra.mxu0 0.0
          %2798 = vmatprep.subr.mxu0 0.0
          %2799 = vmatpush1.msra.mxu0 0.0
          %2800 = vmatprep.mubr.f32.mxu0 0.0
          %2801 = vmatmul.mubr.f32.gmra.mrb[0].mxu0 %v2734
          %v2802 = vpop.f32.mrb[0].mxu0
          %v2803 = vadd.f32 %v2731, %v2802
          %v2804 = vpop.f32.mrb[0].mxu0
          %2805 = vdwg.mxu0
          %vm2806 = vcmp.eq.s32.totalorder %v1822, 0
          %v2807 = vsel %vm2806, 1, 0
          %v2808 = vcvt.s32.f32 %v2807
          %v2809 = vmul.f32 %v2558, %v2808
          %vm2810 = vcmp.eq.s32.totalorder %v1822, 1
          %v2811 = vsel %vm2810, 1, 0
          %v2812 = vcvt.s32.f32 %v2811
          %v2813 = vmul.f32 %v2562, %v2812
          %v2814 = vadd.f32 %v2809, %v2813
          %vm2815 = vcmp.eq.s32.totalorder %v1822, 2
          %v2816 = vsel %vm2815, 1, 0
          %v2817 = vcvt.s32.f32 %v2816
          %2819 = vset.pattern.permute.xlu0 0
          %2820 = vperm.xlu0 %2819, %v2803
          %v2821 = vpop.permute.xlu0 %2820
          %v2823 = vmul.f32 %v2821, %v2817
          %v2824 = vadd.f32 %v2814, %v2823
          %vm2825 = vcmask 19456
          %2826 = vst.msk [vmem:[%s25] sm:$0xf] %vm2825, %v2824
        $region180: #{nft_mars_forward.1} parent=115 // pred_fallthru
          _
        // Predicated region
        $region181: #{nft_mars_forward.1} parent=115 // pred_check
          %p2827 = pneg %p620
        $region182: #{nft_mars_forward.1} parent=115 // pred_check_branch
          %2829 = sbr.rel (%p2827) target = $region184
        $region183: #{nft_mars_forward.1} parent=115 // pred_region
          %s2831 = ssub.s32 256, 256
          %2832 = vsyncadd [#allocation6], %s2831
          %s2833 = sshll.u32 [#allocation27], 4
          %s2834 = int_to_ptr.vmem [resolvable:$true] %s2833
          %2839 = dma.vmem_to_hbm [thread:$0]  %s2834, 256, %s24, [#allocation6], 128, 128, 8
        $region184: #{nft_mars_forward.1} parent=115 // pred_fallthru
          _
        // Predicated region
        $region185: #{nft_mars_forward.1} parent=115 // pred_check
          %p2840 = pneg %p641
        $region186: #{nft_mars_forward.1} parent=115 // pred_check_branch
          %2842 = sbr.rel (%p2840) target = $region188
        $region187: #{nft_mars_forward.1} parent=115 // pred_region
          _
        $region188: #{nft_mars_forward.1} parent=115 // pred_fallthru
          _
        // Predicated region
        $region189: #{nft_mars_forward.1} parent=115 // pred_check
          %p2843 = pneg %p620
        $region190: #{nft_mars_forward.1} parent=115 // pred_check_branch
          %2845 = sbr.rel (%p2843) target = $region192
        $region191: #{nft_mars_forward.1} parent=115 // pred_region
          %2846 = dma.done [#allocation6], 256
        $region192: #{nft_mars_forward.1} parent=115 // pred_fallthru
          _
        // Predicated region
        $region193: #{nft_mars_forward.1} parent=115 // pred_check
          %p2847 = pneg %p641
        $region194: #{nft_mars_forward.1} parent=115 // pred_check_branch
          %2849 = sbr.rel (%p2847) target = $region196
        $region195: #{nft_mars_forward.1} parent=115 // pred_region
          _
        $region196: #{nft_mars_forward.1} parent=115 // pred_fallthru
          _
      $region116: #{nft_mars_forward.1} parent=5 // pred_fallthru
        _
      %p2850 = scmp.le.s32.totalorder 2, %s53
      // Predicated region
      $region197: #{nft_mars_forward.1} parent=5 // pred_check
        %p2851 = pneg %p2850
      $region198: #{nft_mars_forward.1} parent=5 // pred_check_branch
        %2853 = sbr.rel (%p2851) target = $region200
      $region199: #{nft_mars_forward.1} parent=5 // pred_region
        %s2854 = ssub.s32 %s53, 2
      $region200: #{nft_mars_forward.1} parent=5 // pred_fallthru
        _
    $region6: #{nft_mars_forward.1} parent=1 // loop_footer
      %s57 = sadd.s32 1, %s53
    $region7: #{nft_mars_forward.1} parent=1 // loop_footer_branch
      %52 = sbr.rel target = $region3
    $region8: #{nft_mars_forward.1} parent=1 // loop_exit
      _
    %2855 = vsyncpa [#allocation5], 1
    %s2856 = scalar_lea.sflag [#allocation5], 1
    %2857 = vsyncpa %s2856, 1
    %2858 = vsyncpa [#allocation8], 1
    %s2859 = scalar_lea.sflag [#allocation8], 1
    %2860 = vsyncpa %s2859, 1
    %2861 = vsyncpa [#allocation11], 1
    %s2862 = scalar_lea.sflag [#allocation11], 1
    %2863 = vsyncpa %s2862, 1
    %2864 = vsyncpa [#allocation14], 1
    %s2865 = scalar_lea.sflag [#allocation14], 1
    %2866 = vsyncpa %s2865, 1
    %2867 = vsyncpa [#allocation17], 1
    %s2868 = scalar_lea.sflag [#allocation17], 1
    %2869 = vsyncpa %s2868, 1
    %2870 = vsyncpa [#allocation20], 1
    %2871 = vsyncpa [#allocation23], 1
    %2872 = vsyncpa [#allocation26], 1
    %2873 = vsyncpa [#allocation6], 1
    %s2874 = scalar_lea.sflag [#allocation6], 1
    %2875 = vsyncpa %s2874, 1

</llo_original>
